<compile_context>
chip_gen: v7x
topology: tpu7x:2x2x1
jax: 0.10.0
libtpu: 0.0.40
codegen_flags: <defaults>
</compile_context>

<pallas_src>
import functools

import jax
import jax.numpy as jnp
from jax.experimental import pallas as pl
from jax.experimental.pallas import tpu as pltpu

NORM_EPS = 1e-6
KSIZE = 7
PAD = KSIZE // 2
LPAD = 8          # sublane-aligned left pad for the conv scratch (>= PAD)


def _gelu_tanh(x):
    return 0.5 * x * (1.0 + jnp.tanh(0.7978845608028654 * (x + 0.044715 * x * x * x)))


def speaker_encoder_kernel(x_ref, w_in_ref, b_in_ref,
                           dw_w_ref, dw_b_ref, ns_ref, nb_ref,
                           w1_ref, b1_ref, w2_ref, b2_ref, gamma_ref,
                           w_out_ref, b_out_ref,
                           out_ref,
                           h_ref, hp_ref):
    """One grid step == one ConvNeXt layer.  Step 0 additionally runs the input
    1x1 conv; the last step additionally runs the temporal mean + output conv."""
    l = pl.program_id(0)
    B, T, _ = x_ref.shape
    C = h_ref.shape[-1]

    @pl.when(l == 0)
    def _init():
        # zero the padded conv scratch once (pad rows stay zero afterwards)
        hp_ref[...] = jnp.zeros_like(hp_ref)
        # input_layer: Conv1d(Cin, C, 1) == (B*T, Cin) @ (Cin, C) on the MXU
        x = x_ref[...].reshape(B * T, x_ref.shape[-1])            # bf16
        h0 = jnp.dot(x, w_in_ref[...], preferred_element_type=jnp.float32)
        h0 = h0 + b_in_ref[...]
        h_ref[...] = h0.reshape(B, T, C)

    # ---- ConvNeXt block l ----
    h = h_ref[...]                                                # (B, T, C) f32

    # depthwise conv k=7 pad=3: aligned store into the padded scratch, then 7
    # shifted value slices with a per-channel MAC on the VPU.
    hp_ref[:, LPAD:LPAD + T, :] = h
    hp = hp_ref[...]                                              # (B, T+2*LPAD, C)
    dw = dw_w_ref[0]                                              # (K, C) f32
    off = LPAD - PAD
    acc = hp[:, off:off + T, :] * dw[0:1, :]
    for k in range(1, KSIZE):
        acc = acc + hp[:, off + k:off + k + T, :] * dw[k:k + 1, :]
    y = acc + dw_b_ref[...]                                       # (B, T, C)

    # channel LayerNorm (lane reduction) + affine
    mu = jnp.mean(y, axis=-1, keepdims=True)
    var = jnp.mean(jnp.square(y - mu), axis=-1, keepdims=True)
    y = (y - mu) * jax.lax.rsqrt(var + NORM_EPS)
    y = y * ns_ref[...] + nb_ref[...]

    # pointwise MLP (1x1 convs) in bf16 on the MXU, f32 accumulation
    y2 = y.reshape(B * T, C).astype(jnp.bfloat16)
    z = jnp.dot(y2, w1_ref[0], preferred_element_type=jnp.float32) + b1_ref[0]
    z = _gelu_tanh(z)
    z = jnp.dot(z.astype(jnp.bfloat16), w2_ref[0],
                preferred_element_type=jnp.float32) + b2_ref[0]

    # layer scale + residual (kept in f32)
    h_new = h + z.reshape(B, T, C) * gamma_ref[...]
    h_ref[...] = h_new

    @pl.when(l == pl.num_programs(0) - 1)
    def _final():
        # x.mean(dim=2, keepdim=True) -> temporal mean, then output 1x1 conv
        m = jnp.mean(h_new, axis=1)                               # (B, C)
        o = jnp.dot(m.astype(jnp.bfloat16), w_out_ref[...],
                    preferred_element_type=jnp.float32) + b_out_ref[...]
        out_ref[...] = o.astype(out_ref.dtype)                    # (B, 2E)


def speaker_encoder_forward(x_ncw, params):
    """x_ncw: (B, Cin, T), PyTorch NCW layout. Returns (mean, logvar), each (B, E, 1)."""
    B, Cin, T = x_ncw.shape
    (w_in, b_in, dw_w, dw_b, ns, nb, w1, b1, w2, b2, gamma, w_out, b_out) = params
    L = dw_w.shape[0]
    C = w_in.shape[1]
    E2 = w_out.shape[1]

    # bf16 matmul operands (native MXU dtype, halves weight HBM->VMEM traffic);
    # biases / norm params / depthwise taps stay f32 for the VPU math.
    x = jnp.transpose(x_ncw, (0, 2, 1)).astype(jnp.bfloat16)      # (B, T, Cin)
    w_in_b = w_in.astype(jnp.bfloat16)
    w1_b = w1.astype(jnp.bfloat16)
    w2_b = w2.astype(jnp.bfloat16)
    w_out_b = w_out.astype(jnp.bfloat16)

    inputs = (x, w_in_b, b_in, dw_w, dw_b, ns, nb,
              w1_b, b1, w2_b, b2, gamma, w_out_b, b_out)

    def invariant(arr):
        nd = arr.ndim
        return pl.BlockSpec(arr.shape, lambda l, _nd=nd: (0,) * _nd)

    def per_layer(arr):
        nd = arr.ndim
        return pl.BlockSpec((1,) + arr.shape[1:],
                            lambda l, _nd=nd: (l,) + (0,) * (_nd - 1))

    in_specs = [
        invariant(x), invariant(w_in_b), invariant(b_in),
        per_layer(dw_w), per_layer(dw_b), per_layer(ns), per_layer(nb),
        per_layer(w1_b), per_layer(b1), per_layer(w2_b), per_layer(b2),
        per_layer(gamma),
        invariant(w_out_b), invariant(b_out),
    ]

    out = pl.pallas_call(
        speaker_encoder_kernel,
        out_shape=jax.ShapeDtypeStruct((B, E2), jnp.float32),
        grid_spec=pltpu.PrefetchScalarGridSpec(
            num_scalar_prefetch=0,
            grid=(L,),                                            # layer axis
            in_specs=in_specs,
            out_specs=pl.BlockSpec((B, E2), lambda l: (0, 0)),
            scratch_shapes=[
                pltpu.VMEM((B, T, C), jnp.float32),               # residual stream
                pltpu.VMEM((B, T + 2 * LPAD, C), jnp.float32),    # zero-padded conv slab
            ],
        ),
        compiler_params=pltpu.CompilerParams(
            dimension_semantics=("arbitrary",)),                  # layers are sequential
    )(*inputs)

    E = E2 // 2
    mean = out[:, :E][:, :, None]                                 # (B, E, 1), matches torch chunk dim=1
    logvar = out[:, E:][:, :, None]
    return mean, logvar


def reference_forward(x_ncw, params):
    """Pure-JAX f32 reference with identical math (channels-last internally)."""
    (w_in, b_in, dw_w, dw_b, ns, nb, w1, b1, w2, b2, gamma, w_out, b_out) = params
    P = jax.lax.Precision.HIGHEST
    x = jnp.transpose(x_ncw, (0, 2, 1)).astype(jnp.float32)       # (B, T, Cin)
    h = jnp.einsum('btc,cd->btd', x, w_in, precision=P) + b_in
    B, T, C = h.shape
    L = dw_w.shape[0]
    for l in range(L):
        res = h
        xp = jnp.pad(h, ((0, 0), (PAD, PAD), (0, 0)))
        acc = jnp.zeros_like(h)
        for k in range(KSIZE):
            acc = acc + xp[:, k:k + T, :] * dw_w[l, k][None, None, :]
        y = acc + dw_b[l][None]
        mu = jnp.mean(y, axis=-1, keepdims=True)
        var = jnp.mean((y - mu) ** 2, axis=-1, keepdims=True)
        y = (y - mu) * jax.lax.rsqrt(var + NORM_EPS)
        y = y * ns[l][None] + nb[l][None]
        y = jnp.einsum('btc,ch->bth', y, w1[l], precision=P) + b1[l][None]
        y = _gelu_tanh(y)
        y = jnp.einsum('bth,hc->btc', y, w2[l], precision=P) + b2[l][None]
        y = y * gamma[l][None]
        h = res + y
    m = jnp.mean(h, axis=1, keepdims=True)                        # (B, 1, C)
    o = jnp.einsum('btc,cd->btd', m, w_out, precision=P) + b_out  # (B, 1, 2E)
    E = w_out.shape[1] // 2
    return (jnp.transpose(o[:, :, :E], (0, 2, 1)),
            jnp.transpose(o[:, :, E:], (0, 2, 1)))


def init_params(key, cin, channels, hidden, embedding_dim, num_layers):
    L, C, H, E = num_layers, channels, hidden, embedding_dim
    ks = jax.random.split(key, 10)

    def n(k, shape, scale):
        return jax.random.normal(k, shape, dtype=jnp.float32) * scale

    w_in = n(ks[0], (cin, C), 0.05)
    b_in = n(ks[1], (1, C), 0.02)
    dw_w = n(ks[2], (L, KSIZE, C), 0.10)
    dw_b = n(ks[3], (L, 1, C), 0.02)
    ns = jnp.ones((L, 1, C), jnp.float32)      # norm scale
    nb = jnp.zeros((L, 1, C), jnp.float32)     # norm shift
    w1 = n(ks[4], (L, C, H), 0.05)
    b1 = n(ks[5], (L, 1, H), 0.02)
    w2 = n(ks[6], (L, H, C), 0.05)
    b2 = n(ks[7], (L, 1, C), 0.02)
    gamma = jnp.full((L, 1, C), 0.1, jnp.float32)                 # ConvNeXt layer scale
    w_out = n(ks[8], (C, 2 * E), 0.05)
    b_out = n(ks[9], (1, 2 * E), 0.02)
    return (w_in, b_in, dw_w, dw_b, ns, nb, w1, b1, w2, b2, gamma, w_out, b_out)


if __name__ == "__main__":
    # Small, TPU-friendly instantiation of the architecture:
    #   n_fft=254 -> 128 input channels, 256 internal channels, hidden=3*256,
    #   embedding_dim=64, num_layers=4, batch=2, seq(T)=16.
    B, T = 2, 16
    n_fft, embedding_dim, num_layers = 254, 64, 4
    channels, hidden = 256, 768
    cin = n_fft // 2 + 1  # = 128

    key = jax.random.PRNGKey(0)
    kx, kp = jax.random.split(key)
    params = init_params(kp, cin, channels, hidden, embedding_dim, num_layers)
    x = jax.random.normal(kx, (B, cin, T), dtype=jnp.float32)     # PyTorch NCW input

    mean, logvar = speaker_encoder_forward(x, params)
    jax.block_until_ready((mean, logvar))

    assert mean.shape == (B, embedding_dim, 1)
    assert logvar.shape == (B, embedding_dim, 1)

    ref_mean, ref_logvar = reference_forward(x, params)
    # kernel runs bf16 matmuls (f32 accumulate); reference is strict f32
    assert jnp.allclose(mean, ref_mean, atol=2e-2, rtol=2e-2)
    assert jnp.allclose(logvar, ref_logvar, atol=2e-2, rtol=2e-2)

    print("KERNEL_OK")
</pallas_src>

<mosaic_0001>
module attributes {stable_mosaic.version = 11 : i64} {
  func.func @speaker_encoder_kernel(%arg0: i32, %arg1: memref<2x16x128xbf16, #tpu.memory_space<vmem>>, %arg2: memref<128x256xbf16, #tpu.memory_space<vmem>>, %arg3: memref<1x256xf32, #tpu.memory_space<vmem>>, %arg4: memref<1x7x256xf32, #tpu.memory_space<vmem>>, %arg5: memref<1x1x256xf32, #tpu.memory_space<vmem>>, %arg6: memref<1x1x256xf32, #tpu.memory_space<vmem>>, %arg7: memref<1x1x256xf32, #tpu.memory_space<vmem>>, %arg8: memref<1x256x768xbf16, #tpu.memory_space<vmem>>, %arg9: memref<1x1x768xf32, #tpu.memory_space<vmem>>, %arg10: memref<1x768x256xbf16, #tpu.memory_space<vmem>>, %arg11: memref<1x1x256xf32, #tpu.memory_space<vmem>>, %arg12: memref<1x1x256xf32, #tpu.memory_space<vmem>>, %arg13: memref<256x128xbf16, #tpu.memory_space<vmem>>, %arg14: memref<1x128xf32, #tpu.memory_space<vmem>>, %arg15: memref<2x128xf32, #tpu.memory_space<vmem>>, %arg16: memref<2x16x256xf32, #tpu.memory_space<vmem>>, %arg17: memref<2x32x256xf32, #tpu.memory_space<vmem>>) attributes {dimension_semantics = [#tpu.dimension_semantics<arbitrary>], iteration_bounds = array<i64: 4>, scalar_prefetch = 0 : i64, scratch_operands = 2 : i64, tpu.core_type = #tpu.core_type<tc>, window_params = [{pipeline_mode = #tpu.pipeline_mode<synchronous>, transform_indices = @transform_0, window_bounds = array<i64: 2, 16, 128>}, {pipeline_mode = #tpu.pipeline_mode<synchronous>, transform_indices = @transform_1, window_bounds = array<i64: 128, 256>}, {pipeline_mode = #tpu.pipeline_mode<synchronous>, transform_indices = @transform_2, window_bounds = array<i64: 1, 256>}, {transform_indices = @transform_3, window_bounds = array<i64: 1, 7, 256>}, {transform_indices = @transform_4, window_bounds = array<i64: 1, 1, 256>}, {transform_indices = @transform_5, window_bounds = array<i64: 1, 1, 256>}, {transform_indices = @transform_6, window_bounds = array<i64: 1, 1, 256>}, {transform_indices = @transform_7, window_bounds = array<i64: 1, 256, 768>}, {transform_indices = @transform_8, window_bounds = array<i64: 1, 1, 768>}, {transform_indices = @transform_9, window_bounds = array<i64: 1, 768, 256>}, {transform_indices = @transform_10, window_bounds = array<i64: 1, 1, 256>}, {transform_indices = @transform_11, window_bounds = array<i64: 1, 1, 256>}, {pipeline_mode = #tpu.pipeline_mode<synchronous>, transform_indices = @transform_12, window_bounds = array<i64: 256, 128>}, {pipeline_mode = #tpu.pipeline_mode<synchronous>, transform_indices = @transform_13, window_bounds = array<i64: 1, 128>}, {pipeline_mode = #tpu.pipeline_mode<synchronous>, transform_indices = @transform_14, window_bounds = array<i64: 2, 128>}]} {
    %c0_i32 = arith.constant 0 : i32
    %0 = arith.cmpi eq, %arg0, %c0_i32 : i32
    %1 = arith.extui %0 : i1 to i32
    %c0_i32_0 = arith.constant 0 : i32
    %2 = arith.cmpi ne, %1, %c0_i32_0 : i32
    scf.if %2 {
      %cst_49 = arith.constant 0.000000e+00 : f32
      %115 = vector.broadcast %cst_49 : f32 to vector<2x32x256xf32>
      %c0_50 = arith.constant 0 : index
      %c0_51 = arith.constant 0 : index
      %c0_52 = arith.constant 0 : index
      %116 = vector.load %arg17[%c0_50, %c0_51, %c0_52] : memref<2x32x256xf32, #tpu.memory_space<vmem>>, vector<2x32x256xf32>
      tpu.vector_store %arg17[%c0_50, %c0_51, %c0_52], %115 {strides = array<i32>} : memref<2x32x256xf32, #tpu.memory_space<vmem>>, vector<2x32x256xf32>,
      %c0_53 = arith.constant 0 : index
      %c0_54 = arith.constant 0 : index
      %c0_55 = arith.constant 0 : index
      %117 = vector.load %arg1[%c0_53, %c0_54, %c0_55] : memref<2x16x128xbf16, #tpu.memory_space<vmem>>, vector<2x16x128xbf16>
      %118 = vector.shape_cast %117 : vector<2x16x128xbf16> to vector<32x128xbf16>
      %c0_56 = arith.constant 0 : index
      %c0_57 = arith.constant 0 : index
      %119 = vector.load %arg2[%c0_56, %c0_57] : memref<128x256xbf16, #tpu.memory_space<vmem>>, vector<128x256xbf16>
      %cst_58 = arith.constant dense<0.000000e+00> : vector<32x256xf32>
      %120 = tpu.matmul %118, %119, %cst_58 {dimension_numbers = #tpu.dot_dimension_numbers<[1], [0], [0], [1], [0, 0, 1, 1], [], []>} : vector<32x128xbf16>, vector<128x256xbf16>, vector<32x256xf32> -> vector<32x256xf32>
      %c0_59 = arith.constant 0 : index
      %c0_60 = arith.constant 0 : index
      %121 = vector.load %arg3[%c0_59, %c0_60] : memref<1x256xf32, #tpu.memory_space<vmem>>, vector<1x256xf32>
      %122 = vector.broadcast %121 : vector<1x256xf32> to vector<32x256xf32>
      %123 = arith.addf %120, %122 : vector<32x256xf32>
      %124 = vector.shape_cast %123 : vector<32x256xf32> to vector<2x16x256xf32>
      %c0_61 = arith.constant 0 : index
      %c0_62 = arith.constant 0 : index
      %c0_63 = arith.constant 0 : index
      %125 = vector.load %arg16[%c0_61, %c0_62, %c0_63] : memref<2x16x256xf32, #tpu.memory_space<vmem>>, vector<2x16x256xf32>
      tpu.vector_store %arg16[%c0_61, %c0_62, %c0_63], %124 {strides = array<i32>} : memref<2x16x256xf32, #tpu.memory_space<vmem>>, vector<2x16x256xf32>,
    } else {
    }
    %c0 = arith.constant 0 : index
    %c0_1 = arith.constant 0 : index
    %c0_2 = arith.constant 0 : index
    %3 = vector.load %arg16[%c0, %c0_1, %c0_2] : memref<2x16x256xf32, #tpu.memory_space<vmem>>, vector<2x16x256xf32>
    %c0_3 = arith.constant 0 : index
    %c8 = arith.constant 8 : index
    %c0_4 = arith.constant 0 : index
    %4 = vector.load %arg17[%c0_3, %c8, %c0_4] : memref<2x32x256xf32, #tpu.memory_space<vmem>>, vector<2x16x256xf32>
    tpu.vector_store %arg17[%c0_3, %c8, %c0_4], %3 {strides = array<i32>} : memref<2x32x256xf32, #tpu.memory_space<vmem>>, vector<2x16x256xf32>,
    %c0_5 = arith.constant 0 : index
    %c0_6 = arith.constant 0 : index
    %c0_7 = arith.constant 0 : index
    %5 = vector.load %arg17[%c0_5, %c0_6, %c0_7] : memref<2x32x256xf32, #tpu.memory_space<vmem>>, vector<2x32x256xf32>
    %c0_8 = arith.constant 0 : index
    %c0_9 = arith.constant 0 : index
    %c0_10 = arith.constant 0 : index
    %6 = vector.load %arg4[%c0_8, %c0_9, %c0_10] : memref<1x7x256xf32, #tpu.memory_space<vmem>>, vector<1x7x256xf32>
    %7 = vector.shape_cast %6 : vector<1x7x256xf32> to vector<7x256xf32>
    %8 = vector.extract_strided_slice %5 {offsets = [0, 5, 0], sizes = [2, 16, 256], strides = [1, 1, 1]} : vector<2x32x256xf32> to vector<2x16x256xf32>
    %9 = vector.extract_strided_slice %7 {offsets = [0, 0], sizes = [1, 256], strides = [1, 1]} : vector<7x256xf32> to vector<1x256xf32>
    %10 = vector.shape_cast %9 : vector<1x256xf32> to vector<1x1x256xf32>
    %11 = vector.broadcast %10 : vector<1x1x256xf32> to vector<2x16x256xf32>
    %12 = arith.mulf %8, %11 : vector<2x16x256xf32>
    %13 = vector.extract_strided_slice %5 {offsets = [0, 6, 0], sizes = [2, 16, 256], strides = [1, 1, 1]} : vector<2x32x256xf32> to vector<2x16x256xf32>
    %14 = vector.extract_strided_slice %7 {offsets = [1, 0], sizes = [1, 256], strides = [1, 1]} : vector<7x256xf32> to vector<1x256xf32>
    %15 = vector.shape_cast %14 : vector<1x256xf32> to vector<1x1x256xf32>
    %16 = vector.broadcast %15 : vector<1x1x256xf32> to vector<2x16x256xf32>
    %17 = arith.mulf %13, %16 : vector<2x16x256xf32>
    %18 = arith.addf %12, %17 : vector<2x16x256xf32>
    %19 = vector.extract_strided_slice %5 {offsets = [0, 7, 0], sizes = [2, 16, 256], strides = [1, 1, 1]} : vector<2x32x256xf32> to vector<2x16x256xf32>
    %20 = vector.extract_strided_slice %7 {offsets = [2, 0], sizes = [1, 256], strides = [1, 1]} : vector<7x256xf32> to vector<1x256xf32>
    %21 = vector.shape_cast %20 : vector<1x256xf32> to vector<1x1x256xf32>
    %22 = vector.broadcast %21 : vector<1x1x256xf32> to vector<2x16x256xf32>
    %23 = arith.mulf %19, %22 : vector<2x16x256xf32>
    %24 = arith.addf %18, %23 : vector<2x16x256xf32>
    %25 = vector.extract_strided_slice %5 {offsets = [0, 8, 0], sizes = [2, 16, 256], strides = [1, 1, 1]} : vector<2x32x256xf32> to vector<2x16x256xf32>
    %26 = vector.extract_strided_slice %7 {offsets = [3, 0], sizes = [1, 256], strides = [1, 1]} : vector<7x256xf32> to vector<1x256xf32>
    %27 = vector.shape_cast %26 : vector<1x256xf32> to vector<1x1x256xf32>
    %28 = vector.broadcast %27 : vector<1x1x256xf32> to vector<2x16x256xf32>
    %29 = arith.mulf %25, %28 : vector<2x16x256xf32>
    %30 = arith.addf %24, %29 : vector<2x16x256xf32>
    %31 = vector.extract_strided_slice %5 {offsets = [0, 9, 0], sizes = [2, 16, 256], strides = [1, 1, 1]} : vector<2x32x256xf32> to vector<2x16x256xf32>
    %32 = vector.extract_strided_slice %7 {offsets = [4, 0], sizes = [1, 256], strides = [1, 1]} : vector<7x256xf32> to vector<1x256xf32>
    %33 = vector.shape_cast %32 : vector<1x256xf32> to vector<1x1x256xf32>
    %34 = vector.broadcast %33 : vector<1x1x256xf32> to vector<2x16x256xf32>
    %35 = arith.mulf %31, %34 : vector<2x16x256xf32>
    %36 = arith.addf %30, %35 : vector<2x16x256xf32>
    %37 = vector.extract_strided_slice %5 {offsets = [0, 10, 0], sizes = [2, 16, 256], strides = [1, 1, 1]} : vector<2x32x256xf32> to vector<2x16x256xf32>
    %38 = vector.extract_strided_slice %7 {offsets = [5, 0], sizes = [1, 256], strides = [1, 1]} : vector<7x256xf32> to vector<1x256xf32>
    %39 = vector.shape_cast %38 : vector<1x256xf32> to vector<1x1x256xf32>
    %40 = vector.broadcast %39 : vector<1x1x256xf32> to vector<2x16x256xf32>
    %41 = arith.mulf %37, %40 : vector<2x16x256xf32>
    %42 = arith.addf %36, %41 : vector<2x16x256xf32>
    %43 = vector.extract_strided_slice %5 {offsets = [0, 11, 0], sizes = [2, 16, 256], strides = [1, 1, 1]} : vector<2x32x256xf32> to vector<2x16x256xf32>
    %44 = vector.extract_strided_slice %7 {offsets = [6, 0], sizes = [1, 256], strides = [1, 1]} : vector<7x256xf32> to vector<1x256xf32>
    %45 = vector.shape_cast %44 : vector<1x256xf32> to vector<1x1x256xf32>
    %46 = vector.broadcast %45 : vector<1x1x256xf32> to vector<2x16x256xf32>
    %47 = arith.mulf %43, %46 : vector<2x16x256xf32>
    %48 = arith.addf %42, %47 : vector<2x16x256xf32>
    %c0_11 = arith.constant 0 : index
    %c0_12 = arith.constant 0 : index
    %c0_13 = arith.constant 0 : index
    %49 = vector.load %arg5[%c0_11, %c0_12, %c0_13] : memref<1x1x256xf32, #tpu.memory_space<vmem>>, vector<1x1x256xf32>
    %50 = vector.broadcast %49 : vector<1x1x256xf32> to vector<2x16x256xf32>
    %51 = arith.addf %48, %50 : vector<2x16x256xf32>
    %cst = arith.constant dense<0.000000e+00> : vector<2x16xf32>
    %52 = vector.multi_reduction <add>, %51, %cst [2] : vector<2x16x256xf32> to vector<2x16xf32>
    %53 = vector.shape_cast %52 : vector<2x16xf32> to vector<2x16x1xf32>
    %cst_14 = arith.constant 2.560000e+02 : f32
    %54 = vector.broadcast %cst_14 : f32 to vector<2x16x1xf32>
    %55 = arith.divf %53, %54 : vector<2x16x1xf32>
    %56 = vector.broadcast %55 : vector<2x16x1xf32> to vector<2x16x256xf32>
    %57 = arith.subf %51, %56 : vector<2x16x256xf32>
    %58 = arith.mulf %57, %57 : vector<2x16x256xf32>
    %cst_15 = arith.constant dense<0.000000e+00> : vector<2x16xf32>
    %59 = vector.multi_reduction <add>, %58, %cst_15 [2] : vector<2x16x256xf32> to vector<2x16xf32>
    %60 = vector.shape_cast %59 : vector<2x16xf32> to vector<2x16x1xf32>
    %cst_16 = arith.constant 2.560000e+02 : f32
    %61 = vector.broadcast %cst_16 : f32 to vector<2x16x1xf32>
    %62 = arith.divf %60, %61 : vector<2x16x1xf32>
    %63 = vector.broadcast %55 : vector<2x16x1xf32> to vector<2x16x256xf32>
    %64 = arith.subf %51, %63 : vector<2x16x256xf32>
    %cst_17 = arith.constant 9.99999997E-7 : f32
    %65 = vector.broadcast %cst_17 : f32 to vector<2x16x1xf32>
    %66 = arith.addf %62, %65 : vector<2x16x1xf32>
    %67 = math.rsqrt %66 : vector<2x16x1xf32>
    %68 = vector.broadcast %67 : vector<2x16x1xf32> to vector<2x16x256xf32>
    %69 = arith.mulf %64, %68 : vector<2x16x256xf32>
    %c0_18 = arith.constant 0 : index
    %c0_19 = arith.constant 0 : index
    %c0_20 = arith.constant 0 : index
    %70 = vector.load %arg6[%c0_18, %c0_19, %c0_20] : memref<1x1x256xf32, #tpu.memory_space<vmem>>, vector<1x1x256xf32>
    %71 = vector.broadcast %70 : vector<1x1x256xf32> to vector<2x16x256xf32>
    %72 = arith.mulf %69, %71 : vector<2x16x256xf32>
    %c0_21 = arith.constant 0 : index
    %c0_22 = arith.constant 0 : index
    %c0_23 = arith.constant 0 : index
    %73 = vector.load %arg7[%c0_21, %c0_22, %c0_23] : memref<1x1x256xf32, #tpu.memory_space<vmem>>, vector<1x1x256xf32>
    %74 = vector.broadcast %73 : vector<1x1x256xf32> to vector<2x16x256xf32>
    %75 = arith.addf %72, %74 : vector<2x16x256xf32>
    %76 = vector.shape_cast %75 : vector<2x16x256xf32> to vector<32x256xf32>
    %77 = arith.truncf %76 : vector<32x256xf32> to vector<32x256xbf16>
    %c0_24 = arith.constant 0 : index
    %c0_25 = arith.constant 0 : index
    %c0_26 = arith.constant 0 : index
    %78 = vector.load %arg8[%c0_24, %c0_25, %c0_26] : memref<1x256x768xbf16, #tpu.memory_space<vmem>>, vector<1x256x768xbf16>
    %79 = vector.shape_cast %78 : vector<1x256x768xbf16> to vector<256x768xbf16>
    %cst_27 = arith.constant dense<0.000000e+00> : vector<32x768xf32>
    %80 = tpu.matmul %77, %79, %cst_27 {dimension_numbers = #tpu.dot_dimension_numbers<[1], [0], [0], [1], [0, 0, 1, 1], [], []>} : vector<32x256xbf16>, vector<256x768xbf16>, vector<32x768xf32> -> vector<32x768xf32>
    %c0_28 = arith.constant 0 : index
    %c0_29 = arith.constant 0 : index
    %c0_30 = arith.constant 0 : index
    %81 = vector.load %arg9[%c0_28, %c0_29, %c0_30] : memref<1x1x768xf32, #tpu.memory_space<vmem>>, vector<1x1x768xf32>
    %82 = vector.shape_cast %81 : vector<1x1x768xf32> to vector<1x768xf32>
    %83 = vector.broadcast %82 : vector<1x768xf32> to vector<32x768xf32>
    %84 = arith.addf %80, %83 : vector<32x768xf32>
    %cst_31 = arith.constant 5.000000e-01 : f32
    %85 = vector.broadcast %cst_31 : f32 to vector<32x768xf32>
    %86 = arith.mulf %85, %84 : vector<32x768xf32>
    %cst_32 = arith.constant 4.471500e-02 : f32
    %87 = vector.broadcast %cst_32 : f32 to vector<32x768xf32>
    %88 = arith.mulf %87, %84 : vector<32x768xf32>
    %89 = arith.mulf %88, %84 : vector<32x768xf32>
    %90 = arith.mulf %89, %84 : vector<32x768xf32>
    %91 = arith.addf %84, %90 : vector<32x768xf32>
    %cst_33 = arith.constant 0.797884583 : f32
    %92 = vector.broadcast %cst_33 : f32 to vector<32x768xf32>
    %93 = arith.mulf %92, %91 : vector<32x768xf32>
    %94 = math.tanh %93 : vector<32x768xf32>
    %cst_34 = arith.constant 1.000000e+00 : f32
    %95 = vector.broadcast %cst_34 : f32 to vector<32x768xf32>
    %96 = arith.addf %95, %94 : vector<32x768xf32>
    %97 = arith.mulf %86, %96 : vector<32x768xf32>
    %98 = arith.truncf %97 : vector<32x768xf32> to vector<32x768xbf16>
    %c0_35 = arith.constant 0 : index
    %c0_36 = arith.constant 0 : index
    %c0_37 = arith.constant 0 : index
    %99 = vector.load %arg10[%c0_35, %c0_36, %c0_37] : memref<1x768x256xbf16, #tpu.memory_space<vmem>>, vector<1x768x256xbf16>
    %100 = vector.shape_cast %99 : vector<1x768x256xbf16> to vector<768x256xbf16>
    %cst_38 = arith.constant dense<0.000000e+00> : vector<32x256xf32>
    %101 = tpu.matmul %98, %100, %cst_38 {dimension_numbers = #tpu.dot_dimension_numbers<[1], [0], [0], [1], [0, 0, 1, 1], [], []>} : vector<32x768xbf16>, vector<768x256xbf16>, vector<32x256xf32> -> vector<32x256xf32>
    %c0_39 = arith.constant 0 : index
    %c0_40 = arith.constant 0 : index
    %c0_41 = arith.constant 0 : index
    %102 = vector.load %arg11[%c0_39, %c0_40, %c0_41] : memref<1x1x256xf32, #tpu.memory_space<vmem>>, vector<1x1x256xf32>
    %103 = vector.shape_cast %102 : vector<1x1x256xf32> to vector<1x256xf32>
    %104 = vector.broadcast %103 : vector<1x256xf32> to vector<32x256xf32>
    %105 = arith.addf %101, %104 : vector<32x256xf32>
    %106 = vector.shape_cast %105 : vector<32x256xf32> to vector<2x16x256xf32>
    %c0_42 = arith.constant 0 : index
    %c0_43 = arith.constant 0 : index
    %c0_44 = arith.constant 0 : index
    %107 = vector.load %arg12[%c0_42, %c0_43, %c0_44] : memref<1x1x256xf32, #tpu.memory_space<vmem>>, vector<1x1x256xf32>
    %108 = vector.broadcast %107 : vector<1x1x256xf32> to vector<2x16x256xf32>
    %109 = arith.mulf %106, %108 : vector<2x16x256xf32>
    %110 = arith.addf %3, %109 : vector<2x16x256xf32>
    %c0_45 = arith.constant 0 : index
    %c0_46 = arith.constant 0 : index
    %c0_47 = arith.constant 0 : index
    %111 = vector.load %arg16[%c0_45, %c0_46, %c0_47] : memref<2x16x256xf32, #tpu.memory_space<vmem>>, vector<2x16x256xf32>
    tpu.vector_store %arg16[%c0_45, %c0_46, %c0_47], %110 {strides = array<i32>} : memref<2x16x256xf32, #tpu.memory_space<vmem>>, vector<2x16x256xf32>,
    %c3_i32 = arith.constant 3 : i32
    %112 = arith.cmpi eq, %arg0, %c3_i32 : i32
    %113 = arith.extui %112 : i1 to i32
    %c0_i32_48 = arith.constant 0 : i32
    %114 = arith.cmpi ne, %113, %c0_i32_48 : i32
    scf.if %114 {
      %cst_49 = arith.constant dense<0.000000e+00> : vector<2x256xf32>
      %115 = vector.multi_reduction <add>, %110, %cst_49 [1] : vector<2x16x256xf32> to vector<2x256xf32>
      %cst_50 = arith.constant 1.600000e+01 : f32
      %116 = vector.broadcast %cst_50 : f32 to vector<2x256xf32>
      %117 = arith.divf %115, %116 : vector<2x256xf32>
      %118 = arith.truncf %117 : vector<2x256xf32> to vector<2x256xbf16>
      %c0_51 = arith.constant 0 : index
      %c0_52 = arith.constant 0 : index
      %119 = vector.load %arg13[%c0_51, %c0_52] : memref<256x128xbf16, #tpu.memory_space<vmem>>, vector<256x128xbf16>
      %cst_53 = arith.constant dense<0.000000e+00> : vector<2x128xf32>
      %120 = tpu.matmul %118, %119, %cst_53 {dimension_numbers = #tpu.dot_dimension_numbers<[1], [0], [0], [1], [0, 0, 1, 1], [], []>} : vector<2x256xbf16>, vector<256x128xbf16>, vector<2x128xf32> -> vector<2x128xf32>
      %c0_54 = arith.constant 0 : index
      %c0_55 = arith.constant 0 : index
      %121 = vector.load %arg14[%c0_54, %c0_55] : memref<1x128xf32, #tpu.memory_space<vmem>>, vector<1x128xf32>
      %122 = vector.broadcast %121 : vector<1x128xf32> to vector<2x128xf32>
      %123 = arith.addf %120, %122 : vector<2x128xf32>
      %c0_56 = arith.constant 0 : index
      %c0_57 = arith.constant 0 : index
      %124 = vector.load %arg15[%c0_56, %c0_57] : memref<2x128xf32, #tpu.memory_space<vmem>>, vector<2x128xf32>
      tpu.vector_store %arg15[%c0_56, %c0_57], %123 {strides = array<i32>} : memref<2x128xf32, #tpu.memory_space<vmem>>, vector<2x128xf32>,
    } else {
    }
    return
  }
  func.func @transform_0(%arg0: i32) -> (i32, i32, i32) {
    %c0_i32 = arith.constant 0 : i32
    %c0_i32_0 = arith.constant 0 : i32
    %c0_i32_1 = arith.constant 0 : i32
    %c0_i32_2 = arith.constant 0 : i32
    return %c0_i32, %c0_i32_0, %c0_i32_1 : i32, i32, i32
  }
  func.func @transform_1(%arg0: i32) -> (i32, i32) {
    %c0_i32 = arith.constant 0 : i32
    %c0_i32_0 = arith.constant 0 : i32
    %c0_i32_1 = arith.constant 0 : i32
    return %c0_i32, %c0_i32_0 : i32, i32
  }
  func.func @transform_2(%arg0: i32) -> (i32, i32) {
    %c0_i32 = arith.constant 0 : i32
    %c0_i32_0 = arith.constant 0 : i32
    %c0_i32_1 = arith.constant 0 : i32
    return %c0_i32, %c0_i32_0 : i32, i32
  }
  func.func @transform_3(%arg0: i32) -> (i32, i32, i32) {
    %c0_i32 = arith.constant 0 : i32
    %c0_i32_0 = arith.constant 0 : i32
    %c0_i32_1 = arith.constant 0 : i32
    return %arg0, %c0_i32, %c0_i32_0 : i32, i32, i32
  }
  func.func @transform_4(%arg0: i32) -> (i32, i32, i32) {
    %c0_i32 = arith.constant 0 : i32
    %c0_i32_0 = arith.constant 0 : i32
    %c0_i32_1 = arith.constant 0 : i32
    return %arg0, %c0_i32, %c0_i32_0 : i32, i32, i32
  }
  func.func @transform_5(%arg0: i32) -> (i32, i32, i32) {
    %c0_i32 = arith.constant 0 : i32
    %c0_i32_0 = arith.constant 0 : i32
    %c0_i32_1 = arith.constant 0 : i32
    return %arg0, %c0_i32, %c0_i32_0 : i32, i32, i32
  }
  func.func @transform_6(%arg0: i32) -> (i32, i32, i32) {
    %c0_i32 = arith.constant 0 : i32
    %c0_i32_0 = arith.constant 0 : i32
    %c0_i32_1 = arith.constant 0 : i32
    return %arg0, %c0_i32, %c0_i32_0 : i32, i32, i32
  }
  func.func @transform_7(%arg0: i32) -> (i32, i32, i32) {
    %c0_i32 = arith.constant 0 : i32
    %c0_i32_0 = arith.constant 0 : i32
    %c0_i32_1 = arith.constant 0 : i32
    return %arg0, %c0_i32, %c0_i32_0 : i32, i32, i32
  }
  func.func @transform_8(%arg0: i32) -> (i32, i32, i32) {
    %c0_i32 = arith.constant 0 : i32
    %c0_i32_0 = arith.constant 0 : i32
    %c0_i32_1 = arith.constant 0 : i32
    return %arg0, %c0_i32, %c0_i32_0 : i32, i32, i32
  }
  func.func @transform_9(%arg0: i32) -> (i32, i32, i32) {
    %c0_i32 = arith.constant 0 : i32
    %c0_i32_0 = arith.constant 0 : i32
    %c0_i32_1 = arith.constant 0 : i32
    return %arg0, %c0_i32, %c0_i32_0 : i32, i32, i32
  }
  func.func @transform_10(%arg0: i32) -> (i32, i32, i32) {
    %c0_i32 = arith.constant 0 : i32
    %c0_i32_0 = arith.constant 0 : i32
    %c0_i32_1 = arith.constant 0 : i32
    return %arg0, %c0_i32, %c0_i32_0 : i32, i32, i32
  }
  func.func @transform_11(%arg0: i32) -> (i32, i32, i32) {
    %c0_i32 = arith.constant 0 : i32
    %c0_i32_0 = arith.constant 0 : i32
    %c0_i32_1 = arith.constant 0 : i32
    return %arg0, %c0_i32, %c0_i32_0 : i32, i32, i32
  }
  func.func @transform_12(%arg0: i32) -> (i32, i32) {
    %c0_i32 = arith.constant 0 : i32
    %c0_i32_0 = arith.constant 0 : i32
    %c0_i32_1 = arith.constant 0 : i32
    return %c0_i32, %c0_i32_0 : i32, i32
  }
  func.func @transform_13(%arg0: i32) -> (i32, i32) {
    %c0_i32 = arith.constant 0 : i32
    %c0_i32_0 = arith.constant 0 : i32
    %c0_i32_1 = arith.constant 0 : i32
    return %c0_i32, %c0_i32_0 : i32, i32
  }
  func.func @transform_14(%arg0: i32) -> (i32, i32) {
    %c0_i32 = arith.constant 0 : i32
    %c0_i32_0 = arith.constant 0 : i32
    %c0_i32_1 = arith.constant 0 : i32
    return %c0_i32, %c0_i32_0 : i32, i32
  }
}

</mosaic_0001>

<llo_original>
// kernel: tpu_custom_call.1
$region0: #{tpu_custom_call.1}
  #allocation0 [shape = 'u32[]', space=smem, size = 0x4, offset = 0x4, fixed_abs, tag = 'smem constant byte address 0x4 - core index']
  #allocation1 [shape = 'u32[144,128]{1,0:T(1,128)}', space=vmem, size = 0x12000, scoped, tag = 'internal scratch']
  #allocation2 [shape = 'f32[2,16,256]{2,1,0:T(8,128)}', space=vmem, size = 0x8000, scoped, tag = 'scratch operand']
  #allocation3 [shape = 'f32[2,32,256]{2,1,0:T(8,128)}', space=vmem, size = 0x10000, scoped, tag = 'scratch operand']
  %s0 = inlined_call_operand.hbm [shape: bf16[2,16,128], index: 0, kind: input, shape index: {}]
  %s1 = inlined_call_operand.hbm [shape: bf16[128,256], index: 1, kind: input, shape index: {}]
  %s2 = inlined_call_operand.hbm [shape: f32[1,256], index: 2, kind: input, shape index: {}]
  %s3 = inlined_call_operand.vmem [shape: f32[4,7,256], index: 3, kind: input, shape index: {}]
  %s4 = inlined_call_operand.hbm [shape: f32[4,1,256], index: 4, kind: input, shape index: {}]
  %s5 = inlined_call_operand.hbm [shape: f32[4,1,256], index: 5, kind: input, shape index: {}]
  %s6 = inlined_call_operand.hbm [shape: f32[4,1,256], index: 6, kind: input, shape index: {}]
  %s7 = inlined_call_operand.hbm [shape: bf16[4,256,768], index: 7, kind: input, shape index: {}]
  %s8 = inlined_call_operand.hbm [shape: f32[4,1,768], index: 8, kind: input, shape index: {}]
  %s9 = inlined_call_operand.hbm [shape: bf16[4,768,256], index: 9, kind: input, shape index: {}]
  %s10 = inlined_call_operand.hbm [shape: f32[4,1,256], index: 10, kind: input, shape index: {}]
  %s11 = inlined_call_operand.hbm [shape: f32[4,1,256], index: 11, kind: input, shape index: {}]
  %s12 = inlined_call_operand.hbm [shape: bf16[256,128], index: 12, kind: input, shape index: {}]
  %s13 = inlined_call_operand.hbm [shape: f32[1,128], index: 13, kind: input, shape index: {}]
  %s14 = inlined_call_operand.hbm [shape: f32[2,128], index: 14, kind: output, shape index: {}]
  %s15 = sld [smem:[#allocation0]]
  $region149: #{tpu_custom_call.1} parent=0
    _
  %s17 = ssub.s32 1, %s15
  %s18 = scalar_select 0, %s17, %s15
  $region1: #{tpu_custom_call.1} parent=0
    #allocation4 [shape = 'u8[8192]{0}', space=vmem, size = 0x2000, scoped, tag = 'input window, operand 0, single buffered']
    #allocation5 [shape = 's32[2]{0}', space=sflag, size = 0x8, scoped, tag = 'scoped memory for tpu_custom_call.1']
    #allocation6 [shape = 's32[2]{0}', space=sflag, size = 0x8, scoped, tag = 'scoped memory for tpu_custom_call.1']
    #allocation7 [shape = 'u8[65536]{0}', space=vmem, size = 0x10000, scoped, tag = 'input window, operand 1, single buffered']
    #allocation8 [shape = 's32[1]{0}', space=sflag, size = 0x4, scoped, tag = 'scoped memory for tpu_custom_call.1']
    #allocation9 [shape = 'u8[1024]{0}', space=vmem, size = 0x400, scoped, tag = 'input window, operand 2, single buffered']
    #allocation10 [shape = 'u8[2048]{0}', space=vmem, size = 0x800, scoped, tag = 'input window, operand 4']
    #allocation11 [shape = 's32[2]{0}', space=sflag, size = 0x8, scoped, tag = 'scoped memory for tpu_custom_call.1']
    #allocation12 [shape = 'u8[2048]{0}', space=vmem, size = 0x800, scoped, tag = 'input window, operand 5']
    #allocation13 [shape = 'u8[2048]{0}', space=vmem, size = 0x800, scoped, tag = 'input window, operand 6']
    #allocation14 [shape = 's32[2]{0}', space=sflag, size = 0x8, scoped, tag = 'scoped memory for tpu_custom_call.1']
    #allocation15 [shape = 'u8[786432]{0}', space=vmem, size = 0xc0000, scoped, tag = 'input window, operand 7']
    #allocation16 [shape = 'u8[6144]{0}', space=vmem, size = 0x1800, scoped, tag = 'input window, operand 8']
    #allocation17 [shape = 's32[2]{0}', space=sflag, size = 0x8, scoped, tag = 'scoped memory for tpu_custom_call.1']
    #allocation18 [shape = 'u8[786432]{0}', space=vmem, size = 0xc0000, scoped, tag = 'input window, operand 9']
    #allocation19 [shape = 'u8[2048]{0}', space=vmem, size = 0x800, scoped, tag = 'input window, operand 10']
    #allocation20 [shape = 's32[2]{0}', space=sflag, size = 0x8, scoped, tag = 'scoped memory for tpu_custom_call.1']
    #allocation21 [shape = 'u8[2048]{0}', space=vmem, size = 0x800, scoped, tag = 'input window, operand 11']
    #allocation22 [shape = 'u8[65536]{0}', space=vmem, size = 0x10000, scoped, tag = 'input window, operand 12, single buffered']
    #allocation23 [shape = 's32[1]{0}', space=sflag, size = 0x4, scoped, tag = 'scoped memory for tpu_custom_call.1']
    #allocation24 [shape = 'u8[512]{0}', space=vmem, size = 0x400, scoped, tag = 'input window, operand 13, single buffered']
    #allocation25 [shape = 'u8[1024]{0}', space=vmem, size = 0x400, scoped, tag = 'output window, operand 0, single buffered']
    %19 = vsyncpa [#allocation5], 0
    %20 = vsyncpa [#allocation8], 0
    %21 = vsyncpa [#allocation11], 0
    %s22 = scalar_lea.sflag [#allocation11], 1
    %23 = vsyncpa %s22, 0
    %24 = vsyncpa [#allocation14], 0
    %s25 = scalar_lea.sflag [#allocation14], 1
    %26 = vsyncpa %s25, 0
    %27 = vsyncpa [#allocation17], 0
    %s28 = scalar_lea.sflag [#allocation17], 1
    %29 = vsyncpa %s28, 0
    %30 = vsyncpa [#allocation20], 0
    %s31 = scalar_lea.sflag [#allocation20], 1
    %32 = vsyncpa %s31, 0
    %33 = vsyncpa [#allocation23], 0
    %34 = vsyncpa [#allocation6], 0
    loop: start=0, step=1, limit=6
    $region2: #{tpu_custom_call.1} parent=1 // loop_pre_header
      _
    $region3: #{tpu_custom_call.1} parent=1 // loop_header
      %s36 = sphi 0, %s40
      %p37 = scmp.ge.s32.totalorder %s36, 6
      %s44 = sphi 0, %s44
      %s46 = sphi 0, %s44
      %s47 = sphi 0, %s46
      %s61 = sphi 0, %s47
      %s65 = sphi 0, %s65
      %s67 = sphi 0, %s65
      %s68 = sphi 0, %s67
      %s82 = sphi 0, %s68
      %s86 = sphi 0, %s86
      %s88 = sphi 0, %s86
      %s89 = sphi 0, %s88
      %s103 = sphi 0, %s89
      %s109 = sphi 0, %s111
      %s112 = sphi 0, %s109
      %s113 = sphi 0, %s112
      %s129 = sphi 0, %s113
      %s135 = sphi 0, %s137
      %s138 = sphi 0, %s135
      %s139 = sphi 0, %s138
      %s155 = sphi 0, %s139
      %s161 = sphi 0, %s163
      %s164 = sphi 0, %s161
      %s165 = sphi 0, %s164
      %s181 = sphi 0, %s165
      %s187 = sphi 0, %s189
      %s190 = sphi 0, %s187
      %s191 = sphi 0, %s190
      %s207 = sphi 0, %s191
      %s213 = sphi 0, %s215
      %s216 = sphi 0, %s213
      %s217 = sphi 0, %s216
      %s233 = sphi 0, %s217
      %s239 = sphi 0, %s241
      %s242 = sphi 0, %s239
      %s243 = sphi 0, %s242
      %s259 = sphi 0, %s243
      %s265 = sphi 0, %s267
      %s268 = sphi 0, %s265
      %s269 = sphi 0, %s268
      %s285 = sphi 0, %s269
      %s291 = sphi 0, %s293
      %s294 = sphi 0, %s291
      %s295 = sphi 0, %s294
      %s311 = sphi 0, %s295
      %s317 = sphi 0, %s319
      %s320 = sphi 0, %s317
      %s321 = sphi 0, %s320
      %s337 = sphi 0, %s321
      %s341 = sphi 0, %s341
      %s343 = sphi 0, %s341
      %s344 = sphi 0, %s343
      %s358 = sphi 0, %s344
      %s362 = sphi 0, %s362
      %s364 = sphi 0, %s362
      %s365 = sphi 0, %s364
      %s379 = sphi 0, %s365
      %s383 = sphi 0, %s383
      %s385 = sphi 0, %s383
      %s386 = sphi 0, %s385
      %s400 = sphi 0, %s386
    $region4: #{tpu_custom_call.1} parent=1 // loop_header_branch
      %39 = sbr.rel (%p37) target = $region8
    $region5: #{tpu_custom_call.1} parent=1 // loop_body
      %s41 = ssub.s32 %s36, 1
      %s42 = ssub.s32 %s36, 2
      %s43 = sadd.s32 %s36, 1
      %s45 = sadd.s32 %s44, 1
      %p48 = scmp.eq.s32.totalorder %s36, 3
      %p49 = scmp.ne.s32.totalorder %s44, %s46
      %p50 = scmp.eq.s32.totalorder %s36, 0
      %p51 = por %p49, %p50
      %p52 = scmp.ne.s32.totalorder %s44, %s46
      %p53 = scmp.eq.s32.totalorder %s41, 3
      %p54 = por %p52, %p53
      %p55 = scmp.ne.s32.totalorder %s46, %s47
      %p56 = scmp.eq.s32.totalorder %s41, 0
      %p57 = por %p55, %p56
      %p58 = scmp.ne.s32.totalorder %s46, %s47
      %p59 = scmp.eq.s32.totalorder %s42, 3
      %p60 = por %p58, %p59
      %p62 = scmp.ne.s32.totalorder %s47, %s61
      %p63 = scmp.eq.s32.totalorder %s42, 0
      %p64 = por %p62, %p63
      %s66 = sadd.s32 %s65, 1
      %p69 = scmp.eq.s32.totalorder %s36, 3
      %p70 = scmp.ne.s32.totalorder %s65, %s67
      %p71 = scmp.eq.s32.totalorder %s36, 0
      %p72 = por %p70, %p71
      %p73 = scmp.ne.s32.totalorder %s65, %s67
      %p74 = scmp.eq.s32.totalorder %s41, 3
      %p75 = por %p73, %p74
      %p76 = scmp.ne.s32.totalorder %s67, %s68
      %p77 = scmp.eq.s32.totalorder %s41, 0
      %p78 = por %p76, %p77
      %p79 = scmp.ne.s32.totalorder %s67, %s68
      %p80 = scmp.eq.s32.totalorder %s42, 3
      %p81 = por %p79, %p80
      %p83 = scmp.ne.s32.totalorder %s68, %s82
      %p84 = scmp.eq.s32.totalorder %s42, 0
      %p85 = por %p83, %p84
      %s87 = sadd.s32 %s86, 1
      %p90 = scmp.eq.s32.totalorder %s36, 3
      %p91 = scmp.ne.s32.totalorder %s86, %s88
      %p92 = scmp.eq.s32.totalorder %s36, 0
      %p93 = por %p91, %p92
      %p94 = scmp.ne.s32.totalorder %s86, %s88
      %p95 = scmp.eq.s32.totalorder %s41, 3
      %p96 = por %p94, %p95
      %p97 = scmp.ne.s32.totalorder %s88, %s89
      %p98 = scmp.eq.s32.totalorder %s41, 0
      %p99 = por %p97, %p98
      %p100 = scmp.ne.s32.totalorder %s88, %s89
      %p101 = scmp.eq.s32.totalorder %s42, 3
      %p102 = por %p100, %p101
      %p104 = scmp.ne.s32.totalorder %s89, %s103
      %p105 = scmp.eq.s32.totalorder %s42, 0
      %p106 = por %p104, %p105
      %s107 = ssub.s32 %s36, %s43
      %p108 = scmp.eq.s32.totalorder %s107, 0
      %s110 = sadd.s32 %s109, 1
      %s111 = scalar_select %p108, %s109, %s110
      %p114 = pneg %p108
      %p115 = scmp.eq.s32.totalorder %s36, 3
      %p116 = por %p114, %p115
      %p117 = scmp.ne.s32.totalorder %s109, %s112
      %p118 = scmp.eq.s32.totalorder %s36, 0
      %p119 = por %p117, %p118
      %p120 = scmp.ne.s32.totalorder %s109, %s112
      %p121 = scmp.eq.s32.totalorder %s41, 3
      %p122 = por %p120, %p121
      %p123 = scmp.ne.s32.totalorder %s112, %s113
      %p124 = scmp.eq.s32.totalorder %s41, 0
      %p125 = por %p123, %p124
      %p126 = scmp.ne.s32.totalorder %s112, %s113
      %p127 = scmp.eq.s32.totalorder %s42, 3
      %p128 = por %p126, %p127
      %p130 = scmp.ne.s32.totalorder %s113, %s129
      %p131 = scmp.eq.s32.totalorder %s42, 0
      %p132 = por %p130, %p131
      %s133 = ssub.s32 %s36, %s43
      %p134 = scmp.eq.s32.totalorder %s133, 0
      %s136 = sadd.s32 %s135, 1
      %s137 = scalar_select %p134, %s135, %s136
      %p140 = pneg %p134
      %p141 = scmp.eq.s32.totalorder %s36, 3
      %p142 = por %p140, %p141
      %p143 = scmp.ne.s32.totalorder %s135, %s138
      %p144 = scmp.eq.s32.totalorder %s36, 0
      %p145 = por %p143, %p144
      %p146 = scmp.ne.s32.totalorder %s135, %s138
      %p147 = scmp.eq.s32.totalorder %s41, 3
      %p148 = por %p146, %p147
      %p149 = scmp.ne.s32.totalorder %s138, %s139
      %p150 = scmp.eq.s32.totalorder %s41, 0
      %p151 = por %p149, %p150
      %p152 = scmp.ne.s32.totalorder %s138, %s139
      %p153 = scmp.eq.s32.totalorder %s42, 3
      %p154 = por %p152, %p153
      %p156 = scmp.ne.s32.totalorder %s139, %s155
      %p157 = scmp.eq.s32.totalorder %s42, 0
      %p158 = por %p156, %p157
      %s159 = ssub.s32 %s36, %s43
      %p160 = scmp.eq.s32.totalorder %s159, 0
      %s162 = sadd.s32 %s161, 1
      %s163 = scalar_select %p160, %s161, %s162
      %p166 = pneg %p160
      %p167 = scmp.eq.s32.totalorder %s36, 3
      %p168 = por %p166, %p167
      %p169 = scmp.ne.s32.totalorder %s161, %s164
      %p170 = scmp.eq.s32.totalorder %s36, 0
      %p171 = por %p169, %p170
      %p172 = scmp.ne.s32.totalorder %s161, %s164
      %p173 = scmp.eq.s32.totalorder %s41, 3
      %p174 = por %p172, %p173
      %p175 = scmp.ne.s32.totalorder %s164, %s165
      %p176 = scmp.eq.s32.totalorder %s41, 0
      %p177 = por %p175, %p176
      %p178 = scmp.ne.s32.totalorder %s164, %s165
      %p179 = scmp.eq.s32.totalorder %s42, 3
      %p180 = por %p178, %p179
      %p182 = scmp.ne.s32.totalorder %s165, %s181
      %p183 = scmp.eq.s32.totalorder %s42, 0
      %p184 = por %p182, %p183
      %s185 = ssub.s32 %s36, %s43
      %p186 = scmp.eq.s32.totalorder %s185, 0
      %s188 = sadd.s32 %s187, 1
      %s189 = scalar_select %p186, %s187, %s188
      %p192 = pneg %p186
      %p193 = scmp.eq.s32.totalorder %s36, 3
      %p194 = por %p192, %p193
      %p195 = scmp.ne.s32.totalorder %s187, %s190
      %p196 = scmp.eq.s32.totalorder %s36, 0
      %p197 = por %p195, %p196
      %p198 = scmp.ne.s32.totalorder %s187, %s190
      %p199 = scmp.eq.s32.totalorder %s41, 3
      %p200 = por %p198, %p199
      %p201 = scmp.ne.s32.totalorder %s190, %s191
      %p202 = scmp.eq.s32.totalorder %s41, 0
      %p203 = por %p201, %p202
      %p204 = scmp.ne.s32.totalorder %s190, %s191
      %p205 = scmp.eq.s32.totalorder %s42, 3
      %p206 = por %p204, %p205
      %p208 = scmp.ne.s32.totalorder %s191, %s207
      %p209 = scmp.eq.s32.totalorder %s42, 0
      %p210 = por %p208, %p209
      %s211 = ssub.s32 %s36, %s43
      %p212 = scmp.eq.s32.totalorder %s211, 0
      %s214 = sadd.s32 %s213, 1
      %s215 = scalar_select %p212, %s213, %s214
      %p218 = pneg %p212
      %p219 = scmp.eq.s32.totalorder %s36, 3
      %p220 = por %p218, %p219
      %p221 = scmp.ne.s32.totalorder %s213, %s216
      %p222 = scmp.eq.s32.totalorder %s36, 0
      %p223 = por %p221, %p222
      %p224 = scmp.ne.s32.totalorder %s213, %s216
      %p225 = scmp.eq.s32.totalorder %s41, 3
      %p226 = por %p224, %p225
      %p227 = scmp.ne.s32.totalorder %s216, %s217
      %p228 = scmp.eq.s32.totalorder %s41, 0
      %p229 = por %p227, %p228
      %p230 = scmp.ne.s32.totalorder %s216, %s217
      %p231 = scmp.eq.s32.totalorder %s42, 3
      %p232 = por %p230, %p231
      %p234 = scmp.ne.s32.totalorder %s217, %s233
      %p235 = scmp.eq.s32.totalorder %s42, 0
      %p236 = por %p234, %p235
      %s237 = ssub.s32 %s36, %s43
      %p238 = scmp.eq.s32.totalorder %s237, 0
      %s240 = sadd.s32 %s239, 1
      %s241 = scalar_select %p238, %s239, %s240
      %p244 = pneg %p238
      %p245 = scmp.eq.s32.totalorder %s36, 3
      %p246 = por %p244, %p245
      %p247 = scmp.ne.s32.totalorder %s239, %s242
      %p248 = scmp.eq.s32.totalorder %s36, 0
      %p249 = por %p247, %p248
      %p250 = scmp.ne.s32.totalorder %s239, %s242
      %p251 = scmp.eq.s32.totalorder %s41, 3
      %p252 = por %p250, %p251
      %p253 = scmp.ne.s32.totalorder %s242, %s243
      %p254 = scmp.eq.s32.totalorder %s41, 0
      %p255 = por %p253, %p254
      %p256 = scmp.ne.s32.totalorder %s242, %s243
      %p257 = scmp.eq.s32.totalorder %s42, 3
      %p258 = por %p256, %p257
      %p260 = scmp.ne.s32.totalorder %s243, %s259
      %p261 = scmp.eq.s32.totalorder %s42, 0
      %p262 = por %p260, %p261
      %s263 = ssub.s32 %s36, %s43
      %p264 = scmp.eq.s32.totalorder %s263, 0
      %s266 = sadd.s32 %s265, 1
      %s267 = scalar_select %p264, %s265, %s266
      %p270 = pneg %p264
      %p271 = scmp.eq.s32.totalorder %s36, 3
      %p272 = por %p270, %p271
      %p273 = scmp.ne.s32.totalorder %s265, %s268
      %p274 = scmp.eq.s32.totalorder %s36, 0
      %p275 = por %p273, %p274
      %p276 = scmp.ne.s32.totalorder %s265, %s268
      %p277 = scmp.eq.s32.totalorder %s41, 3
      %p278 = por %p276, %p277
      %p279 = scmp.ne.s32.totalorder %s268, %s269
      %p280 = scmp.eq.s32.totalorder %s41, 0
      %p281 = por %p279, %p280
      %p282 = scmp.ne.s32.totalorder %s268, %s269
      %p283 = scmp.eq.s32.totalorder %s42, 3
      %p284 = por %p282, %p283
      %p286 = scmp.ne.s32.totalorder %s269, %s285
      %p287 = scmp.eq.s32.totalorder %s42, 0
      %p288 = por %p286, %p287
      %s289 = ssub.s32 %s36, %s43
      %p290 = scmp.eq.s32.totalorder %s289, 0
      %s292 = sadd.s32 %s291, 1
      %s293 = scalar_select %p290, %s291, %s292
      %p296 = pneg %p290
      %p297 = scmp.eq.s32.totalorder %s36, 3
      %p298 = por %p296, %p297
      %p299 = scmp.ne.s32.totalorder %s291, %s294
      %p300 = scmp.eq.s32.totalorder %s36, 0
      %p301 = por %p299, %p300
      %p302 = scmp.ne.s32.totalorder %s291, %s294
      %p303 = scmp.eq.s32.totalorder %s41, 3
      %p304 = por %p302, %p303
      %p305 = scmp.ne.s32.totalorder %s294, %s295
      %p306 = scmp.eq.s32.totalorder %s41, 0
      %p307 = por %p305, %p306
      %p308 = scmp.ne.s32.totalorder %s294, %s295
      %p309 = scmp.eq.s32.totalorder %s42, 3
      %p310 = por %p308, %p309
      %p312 = scmp.ne.s32.totalorder %s295, %s311
      %p313 = scmp.eq.s32.totalorder %s42, 0
      %p314 = por %p312, %p313
      %s315 = ssub.s32 %s36, %s43
      %p316 = scmp.eq.s32.totalorder %s315, 0
      %s318 = sadd.s32 %s317, 1
      %s319 = scalar_select %p316, %s317, %s318
      %p322 = pneg %p316
      %p323 = scmp.eq.s32.totalorder %s36, 3
      %p324 = por %p322, %p323
      %p325 = scmp.ne.s32.totalorder %s317, %s320
      %p326 = scmp.eq.s32.totalorder %s36, 0
      %p327 = por %p325, %p326
      %p328 = scmp.ne.s32.totalorder %s317, %s320
      %p329 = scmp.eq.s32.totalorder %s41, 3
      %p330 = por %p328, %p329
      %p331 = scmp.ne.s32.totalorder %s320, %s321
      %p332 = scmp.eq.s32.totalorder %s41, 0
      %p333 = por %p331, %p332
      %p334 = scmp.ne.s32.totalorder %s320, %s321
      %p335 = scmp.eq.s32.totalorder %s42, 3
      %p336 = por %p334, %p335
      %p338 = scmp.ne.s32.totalorder %s321, %s337
      %p339 = scmp.eq.s32.totalorder %s42, 0
      %p340 = por %p338, %p339
      %s342 = sadd.s32 %s341, 1
      %p345 = scmp.eq.s32.totalorder %s36, 3
      %p346 = scmp.ne.s32.totalorder %s341, %s343
      %p347 = scmp.eq.s32.totalorder %s36, 0
      %p348 = por %p346, %p347
      %p349 = scmp.ne.s32.totalorder %s341, %s343
      %p350 = scmp.eq.s32.totalorder %s41, 3
      %p351 = por %p349, %p350
      %p352 = scmp.ne.s32.totalorder %s343, %s344
      %p353 = scmp.eq.s32.totalorder %s41, 0
      %p354 = por %p352, %p353
      %p355 = scmp.ne.s32.totalorder %s343, %s344
      %p356 = scmp.eq.s32.totalorder %s42, 3
      %p357 = por %p355, %p356
      %p359 = scmp.ne.s32.totalorder %s344, %s358
      %p360 = scmp.eq.s32.totalorder %s42, 0
      %p361 = por %p359, %p360
      %s363 = sadd.s32 %s362, 1
      %p366 = scmp.eq.s32.totalorder %s36, 3
      %p367 = scmp.ne.s32.totalorder %s362, %s364
      %p368 = scmp.eq.s32.totalorder %s36, 0
      %p369 = por %p367, %p368
      %p370 = scmp.ne.s32.totalorder %s362, %s364
      %p371 = scmp.eq.s32.totalorder %s41, 3
      %p372 = por %p370, %p371
      %p373 = scmp.ne.s32.totalorder %s364, %s365
      %p374 = scmp.eq.s32.totalorder %s41, 0
      %p375 = por %p373, %p374
      %p376 = scmp.ne.s32.totalorder %s364, %s365
      %p377 = scmp.eq.s32.totalorder %s42, 3
      %p378 = por %p376, %p377
      %p380 = scmp.ne.s32.totalorder %s365, %s379
      %p381 = scmp.eq.s32.totalorder %s42, 0
      %p382 = por %p380, %p381
      %s384 = sadd.s32 %s383, 1
      %p387 = scmp.eq.s32.totalorder %s36, 3
      %p388 = scmp.ne.s32.totalorder %s383, %s385
      %p389 = scmp.eq.s32.totalorder %s36, 0
      %p390 = por %p388, %p389
      %p391 = scmp.ne.s32.totalorder %s383, %s385
      %p392 = scmp.eq.s32.totalorder %s41, 3
      %p393 = por %p391, %p392
      %p394 = scmp.ne.s32.totalorder %s385, %s386
      %p395 = scmp.eq.s32.totalorder %s41, 0
      %p396 = por %p394, %p395
      %p397 = scmp.ne.s32.totalorder %s385, %s386
      %p398 = scmp.eq.s32.totalorder %s42, 3
      %p399 = por %p397, %p398
      %p401 = scmp.ne.s32.totalorder %s386, %s400
      %p402 = scmp.eq.s32.totalorder %s42, 0
      %p403 = por %p401, %p402
      %p404 = scmp.le.s32.totalorder 1, %s36
      %p405 = scmp.lt.s32.totalorder %s36, 5
      %p406 = pnand %p404, %p405
      %p407 = pneg %p406
      // Predicated region
      $region9: #{tpu_custom_call.1} parent=5 // pred_check
        _
      $region10: #{tpu_custom_call.1} parent=5 // pred_check_branch
        %409 = sbr.rel (%p406) target = $region12
      $region11: #{tpu_custom_call.1} parent=5 // pred_region
        %s410 = ssub.s32 %s36, 1
        // Predicated region
        $region13: #{tpu_custom_call.1} parent=11 // pred_check
          %p411 = pneg %p57
        $region14: #{tpu_custom_call.1} parent=11 // pred_check_branch
          %413 = sbr.rel (%p411) target = $region16
        $region15: #{tpu_custom_call.1} parent=11 // pred_region
          %s415 = ssub.s32 256, 256
          %416 = vsyncadd [#allocation5], %s415
          %s417 = sshll.u32 [#allocation4], 4
          %s418 = int_to_ptr.vmem [resolvable:$true] %s417
          %423 = dma.hbm_to_vmem [thread:$0]  %s0, 256, %s418, [#allocation5], 64, 64, 4
        $region16: #{tpu_custom_call.1} parent=11 // pred_fallthru
          _
        // Predicated region
        $region17: #{tpu_custom_call.1} parent=11 // pred_check
          %p424 = pneg %p78
        $region18: #{tpu_custom_call.1} parent=11 // pred_check_branch
          %426 = sbr.rel (%p424) target = $region20
        $region19: #{tpu_custom_call.1} parent=11 // pred_region
          %s428 = ssub.s32 2048, 2048
          %429 = vsyncadd [#allocation8], %s428
          %s430 = sshll.u32 [#allocation7], 4
          %s431 = int_to_ptr.vmem [resolvable:$true] %s430
          %436 = dma.hbm_to_vmem [thread:$0]  %s1, 2048, %s431, [#allocation8], 128, 128, 8
        $region20: #{tpu_custom_call.1} parent=11 // pred_fallthru
          _
        // Predicated region
        $region21: #{tpu_custom_call.1} parent=11 // pred_check
          %p437 = pneg %p99
        $region22: #{tpu_custom_call.1} parent=11 // pred_check_branch
          %439 = sbr.rel (%p437) target = $region24
        $region23: #{tpu_custom_call.1} parent=11 // pred_region
          %s441 = ssub.s32 32, 32
          %442 = vsyncadd [#allocation8], %s441
          %s444 = sshll.u32 [#allocation9], 4
          %s445 = int_to_ptr.vmem [resolvable:$true] %s444
          %447 = dma.hbm_to_vmem [thread:$0]  %s2, 32, %s445, [#allocation8]
        $region24: #{tpu_custom_call.1} parent=11 // pred_fallthru
          _
        // Predicated region
        $region25: #{tpu_custom_call.1} parent=11 // pred_check
          %p448 = pneg %p354
        $region26: #{tpu_custom_call.1} parent=11 // pred_check_branch
          %450 = sbr.rel (%p448) target = $region28
        $region27: #{tpu_custom_call.1} parent=11 // pred_region
          %s452 = ssub.s32 2048, 2048
          %453 = vsyncadd [#allocation23], %s452
          %s454 = sshll.u32 [#allocation22], 4
          %s455 = int_to_ptr.vmem [resolvable:$true] %s454
          %460 = dma.hbm_to_vmem [thread:$0]  %s12, 2048, %s455, [#allocation23], 64, 64, 4
        $region28: #{tpu_custom_call.1} parent=11 // pred_fallthru
          _
        // Predicated region
        $region29: #{tpu_custom_call.1} parent=11 // pred_check
          %p461 = pneg %p375
        $region30: #{tpu_custom_call.1} parent=11 // pred_check_branch
          %463 = sbr.rel (%p461) target = $region32
        $region31: #{tpu_custom_call.1} parent=11 // pred_region
          %s465 = ssub.s32 16, 16
          %466 = vsyncadd [#allocation23], %s465
          %s468 = sshll.u32 [#allocation24], 4
          %s469 = int_to_ptr.vmem [resolvable:$true] %s468
          %471 = dma.hbm_to_vmem [thread:$0]  %s13, 16, %s469, [#allocation23]
        $region32: #{tpu_custom_call.1} parent=11 // pred_fallthru
          _
      $region12: #{tpu_custom_call.1} parent=5 // pred_fallthru
        _
      %p472 = scmp.lt.s32.totalorder %s36, 4
      // Predicated region
      $region33: #{tpu_custom_call.1} parent=5 // pred_check
        %p473 = pneg %p472
      $region34: #{tpu_custom_call.1} parent=5 // pred_check_branch
        %475 = sbr.rel (%p473) target = $region36
      $region35: #{tpu_custom_call.1} parent=5 // pred_region
        // Predicated region
        $region37: #{tpu_custom_call.1} parent=35 // pred_check
          %p476 = pneg %p119
        $region38: #{tpu_custom_call.1} parent=35 // pred_check_branch
          %478 = sbr.rel (%p476) target = $region40
        $region39: #{tpu_custom_call.1} parent=35 // pred_region
          %p479 = scmp.lt.s32.totalorder %s36, 3
          %s480 = scalar_select %p479, %s36, 3
          %s481 = smul.addr %s480, 2
          %s482 = smul.addr %s481, 8
          %s483 = scalar_lea.vmem %s3, %s482
        $region40: #{tpu_custom_call.1} parent=35 // pred_fallthru
          _
        // Predicated region
        $region41: #{tpu_custom_call.1} parent=35 // pred_check
          %p484 = pneg %p145
        $region42: #{tpu_custom_call.1} parent=35 // pred_check_branch
          %486 = sbr.rel (%p484) target = $region44
        $region43: #{tpu_custom_call.1} parent=35 // pred_region
          %s487 = sand.u32 %s36, 1
          %s488 = scalar_lea.sflag [#allocation11], %s487
          %s489 = sand.u32 %s135, 1
          %s490 = smul.addr %s489, 2
          %s491 = scalar_lea.vmem [#allocation10], %s490
          %s493 = ssub.s32 32, 32
          %494 = vsyncadd %s488, %s493
          %s495 = smul.addr %s36, 2
          %s496 = smul.addr %s495, 16
          %s497 = scalar_lea.hbm %s4, %s496
          %s499 = sshll.u32 %s491, 4
          %s500 = int_to_ptr.vmem [resolvable:$true] %s499
          %502 = dma.hbm_to_vmem [thread:$0]  %s497, 32, %s500, %s488
        $region44: #{tpu_custom_call.1} parent=35 // pred_fallthru
          _
        // Predicated region
        $region45: #{tpu_custom_call.1} parent=35 // pred_check
          %p503 = pneg %p171
        $region46: #{tpu_custom_call.1} parent=35 // pred_check_branch
          %505 = sbr.rel (%p503) target = $region48
        $region47: #{tpu_custom_call.1} parent=35 // pred_region
          %s506 = sand.u32 %s36, 1
          %s507 = scalar_lea.sflag [#allocation11], %s506
          %s508 = sand.u32 %s161, 1
          %s509 = smul.addr %s508, 2
          %s510 = scalar_lea.vmem [#allocation12], %s509
          %s512 = ssub.s32 32, 32
          %513 = vsyncadd %s507, %s512
          %s514 = smul.addr %s36, 2
          %s515 = smul.addr %s514, 16
          %s516 = scalar_lea.hbm %s5, %s515
          %s518 = sshll.u32 %s510, 4
          %s519 = int_to_ptr.vmem [resolvable:$true] %s518
          %521 = dma.hbm_to_vmem [thread:$0]  %s516, 32, %s519, %s507
        $region48: #{tpu_custom_call.1} parent=35 // pred_fallthru
          _
        // Predicated region
        $region49: #{tpu_custom_call.1} parent=35 // pred_check
          %p522 = pneg %p197
        $region50: #{tpu_custom_call.1} parent=35 // pred_check_branch
          %524 = sbr.rel (%p522) target = $region52
        $region51: #{tpu_custom_call.1} parent=35 // pred_region
          %s525 = sand.u32 %s36, 1
          %s526 = scalar_lea.sflag [#allocation14], %s525
          %s527 = sand.u32 %s187, 1
          %s528 = smul.addr %s527, 2
          %s529 = scalar_lea.vmem [#allocation13], %s528
          %s531 = ssub.s32 32, 32
          %532 = vsyncadd %s526, %s531
          %s533 = smul.addr %s36, 2
          %s534 = smul.addr %s533, 16
          %s535 = scalar_lea.hbm %s6, %s534
          %s537 = sshll.u32 %s529, 4
          %s538 = int_to_ptr.vmem [resolvable:$true] %s537
          %540 = dma.hbm_to_vmem [thread:$0]  %s535, 32, %s538, %s526
        $region52: #{tpu_custom_call.1} parent=35 // pred_fallthru
          _
        // Predicated region
        $region53: #{tpu_custom_call.1} parent=35 // pred_check
          %p541 = pneg %p223
        $region54: #{tpu_custom_call.1} parent=35 // pred_check_branch
          %543 = sbr.rel (%p541) target = $region56
        $region55: #{tpu_custom_call.1} parent=35 // pred_region
          %s544 = sand.u32 %s36, 1
          %s545 = scalar_lea.sflag [#allocation14], %s544
          %s546 = sand.u32 %s213, 1
          %s547 = smul.addr %s546, 768
          %s548 = scalar_lea.vmem [#allocation15], %s547
          %s550 = ssub.s32 12288, 12288
          %551 = vsyncadd %s545, %s550
          %s552 = smul.addr %s36, 192
          %s553 = smul.addr %s552, 64
          %s554 = scalar_lea.hbm %s7, %s553
          %s555 = sshll.u32 %s548, 4
          %s556 = int_to_ptr.vmem [resolvable:$true] %s555
          %561 = dma.hbm_to_vmem [thread:$0]  %s554, 12288, %s556, %s545, 384, 384, 24
        $region56: #{tpu_custom_call.1} parent=35 // pred_fallthru
          _
        // Predicated region
        $region57: #{tpu_custom_call.1} parent=35 // pred_check
          %p562 = pneg %p249
        $region58: #{tpu_custom_call.1} parent=35 // pred_check_branch
          %564 = sbr.rel (%p562) target = $region60
        $region59: #{tpu_custom_call.1} parent=35 // pred_region
          %s565 = sand.u32 %s36, 1
          %s566 = scalar_lea.sflag [#allocation17], %s565
          %s567 = sand.u32 %s239, 1
          %s568 = smul.addr %s567, 6
          %s569 = scalar_lea.vmem [#allocation16], %s568
          %s571 = ssub.s32 96, 96
          %572 = vsyncadd %s566, %s571
          %s573 = smul.addr %s36, 6
          %s574 = smul.addr %s573, 16
          %s575 = scalar_lea.hbm %s8, %s574
          %s577 = sshll.u32 %s569, 4
          %s578 = int_to_ptr.vmem [resolvable:$true] %s577
          %580 = dma.hbm_to_vmem [thread:$0]  %s575, 96, %s578, %s566
        $region60: #{tpu_custom_call.1} parent=35 // pred_fallthru
          _
        // Predicated region
        $region61: #{tpu_custom_call.1} parent=35 // pred_check
          %p581 = pneg %p275
        $region62: #{tpu_custom_call.1} parent=35 // pred_check_branch
          %583 = sbr.rel (%p581) target = $region64
        $region63: #{tpu_custom_call.1} parent=35 // pred_region
          %s584 = sand.u32 %s36, 1
          %s585 = scalar_lea.sflag [#allocation17], %s584
          %s586 = sand.u32 %s265, 1
          %s587 = smul.addr %s586, 768
          %s588 = scalar_lea.vmem [#allocation18], %s587
          %s590 = ssub.s32 12288, 12288
          %591 = vsyncadd %s585, %s590
          %s592 = smul.addr %s36, 192
          %s593 = smul.addr %s592, 64
          %s594 = scalar_lea.hbm %s9, %s593
          %s595 = sshll.u32 %s588, 4
          %s596 = int_to_ptr.vmem [resolvable:$true] %s595
          %601 = dma.hbm_to_vmem [thread:$0]  %s594, 12288, %s596, %s585, 128, 128, 8
        $region64: #{tpu_custom_call.1} parent=35 // pred_fallthru
          _
        // Predicated region
        $region65: #{tpu_custom_call.1} parent=35 // pred_check
          %p602 = pneg %p301
        $region66: #{tpu_custom_call.1} parent=35 // pred_check_branch
          %604 = sbr.rel (%p602) target = $region68
        $region67: #{tpu_custom_call.1} parent=35 // pred_region
          %s605 = sand.u32 %s36, 1
          %s606 = scalar_lea.sflag [#allocation20], %s605
          %s607 = sand.u32 %s291, 1
          %s608 = smul.addr %s607, 2
          %s609 = scalar_lea.vmem [#allocation19], %s608
          %s611 = ssub.s32 32, 32
          %612 = vsyncadd %s606, %s611
          %s613 = smul.addr %s36, 2
          %s614 = smul.addr %s613, 16
          %s615 = scalar_lea.hbm %s10, %s614
          %s617 = sshll.u32 %s609, 4
          %s618 = int_to_ptr.vmem [resolvable:$true] %s617
          %620 = dma.hbm_to_vmem [thread:$0]  %s615, 32, %s618, %s606
        $region68: #{tpu_custom_call.1} parent=35 // pred_fallthru
          _
        // Predicated region
        $region69: #{tpu_custom_call.1} parent=35 // pred_check
          %p621 = pneg %p327
        $region70: #{tpu_custom_call.1} parent=35 // pred_check_branch
          %623 = sbr.rel (%p621) target = $region72
        $region71: #{tpu_custom_call.1} parent=35 // pred_region
          %s624 = sand.u32 %s36, 1
          %s625 = scalar_lea.sflag [#allocation20], %s624
          %s626 = sand.u32 %s317, 1
          %s627 = smul.addr %s626, 2
          %s628 = scalar_lea.vmem [#allocation21], %s627
          %s630 = ssub.s32 32, 32
          %631 = vsyncadd %s625, %s630
          %s632 = smul.addr %s36, 2
          %s633 = smul.addr %s632, 16
          %s634 = scalar_lea.hbm %s11, %s633
          %s636 = sshll.u32 %s628, 4
          %s637 = int_to_ptr.vmem [resolvable:$true] %s636
          %639 = dma.hbm_to_vmem [thread:$0]  %s634, 32, %s637, %s625
        $region72: #{tpu_custom_call.1} parent=35 // pred_fallthru
          _
      $region36: #{tpu_custom_call.1} parent=5 // pred_fallthru
        _
      %p640 = scmp.le.s32.totalorder 1, %s36
      %p641 = scmp.lt.s32.totalorder %s36, 5
      %p642 = pnand %p640, %p641
      %p643 = pneg %p642
      // Predicated region
      $region73: #{tpu_custom_call.1} parent=5 // pred_check
        _
      $region74: #{tpu_custom_call.1} parent=5 // pred_check_branch
        %645 = sbr.rel (%p642) target = $region76
      $region75: #{tpu_custom_call.1} parent=5 // pred_region
        %s646 = ssub.s32 %s36, 1
        // Predicated region
        $region77: #{tpu_custom_call.1} parent=75 // pred_check
          %p647 = pneg %p57
        $region78: #{tpu_custom_call.1} parent=75 // pred_check_branch
          %649 = sbr.rel (%p647) target = $region80
        $region79: #{tpu_custom_call.1} parent=75 // pred_region
          %650 = dma.done [#allocation5], 256
        $region80: #{tpu_custom_call.1} parent=75 // pred_fallthru
          _
        // Predicated region
        $region81: #{tpu_custom_call.1} parent=75 // pred_check
          %p651 = pneg %p78
        $region82: #{tpu_custom_call.1} parent=75 // pred_check_branch
          %653 = sbr.rel (%p651) target = $region84
        $region83: #{tpu_custom_call.1} parent=75 // pred_region
          %654 = dma.done [#allocation8], 2048
        $region84: #{tpu_custom_call.1} parent=75 // pred_fallthru
          _
        // Predicated region
        $region85: #{tpu_custom_call.1} parent=75 // pred_check
          %p655 = pneg %p99
        $region86: #{tpu_custom_call.1} parent=75 // pred_check_branch
          %657 = sbr.rel (%p655) target = $region88
        $region87: #{tpu_custom_call.1} parent=75 // pred_region
          %658 = dma.done [#allocation8], 32
        $region88: #{tpu_custom_call.1} parent=75 // pred_fallthru
          _
        %s659 = sand.u32 %s41, 1
        %s660 = scalar_lea.sflag [#allocation11], %s659
        %s661 = sand.u32 %s138, 1
        %s662 = smul.addr %s661, 2
        %s663 = scalar_lea.vmem [#allocation10], %s662
        // Predicated region
        $region89: #{tpu_custom_call.1} parent=75 // pred_check
          %p664 = pneg %p151
        $region90: #{tpu_custom_call.1} parent=75 // pred_check_branch
          %666 = sbr.rel (%p664) target = $region92
        $region91: #{tpu_custom_call.1} parent=75 // pred_region
          %667 = dma.done %s660, 32
        $region92: #{tpu_custom_call.1} parent=75 // pred_fallthru
          _
        %s668 = sand.u32 %s41, 1
        %s669 = scalar_lea.sflag [#allocation11], %s668
        %s670 = sand.u32 %s164, 1
        %s671 = smul.addr %s670, 2
        %s672 = scalar_lea.vmem [#allocation12], %s671
        // Predicated region
        $region93: #{tpu_custom_call.1} parent=75 // pred_check
          %p673 = pneg %p177
        $region94: #{tpu_custom_call.1} parent=75 // pred_check_branch
          %675 = sbr.rel (%p673) target = $region96
        $region95: #{tpu_custom_call.1} parent=75 // pred_region
          %676 = dma.done %s669, 32
        $region96: #{tpu_custom_call.1} parent=75 // pred_fallthru
          _
        %s677 = sand.u32 %s41, 1
        %s678 = scalar_lea.sflag [#allocation14], %s677
        %s679 = sand.u32 %s190, 1
        %s680 = smul.addr %s679, 2
        %s681 = scalar_lea.vmem [#allocation13], %s680
        // Predicated region
        $region97: #{tpu_custom_call.1} parent=75 // pred_check
          %p682 = pneg %p203
        $region98: #{tpu_custom_call.1} parent=75 // pred_check_branch
          %684 = sbr.rel (%p682) target = $region100
        $region99: #{tpu_custom_call.1} parent=75 // pred_region
          %685 = dma.done %s678, 32
        $region100: #{tpu_custom_call.1} parent=75 // pred_fallthru
          _
        %s686 = sand.u32 %s41, 1
        %s687 = scalar_lea.sflag [#allocation14], %s686
        %s688 = sand.u32 %s216, 1
        %s689 = smul.addr %s688, 768
        %s690 = scalar_lea.vmem [#allocation15], %s689
        // Predicated region
        $region101: #{tpu_custom_call.1} parent=75 // pred_check
          %p691 = pneg %p229
        $region102: #{tpu_custom_call.1} parent=75 // pred_check_branch
          %693 = sbr.rel (%p691) target = $region104
        $region103: #{tpu_custom_call.1} parent=75 // pred_region
          %694 = dma.done %s687, 12288
        $region104: #{tpu_custom_call.1} parent=75 // pred_fallthru
          _
        %s695 = sand.u32 %s41, 1
        %s696 = scalar_lea.sflag [#allocation17], %s695
        %s697 = sand.u32 %s242, 1
        %s698 = smul.addr %s697, 6
        %s699 = scalar_lea.vmem [#allocation16], %s698
        // Predicated region
        $region105: #{tpu_custom_call.1} parent=75 // pred_check
          %p700 = pneg %p255
        $region106: #{tpu_custom_call.1} parent=75 // pred_check_branch
          %702 = sbr.rel (%p700) target = $region108
        $region107: #{tpu_custom_call.1} parent=75 // pred_region
          %703 = dma.done %s696, 96
        $region108: #{tpu_custom_call.1} parent=75 // pred_fallthru
          _
        %s704 = sand.u32 %s41, 1
        %s705 = scalar_lea.sflag [#allocation17], %s704
        %s706 = sand.u32 %s268, 1
        %s707 = smul.addr %s706, 768
        %s708 = scalar_lea.vmem [#allocation18], %s707
        // Predicated region
        $region109: #{tpu_custom_call.1} parent=75 // pred_check
          %p709 = pneg %p281
        $region110: #{tpu_custom_call.1} parent=75 // pred_check_branch
          %711 = sbr.rel (%p709) target = $region112
        $region111: #{tpu_custom_call.1} parent=75 // pred_region
          %712 = dma.done %s705, 12288
        $region112: #{tpu_custom_call.1} parent=75 // pred_fallthru
          _
        %s713 = sand.u32 %s41, 1
        %s714 = scalar_lea.sflag [#allocation20], %s713
        %s715 = sand.u32 %s294, 1
        %s716 = smul.addr %s715, 2
        %s717 = scalar_lea.vmem [#allocation19], %s716
        // Predicated region
        $region113: #{tpu_custom_call.1} parent=75 // pred_check
          %p718 = pneg %p307
        $region114: #{tpu_custom_call.1} parent=75 // pred_check_branch
          %720 = sbr.rel (%p718) target = $region116
        $region115: #{tpu_custom_call.1} parent=75 // pred_region
          %721 = dma.done %s714, 32
        $region116: #{tpu_custom_call.1} parent=75 // pred_fallthru
          _
        %s722 = sand.u32 %s41, 1
        %s723 = scalar_lea.sflag [#allocation20], %s722
        %s724 = sand.u32 %s320, 1
        %s725 = smul.addr %s724, 2
        %s726 = scalar_lea.vmem [#allocation21], %s725
        // Predicated region
        $region117: #{tpu_custom_call.1} parent=75 // pred_check
          %p727 = pneg %p333
        $region118: #{tpu_custom_call.1} parent=75 // pred_check_branch
          %729 = sbr.rel (%p727) target = $region120
        $region119: #{tpu_custom_call.1} parent=75 // pred_region
          %730 = dma.done %s723, 32
        $region120: #{tpu_custom_call.1} parent=75 // pred_fallthru
          _
        // Predicated region
        $region121: #{tpu_custom_call.1} parent=75 // pred_check
          %p731 = pneg %p354
        $region122: #{tpu_custom_call.1} parent=75 // pred_check_branch
          %733 = sbr.rel (%p731) target = $region124
        $region123: #{tpu_custom_call.1} parent=75 // pred_region
          %734 = dma.done [#allocation23], 2048
        $region124: #{tpu_custom_call.1} parent=75 // pred_fallthru
          _
        // Predicated region
        $region125: #{tpu_custom_call.1} parent=75 // pred_check
          %p735 = pneg %p375
        $region126: #{tpu_custom_call.1} parent=75 // pred_check_branch
          %737 = sbr.rel (%p735) target = $region128
        $region127: #{tpu_custom_call.1} parent=75 // pred_region
          %738 = dma.done [#allocation23], 16
        $region128: #{tpu_custom_call.1} parent=75 // pred_fallthru
          _
        %p739 = pneg %p57
        %p740 = pneg %p54
        %p741 = pneg %p78
        %p742 = pneg %p75
        %p743 = pneg %p99
        %p744 = pneg %p96
        %p745 = scmp.lt.s32.totalorder %s41, 3
        %s746 = scalar_select %p745, %s41, 3
        %s747 = smul.addr %s746, 2
        %s748 = smul.addr %s747, 8
        %s749 = scalar_lea.vmem %s3, %s748
        %p750 = pneg %p125
        %p751 = pneg %p122
        %s752 = sand.u32 %s41, 1
        %s753 = scalar_lea.sflag [#allocation11], %s752
        %s754 = sand.u32 %s138, 1
        %s755 = smul.addr %s754, 2
        %s756 = scalar_lea.vmem [#allocation10], %s755
        %p757 = pneg %p151
        %p758 = pneg %p148
        %s759 = sand.u32 %s41, 1
        %s760 = scalar_lea.sflag [#allocation11], %s759
        %s761 = sand.u32 %s164, 1
        %s762 = smul.addr %s761, 2
        %s763 = scalar_lea.vmem [#allocation12], %s762
        %p764 = pneg %p177
        %p765 = pneg %p174
        %s766 = sand.u32 %s41, 1
        %s767 = scalar_lea.sflag [#allocation14], %s766
        %s768 = sand.u32 %s190, 1
        %s769 = smul.addr %s768, 2
        %s770 = scalar_lea.vmem [#allocation13], %s769
        %p771 = pneg %p203
        %p772 = pneg %p200
        %s773 = sand.u32 %s41, 1
        %s774 = scalar_lea.sflag [#allocation14], %s773
        %s775 = sand.u32 %s216, 1
        %s776 = smul.addr %s775, 768
        %s777 = scalar_lea.vmem [#allocation15], %s776
        %p778 = pneg %p229
        %p779 = pneg %p226
        %s780 = sand.u32 %s41, 1
        %s781 = scalar_lea.sflag [#allocation17], %s780
        %s782 = sand.u32 %s242, 1
        %s783 = smul.addr %s782, 6
        %s784 = scalar_lea.vmem [#allocation16], %s783
        %p785 = pneg %p255
        %p786 = pneg %p252
        %s787 = sand.u32 %s41, 1
        %s788 = scalar_lea.sflag [#allocation17], %s787
        %s789 = sand.u32 %s268, 1
        %s790 = smul.addr %s789, 768
        %s791 = scalar_lea.vmem [#allocation18], %s790
        %p792 = pneg %p281
        %p793 = pneg %p278
        %s794 = sand.u32 %s41, 1
        %s795 = scalar_lea.sflag [#allocation20], %s794
        %s796 = sand.u32 %s294, 1
        %s797 = smul.addr %s796, 2
        %s798 = scalar_lea.vmem [#allocation19], %s797
        %p799 = pneg %p307
        %p800 = pneg %p304
        %s801 = sand.u32 %s41, 1
        %s802 = scalar_lea.sflag [#allocation20], %s801
        %s803 = sand.u32 %s320, 1
        %s804 = smul.addr %s803, 2
        %s805 = scalar_lea.vmem [#allocation21], %s804
        %p806 = pneg %p333
        %p807 = pneg %p330
        %p808 = pneg %p354
        %p809 = pneg %p351
        %p810 = pneg %p375
        %p811 = pneg %p372
        %p812 = pneg %p396
        %p813 = pneg %p393
        %p814 = scmp.lt.s32.totalorder %s41, 3
        %s815 = scalar_select %p814, %s41, 3
        %s816 = smul.addr %s815, 2
        %s817 = smul.addr %s816, 8
        %s818 = scalar_lea.vmem %s3, %s817
        %p820 = scmp.eq.s32.totalorder %s41, 0
        // Predicated region
        $region129: #{tpu_custom_call.1} parent=75 // pred_check
          %p821 = pneg %p820
        $region130: #{tpu_custom_call.1} parent=75 // pred_check_branch
          %823 = sbr.rel (%p821) target = $region132
        $region131: #{tpu_custom_call.1} parent=75 // pred_region
          %824 = vst [vmem:[#allocation3] sm:$0xff] 0.0
          %825 = vst [vmem:[#allocation3 + $0x8] sm:$0xff] 0.0
          %826 = vst [vmem:[#allocation3 + $0x10] sm:$0xff] 0.0
          %827 = vst [vmem:[#allocation3 + $0x18] sm:$0xff] 0.0
          %828 = vst [vmem:[#allocation3 + $0x20] sm:$0xff] 0.0
          %829 = vst [vmem:[#allocation3 + $0x28] sm:$0xff] 0.0
          %830 = vst [vmem:[#allocation3 + $0x30] sm:$0xff] 0.0
          %831 = vst [vmem:[#allocation3 + $0x38] sm:$0xff] 0.0
          %832 = vst [vmem:[#allocation3 + $0x40] sm:$0xff] 0.0
          %833 = vst [vmem:[#allocation3 + $0x48] sm:$0xff] 0.0
          %834 = vst [vmem:[#allocation3 + $0x50] sm:$0xff] 0.0
          %835 = vst [vmem:[#allocation3 + $0x58] sm:$0xff] 0.0
          %836 = vst [vmem:[#allocation3 + $0x60] sm:$0xff] 0.0
          %837 = vst [vmem:[#allocation3 + $0x68] sm:$0xff] 0.0
          %838 = vst [vmem:[#allocation3 + $0x70] sm:$0xff] 0.0
          %839 = vst [vmem:[#allocation3 + $0x78] sm:$0xff] 0.0
          %v840 = vld [vmem:[#allocation4] sm:$0xf]
          %v841 = vld [vmem:[#allocation4 + $0x4] sm:$0xf]
          %v842 = vld [vmem:[#allocation4 + $0x8] sm:$0xf]
          %v843 = vld [vmem:[#allocation4 + $0xc] sm:$0xf]
          %v844 = vld [vmem:[#allocation7] sm:$0xff]
          %v845 = vld [vmem:[#allocation7 + $0x8] sm:$0xff]
          %v846 = vld [vmem:[#allocation7 + $0x10] sm:$0xff]
          %v847 = vld [vmem:[#allocation7 + $0x18] sm:$0xff]
          %v848 = vld [vmem:[#allocation7 + $0x20] sm:$0xff]
          %v849 = vld [vmem:[#allocation7 + $0x28] sm:$0xff]
          %v850 = vld [vmem:[#allocation7 + $0x30] sm:$0xff]
          %v851 = vld [vmem:[#allocation7 + $0x38] sm:$0xff]
          %v852 = vld [vmem:[#allocation7 + $0x40] sm:$0xff]
          %v853 = vld [vmem:[#allocation7 + $0x48] sm:$0xff]
          %v854 = vld [vmem:[#allocation7 + $0x50] sm:$0xff]
          %v855 = vld [vmem:[#allocation7 + $0x58] sm:$0xff]
          %v856 = vld [vmem:[#allocation7 + $0x60] sm:$0xff]
          %v857 = vld [vmem:[#allocation7 + $0x68] sm:$0xff]
          %v858 = vld [vmem:[#allocation7 + $0x70] sm:$0xff]
          %v859 = vld [vmem:[#allocation7 + $0x78] sm:$0xff]
          %v860 = vld [vmem:[#allocation9] sm:$0x3]
          %v862 = vlaneseq
          %v863 = vshrl.u32 %v862, 7
          %v864 = vsub.s32 0, %v863
          %v865 = vrot.slane %v860, %v864
          %v866 = vlaneseq
          %v867 = vshrl.u32 %v866, 7
          %v868 = vsub.s32 1, %v867
          %v869 = vrot.slane %v860, %v868
          %v876 = vunpack.c.l.b16 %v840
          %v877 = vunpack.c.l.b16 %v841
          %v878 = vunpack.c.l.b16 %v842
          %v879 = vunpack.c.l.b16 %v843
          %v880 = vpack.c.b16 %v877, %v876
          %v881 = vpack.c.b16 %v879, %v878
          %v900 = vunpack.c.l.b16 %v844
          %v901 = vunpack.c.h.b16 %v844
          %v902 = vunpack.c.l.b16 %v845
          %v903 = vunpack.c.h.b16 %v845
          %v904 = vunpack.c.l.b16 %v846
          %v905 = vunpack.c.h.b16 %v846
          %v906 = vunpack.c.l.b16 %v847
          %v907 = vunpack.c.h.b16 %v847
          %v908 = vunpack.c.l.b16 %v848
          %v909 = vunpack.c.h.b16 %v848
          %v910 = vunpack.c.l.b16 %v849
          %v911 = vunpack.c.h.b16 %v849
          %v912 = vunpack.c.l.b16 %v850
          %v913 = vunpack.c.h.b16 %v850
          %v914 = vunpack.c.l.b16 %v851
          %v915 = vunpack.c.h.b16 %v851
          %v916 = vunpack.c.l.b16 %v852
          %v917 = vunpack.c.h.b16 %v852
          %v918 = vunpack.c.l.b16 %v853
          %v919 = vunpack.c.h.b16 %v853
          %v920 = vunpack.c.l.b16 %v854
          %v921 = vunpack.c.h.b16 %v854
          %v922 = vunpack.c.l.b16 %v855
          %v923 = vunpack.c.h.b16 %v855
          %v924 = vunpack.c.l.b16 %v856
          %v925 = vunpack.c.h.b16 %v856
          %v926 = vunpack.c.l.b16 %v857
          %v927 = vunpack.c.h.b16 %v857
          %v928 = vunpack.c.l.b16 %v858
          %v929 = vunpack.c.h.b16 %v858
          %v930 = vunpack.c.l.b16 %v859
          %v931 = vunpack.c.h.b16 %v859
          %v932 = vpack.c.b16 %v902, %v900
          %v933 = vpack.c.b16 %v903, %v901
          %v934 = vpack.c.b16 %v906, %v904
          %v935 = vpack.c.b16 %v907, %v905
          %v936 = vpack.c.b16 %v910, %v908
          %v937 = vpack.c.b16 %v911, %v909
          %v938 = vpack.c.b16 %v914, %v912
          %v939 = vpack.c.b16 %v915, %v913
          %v940 = vpack.c.b16 %v918, %v916
          %v941 = vpack.c.b16 %v919, %v917
          %v942 = vpack.c.b16 %v922, %v920
          %v943 = vpack.c.b16 %v923, %v921
          %v944 = vpack.c.b16 %v926, %v924
          %v945 = vpack.c.b16 %v927, %v925
          %v946 = vpack.c.b16 %v930, %v928
          %v947 = vpack.c.b16 %v931, %v929
          %964 = vmatprep.subr.bf16.mxu0 %v933
          %965 = vmatpush1.bf16.msra.mxu0 %v932
          %966 = vmatprep.subr.bf16.mxu0 %v935
          %967 = vmatpush1.bf16.msra.mxu0 %v934
          %968 = vmatprep.subr.bf16.mxu0 %v937
          %969 = vmatpush1.bf16.msra.mxu0 %v936
          %970 = vmatprep.subr.bf16.mxu0 %v939
          %971 = vmatpush1.bf16.msra.mxu0 %v938
          %972 = vmatprep.subr.bf16.mxu0 %v941
          %973 = vmatpush1.bf16.msra.mxu0 %v940
          %974 = vmatprep.subr.bf16.mxu0 %v943
          %975 = vmatpush1.bf16.msra.mxu0 %v942
          %976 = vmatprep.subr.bf16.mxu0 %v945
          %977 = vmatpush1.bf16.msra.mxu0 %v944
          %978 = vmatprep.subr.bf16.mxu0 %v947
          %979 = vmatpush1.bf16.msra.mxu0 %v946
          %980 = vmatprep.subr.bf16.mxu0 0
          %981 = vmatpush1.bf16.msra.mxu0 0
          %982 = vmatprep.subr.bf16.mxu0 0
          %983 = vmatpush1.bf16.msra.mxu0 0
          %984 = vmatprep.subr.bf16.mxu0 0
          %985 = vmatpush1.bf16.msra.mxu0 0
          %986 = vmatprep.subr.bf16.mxu0 0
          %987 = vmatpush1.bf16.msra.mxu0 0
          %988 = vmatprep.subr.bf16.mxu0 0
          %989 = vmatpush1.bf16.msra.mxu0 0
          %990 = vmatprep.subr.bf16.mxu0 0
          %991 = vmatpush1.bf16.msra.mxu0 0
          %992 = vmatprep.subr.bf16.mxu0 0
          %993 = vmatpush1.bf16.msra.mxu0 0
          %994 = vmatprep.subr.bf16.mxu0 0
          %995 = vmatpush1.bf16.msra.mxu0 0
          %996 = vmatprep.mubr.bf16.mxu0 0
          %997 = vmatmul.mubr.bf16.gmra.mrb[0].mxu0 %v880
          %v998 = vpop.f32.mrb[0].mxu0
          %v999 = vadd.f32 %v865, %v998
          %v1000 = vpop.f32.mrb[0].mxu0
          %v1001 = vadd.f32 %v869, %v1000
          %v1002 = vpop.f32.mrb[0].mxu0
          %v1003 = vadd.f32 %v865, %v1002
          %v1004 = vpop.f32.mrb[0].mxu0
          %v1005 = vadd.f32 %v869, %v1004
          %1006 = vmatprep.mubr.bf16.mxu0 0
          %1007 = vmatmul.mubr.bf16.gmra.mrb[0].mxu0 %v881
          %v1008 = vpop.f32.mrb[0].mxu0
          %v1009 = vadd.f32 %v865, %v1008
          %v1010 = vpop.f32.mrb[0].mxu0
          %v1011 = vadd.f32 %v869, %v1010
          %v1012 = vpop.f32.mrb[0].mxu0
          %v1013 = vadd.f32 %v865, %v1012
          %v1014 = vpop.f32.mrb[0].mxu0
          %v1015 = vadd.f32 %v869, %v1014
          %1016 = vdwg.mxu0
          %1017 = vst [vmem:[#allocation2] sm:$0xff] %v999
          %1018 = vst [vmem:[#allocation2 + $0x8] sm:$0xff] %v1001
          %1019 = vst [vmem:[#allocation2 + $0x10] sm:$0xff] %v1003
          %1020 = vst [vmem:[#allocation2 + $0x18] sm:$0xff] %v1005
          %1021 = vst [vmem:[#allocation2 + $0x20] sm:$0xff] %v1009
          %1022 = vst [vmem:[#allocation2 + $0x28] sm:$0xff] %v1011
          %1023 = vst [vmem:[#allocation2 + $0x30] sm:$0xff] %v1013
          %1024 = vst [vmem:[#allocation2 + $0x38] sm:$0xff] %v1015
        $region132: #{tpu_custom_call.1} parent=75 // pred_fallthru
          _
        %v1025 = vld [vmem:[#allocation2] sm:$0xff]
        %v1026 = vld [vmem:[#allocation2 + $0x8] sm:$0xff]
        %v1027 = vld [vmem:[#allocation2 + $0x10] sm:$0xff]
        %v1028 = vld [vmem:[#allocation2 + $0x18] sm:$0xff]
        %v1029 = vld [vmem:[#allocation2 + $0x20] sm:$0xff]
        %v1030 = vld [vmem:[#allocation2 + $0x28] sm:$0xff]
        %v1031 = vld [vmem:[#allocation2 + $0x30] sm:$0xff]
        %v1032 = vld [vmem:[#allocation2 + $0x38] sm:$0xff]
        %1033 = vst [vmem:[#allocation3 + $0x10] sm:$0xff] %v1025
        %1034 = vst [vmem:[#allocation3 + $0x18] sm:$0xff] %v1026
        %1035 = vst [vmem:[#allocation3 + $0x20] sm:$0xff] %v1027
        %1036 = vst [vmem:[#allocation3 + $0x28] sm:$0xff] %v1028
        %1037 = vst [vmem:[#allocation3 + $0x50] sm:$0xff] %v1029
        %1038 = vst [vmem:[#allocation3 + $0x58] sm:$0xff] %v1030
        %1039 = vst [vmem:[#allocation3 + $0x60] sm:$0xff] %v1031
        %1040 = vst [vmem:[#allocation3 + $0x68] sm:$0xff] %v1032
        %v1041 = vld [vmem:[#allocation3] sm:$0xff]
        %v1042 = vld [vmem:[#allocation3 + $0x8] sm:$0xff]
        %v1043 = vld [vmem:[#allocation3 + $0x10] sm:$0xff]
        %v1044 = vld [vmem:[#allocation3 + $0x18] sm:$0xff]
        %v1045 = vld [vmem:[#allocation3 + $0x20] sm:$0xff]
        %v1046 = vld [vmem:[#allocation3 + $0x28] sm:$0xff]
        %v1047 = vld [vmem:[#allocation3 + $0x30] sm:$0xff]
        %v1048 = vld [vmem:[#allocation3 + $0x38] sm:$0xff]
        %v1049 = vld [vmem:[#allocation3 + $0x40] sm:$0xff]
        %v1050 = vld [vmem:[#allocation3 + $0x48] sm:$0xff]
        %v1051 = vld [vmem:[#allocation3 + $0x50] sm:$0xff]
        %v1052 = vld [vmem:[#allocation3 + $0x58] sm:$0xff]
        %v1053 = vld [vmem:[#allocation3 + $0x60] sm:$0xff]
        %v1054 = vld [vmem:[#allocation3 + $0x68] sm:$0xff]
        %v1055 = vld [vmem:[#allocation3 + $0x70] sm:$0xff]
        %v1056 = vld [vmem:[#allocation3 + $0x78] sm:$0xff]
        %v1057 = vld [vmem:[%s818] sm:$0x7f]
        %v1058 = vld [vmem:[%s818 + $0x8] sm:$0x7f]
        %v1059 = vlaneseq
        %v1060 = vshrl.u32 %v1059, 7
        %v1061 = vsub.s32 0, %v1060
        %v1062 = vrot.slane %v1057, %v1061
        %v1063 = vlaneseq
        %v1064 = vshrl.u32 %v1063, 7
        %v1065 = vsub.s32 0, %v1064
        %v1066 = vrot.slane %v1058, %v1065
        %v1067 = vmul.f32 %v1041, %v1062
        %v1068 = vmul.f32 %v1042, %v1066
        %v1069 = vmul.f32 %v1043, %v1062
        %v1070 = vmul.f32 %v1044, %v1066
        %v1071 = vmul.f32 %v1045, %v1062
        %v1072 = vmul.f32 %v1046, %v1066
        %v1073 = vmul.f32 %v1049, %v1062
        %v1074 = vmul.f32 %v1050, %v1066
        %v1075 = vmul.f32 %v1051, %v1062
        %v1076 = vmul.f32 %v1052, %v1066
        %v1077 = vmul.f32 %v1053, %v1062
        %v1078 = vmul.f32 %v1054, %v1066
        %v1079 = vlaneseq
        %v1080 = vshrl.u32 %v1079, 7
        %v1081 = vsub.s32 1, %v1080
        %v1082 = vrot.slane %v1057, %v1081
        %v1083 = vlaneseq
        %v1084 = vshrl.u32 %v1083, 7
        %v1085 = vsub.s32 1, %v1084
        %v1086 = vrot.slane %v1058, %v1085
        %v1087 = vmul.f32 %v1041, %v1082
        %v1088 = vmul.f32 %v1042, %v1086
        %v1089 = vmul.f32 %v1043, %v1082
        %v1090 = vmul.f32 %v1044, %v1086
        %v1091 = vmul.f32 %v1045, %v1082
        %v1092 = vmul.f32 %v1046, %v1086
        %v1093 = vmul.f32 %v1049, %v1082
        %v1094 = vmul.f32 %v1050, %v1086
        %v1095 = vmul.f32 %v1051, %v1082
        %v1096 = vmul.f32 %v1052, %v1086
        %v1097 = vmul.f32 %v1053, %v1082
        %v1098 = vmul.f32 %v1054, %v1086
        %vm1111 = vcmask 1046528
        %v1112 = vrot.slane %v1087, 1
        %v1113 = vrot.slane %v1089, 1
        %v1114 = vsel %vm1111, %v1112, %v1113
        %v1115 = vrot.slane %v1088, 1
        %v1116 = vrot.slane %v1090, 1
        %v1117 = vsel %vm1111, %v1115, %v1116
        %v1118 = vrot.slane %v1091, 1
        %v1119 = vsel %vm1111, %v1113, %v1118
        %v1120 = vrot.slane %v1092, 1
        %v1121 = vsel %vm1111, %v1116, %v1120
        %v1122 = vrot.slane %v1093, 1
        %v1123 = vrot.slane %v1095, 1
        %v1124 = vsel %vm1111, %v1122, %v1123
        %v1125 = vrot.slane %v1094, 1
        %v1126 = vrot.slane %v1096, 1
        %v1127 = vsel %vm1111, %v1125, %v1126
        %v1128 = vrot.slane %v1097, 1
        %v1129 = vsel %vm1111, %v1123, %v1128
        %v1130 = vrot.slane %v1098, 1
        %v1131 = vsel %vm1111, %v1126, %v1130
        %v1144 = vadd.f32 %v1067, %v1114
        %v1145 = vadd.f32 %v1068, %v1117
        %v1146 = vadd.f32 %v1069, %v1119
        %v1147 = vadd.f32 %v1070, %v1121
        %v1148 = vadd.f32 %v1071, %v1118
        %v1149 = vadd.f32 %v1072, %v1120
        %v1150 = vadd.f32 %v1073, %v1124
        %v1151 = vadd.f32 %v1074, %v1127
        %v1152 = vadd.f32 %v1075, %v1129
        %v1153 = vadd.f32 %v1076, %v1131
        %v1154 = vadd.f32 %v1077, %v1128
        %v1155 = vadd.f32 %v1078, %v1130
        %v1156 = vlaneseq
        %v1157 = vshrl.u32 %v1156, 7
        %v1158 = vsub.s32 2, %v1157
        %v1159 = vrot.slane %v1057, %v1158
        %v1160 = vlaneseq
        %v1161 = vshrl.u32 %v1160, 7
        %v1162 = vsub.s32 2, %v1161
        %v1163 = vrot.slane %v1058, %v1162
        %v1164 = vmul.f32 %v1041, %v1159
        %v1165 = vmul.f32 %v1042, %v1163
        %v1166 = vmul.f32 %v1043, %v1159
        %v1167 = vmul.f32 %v1044, %v1163
        %v1168 = vmul.f32 %v1045, %v1159
        %v1169 = vmul.f32 %v1046, %v1163
        %v1170 = vmul.f32 %v1049, %v1159
        %v1171 = vmul.f32 %v1050, %v1163
        %v1172 = vmul.f32 %v1051, %v1159
        %v1173 = vmul.f32 %v1052, %v1163
        %v1174 = vmul.f32 %v1053, %v1159
        %v1175 = vmul.f32 %v1054, %v1163
        %vm1188 = vcmask 1045504
        %v1189 = vrot.slane %v1164, 2
        %v1190 = vrot.slane %v1166, 2
        %v1191 = vsel %vm1188, %v1189, %v1190
        %v1192 = vrot.slane %v1165, 2
        %v1193 = vrot.slane %v1167, 2
        %v1194 = vsel %vm1188, %v1192, %v1193
        %v1195 = vrot.slane %v1168, 2
        %v1196 = vsel %vm1188, %v1190, %v1195
        %v1197 = vrot.slane %v1169, 2
        %v1198 = vsel %vm1188, %v1193, %v1197
        %v1199 = vrot.slane %v1170, 2
        %v1200 = vrot.slane %v1172, 2
        %v1201 = vsel %vm1188, %v1199, %v1200
        %v1202 = vrot.slane %v1171, 2
        %v1203 = vrot.slane %v1173, 2
        %v1204 = vsel %vm1188, %v1202, %v1203
        %v1205 = vrot.slane %v1174, 2
        %v1206 = vsel %vm1188, %v1200, %v1205
        %v1207 = vrot.slane %v1175, 2
        %v1208 = vsel %vm1188, %v1203, %v1207
        %v1221 = vadd.f32 %v1144, %v1191
        %v1222 = vadd.f32 %v1145, %v1194
        %v1223 = vadd.f32 %v1146, %v1196
        %v1224 = vadd.f32 %v1147, %v1198
        %v1225 = vadd.f32 %v1148, %v1195
        %v1226 = vadd.f32 %v1149, %v1197
        %v1227 = vadd.f32 %v1150, %v1201
        %v1228 = vadd.f32 %v1151, %v1204
        %v1229 = vadd.f32 %v1152, %v1206
        %v1230 = vadd.f32 %v1153, %v1208
        %v1231 = vadd.f32 %v1154, %v1205
        %v1232 = vadd.f32 %v1155, %v1207
        %v1233 = vlaneseq
        %v1234 = vshrl.u32 %v1233, 7
        %v1235 = vsub.s32 3, %v1234
        %v1236 = vrot.slane %v1057, %v1235
        %v1237 = vlaneseq
        %v1238 = vshrl.u32 %v1237, 7
        %v1239 = vsub.s32 3, %v1238
        %v1240 = vrot.slane %v1058, %v1239
        %v1241 = vmul.f32 %v1043, %v1236
        %v1242 = vmul.f32 %v1044, %v1240
        %v1243 = vmul.f32 %v1045, %v1236
        %v1244 = vmul.f32 %v1046, %v1240
        %v1245 = vmul.f32 %v1051, %v1236
        %v1246 = vmul.f32 %v1052, %v1240
        %v1247 = vmul.f32 %v1053, %v1236
        %v1248 = vmul.f32 %v1054, %v1240
        %vm1257 = vcmask 1044480
        %v1258 = vrot.slane %v1241, 3
        %v1259 = vrot.slane %v1242, 3
        %v1260 = vrot.slane %v1243, 3
        %v1261 = vsel %vm1257, %v1258, %v1260
        %v1262 = vrot.slane %v1244, 3
        %v1263 = vsel %vm1257, %v1259, %v1262
        %v1264 = vrot.slane %v1245, 3
        %v1265 = vrot.slane %v1246, 3
        %v1266 = vrot.slane %v1247, 3
        %v1267 = vsel %vm1257, %v1264, %v1266
        %v1268 = vrot.slane %v1248, 3
        %v1269 = vsel %vm1257, %v1265, %v1268
        %v1282 = vadd.f32 %v1221, %v1258
        %v1283 = vadd.f32 %v1222, %v1259
        %v1284 = vadd.f32 %v1223, %v1261
        %v1285 = vadd.f32 %v1224, %v1263
        %v1286 = vadd.f32 %v1225, %v1260
        %v1287 = vadd.f32 %v1226, %v1262
        %v1288 = vadd.f32 %v1227, %v1264
        %v1289 = vadd.f32 %v1228, %v1265
        %v1290 = vadd.f32 %v1229, %v1267
        %v1291 = vadd.f32 %v1230, %v1269
        %v1292 = vadd.f32 %v1231, %v1266
        %v1293 = vadd.f32 %v1232, %v1268
        %v1294 = vlaneseq
        %v1295 = vshrl.u32 %v1294, 7
        %v1296 = vsub.s32 4, %v1295
        %v1297 = vrot.slane %v1057, %v1296
        %v1298 = vlaneseq
        %v1299 = vshrl.u32 %v1298, 7
        %v1300 = vsub.s32 4, %v1299
        %v1301 = vrot.slane %v1058, %v1300
        %v1302 = vmul.f32 %v1043, %v1297
        %v1303 = vmul.f32 %v1044, %v1301
        %v1304 = vmul.f32 %v1045, %v1297
        %v1305 = vmul.f32 %v1046, %v1301
        %v1306 = vmul.f32 %v1047, %v1297
        %v1307 = vmul.f32 %v1048, %v1301
        %v1308 = vmul.f32 %v1051, %v1297
        %v1309 = vmul.f32 %v1052, %v1301
        %v1310 = vmul.f32 %v1053, %v1297
        %v1311 = vmul.f32 %v1054, %v1301
        %v1312 = vmul.f32 %v1055, %v1297
        %v1313 = vmul.f32 %v1056, %v1301
        %vm1326 = vcmask 1043456
        %v1327 = vrot.slane %v1302, 4
        %v1328 = vrot.slane %v1303, 4
        %v1329 = vrot.slane %v1304, 4
        %v1330 = vsel %vm1326, %v1327, %v1329
        %v1331 = vrot.slane %v1305, 4
        %v1332 = vsel %vm1326, %v1328, %v1331
        %v1333 = vrot.slane %v1306, 4
        %v1334 = vsel %vm1326, %v1329, %v1333
        %v1335 = vrot.slane %v1307, 4
        %v1336 = vsel %vm1326, %v1331, %v1335
        %v1337 = vrot.slane %v1308, 4
        %v1338 = vrot.slane %v1309, 4
        %v1339 = vrot.slane %v1310, 4
        %v1340 = vsel %vm1326, %v1337, %v1339
        %v1341 = vrot.slane %v1311, 4
        %v1342 = vsel %vm1326, %v1338, %v1341
        %v1343 = vrot.slane %v1312, 4
        %v1344 = vsel %vm1326, %v1339, %v1343
        %v1345 = vrot.slane %v1313, 4
        %v1346 = vsel %vm1326, %v1341, %v1345
        %v1359 = vadd.f32 %v1282, %v1327
        %v1360 = vadd.f32 %v1283, %v1328
        %v1361 = vadd.f32 %v1284, %v1330
        %v1362 = vadd.f32 %v1285, %v1332
        %v1363 = vadd.f32 %v1286, %v1334
        %v1364 = vadd.f32 %v1287, %v1336
        %v1365 = vadd.f32 %v1288, %v1337
        %v1366 = vadd.f32 %v1289, %v1338
        %v1367 = vadd.f32 %v1290, %v1340
        %v1368 = vadd.f32 %v1291, %v1342
        %v1369 = vadd.f32 %v1292, %v1344
        %v1370 = vadd.f32 %v1293, %v1346
        %v1371 = vlaneseq
        %v1372 = vshrl.u32 %v1371, 7
        %v1373 = vsub.s32 5, %v1372
        %v1374 = vrot.slane %v1057, %v1373
        %v1375 = vlaneseq
        %v1376 = vshrl.u32 %v1375, 7
        %v1377 = vsub.s32 5, %v1376
        %v1378 = vrot.slane %v1058, %v1377
        %v1379 = vmul.f32 %v1043, %v1374
        %v1380 = vmul.f32 %v1044, %v1378
        %v1381 = vmul.f32 %v1045, %v1374
        %v1382 = vmul.f32 %v1046, %v1378
        %v1383 = vmul.f32 %v1047, %v1374
        %v1384 = vmul.f32 %v1048, %v1378
        %v1385 = vmul.f32 %v1051, %v1374
        %v1386 = vmul.f32 %v1052, %v1378
        %v1387 = vmul.f32 %v1053, %v1374
        %v1388 = vmul.f32 %v1054, %v1378
        %v1389 = vmul.f32 %v1055, %v1374
        %v1390 = vmul.f32 %v1056, %v1378
        %vm1403 = vcmask 1042432
        %v1404 = vrot.slane %v1379, 5
        %v1405 = vrot.slane %v1380, 5
        %v1406 = vrot.slane %v1381, 5
        %v1407 = vsel %vm1403, %v1404, %v1406
        %v1408 = vrot.slane %v1382, 5
        %v1409 = vsel %vm1403, %v1405, %v1408
        %v1410 = vrot.slane %v1383, 5
        %v1411 = vsel %vm1403, %v1406, %v1410
        %v1412 = vrot.slane %v1384, 5
        %v1413 = vsel %vm1403, %v1408, %v1412
        %v1414 = vrot.slane %v1385, 5
        %v1415 = vrot.slane %v1386, 5
        %v1416 = vrot.slane %v1387, 5
        %v1417 = vsel %vm1403, %v1414, %v1416
        %v1418 = vrot.slane %v1388, 5
        %v1419 = vsel %vm1403, %v1415, %v1418
        %v1420 = vrot.slane %v1389, 5
        %v1421 = vsel %vm1403, %v1416, %v1420
        %v1422 = vrot.slane %v1390, 5
        %v1423 = vsel %vm1403, %v1418, %v1422
        %v1436 = vadd.f32 %v1359, %v1404
        %v1437 = vadd.f32 %v1360, %v1405
        %v1438 = vadd.f32 %v1361, %v1407
        %v1439 = vadd.f32 %v1362, %v1409
        %v1440 = vadd.f32 %v1363, %v1411
        %v1441 = vadd.f32 %v1364, %v1413
        %v1442 = vadd.f32 %v1365, %v1414
        %v1443 = vadd.f32 %v1366, %v1415
        %v1444 = vadd.f32 %v1367, %v1417
        %v1445 = vadd.f32 %v1368, %v1419
        %v1446 = vadd.f32 %v1369, %v1421
        %v1447 = vadd.f32 %v1370, %v1423
        %v1448 = vlaneseq
        %v1449 = vshrl.u32 %v1448, 7
        %v1450 = vsub.s32 6, %v1449
        %v1451 = vrot.slane %v1057, %v1450
        %v1452 = vlaneseq
        %v1453 = vshrl.u32 %v1452, 7
        %v1454 = vsub.s32 6, %v1453
        %v1455 = vrot.slane %v1058, %v1454
        %v1456 = vmul.f32 %v1043, %v1451
        %v1457 = vmul.f32 %v1044, %v1455
        %v1458 = vmul.f32 %v1045, %v1451
        %v1459 = vmul.f32 %v1046, %v1455
        %v1460 = vmul.f32 %v1047, %v1451
        %v1461 = vmul.f32 %v1048, %v1455
        %v1462 = vmul.f32 %v1051, %v1451
        %v1463 = vmul.f32 %v1052, %v1455
        %v1464 = vmul.f32 %v1053, %v1451
        %v1465 = vmul.f32 %v1054, %v1455
        %v1466 = vmul.f32 %v1055, %v1451
        %v1467 = vmul.f32 %v1056, %v1455
        %vm1480 = vcmask 1041408
        %v1481 = vrot.slane %v1456, 6
        %v1482 = vrot.slane %v1457, 6
        %v1483 = vrot.slane %v1458, 6
        %v1484 = vsel %vm1480, %v1481, %v1483
        %v1485 = vrot.slane %v1459, 6
        %v1486 = vsel %vm1480, %v1482, %v1485
        %v1487 = vrot.slane %v1460, 6
        %v1488 = vsel %vm1480, %v1483, %v1487
        %v1489 = vrot.slane %v1461, 6
        %v1490 = vsel %vm1480, %v1485, %v1489
        %v1491 = vrot.slane %v1462, 6
        %v1492 = vrot.slane %v1463, 6
        %v1493 = vrot.slane %v1464, 6
        %v1494 = vsel %vm1480, %v1491, %v1493
        %v1495 = vrot.slane %v1465, 6
        %v1496 = vsel %vm1480, %v1492, %v1495
        %v1497 = vrot.slane %v1466, 6
        %v1498 = vsel %vm1480, %v1493, %v1497
        %v1499 = vrot.slane %v1467, 6
        %v1500 = vsel %vm1480, %v1495, %v1499
        %v1513 = vadd.f32 %v1436, %v1481
        %v1514 = vadd.f32 %v1437, %v1482
        %v1515 = vadd.f32 %v1438, %v1484
        %v1516 = vadd.f32 %v1439, %v1486
        %v1517 = vadd.f32 %v1440, %v1488
        %v1518 = vadd.f32 %v1441, %v1490
        %v1519 = vadd.f32 %v1442, %v1491
        %v1520 = vadd.f32 %v1443, %v1492
        %v1521 = vadd.f32 %v1444, %v1494
        %v1522 = vadd.f32 %v1445, %v1496
        %v1523 = vadd.f32 %v1446, %v1498
        %v1524 = vadd.f32 %v1447, %v1500
        %v1525 = vld [vmem:[%s663] sm:$0x3]
        %v1527 = vlaneseq
        %v1528 = vshrl.u32 %v1527, 7
        %v1529 = vsub.s32 0, %v1528
        %v1530 = vrot.slane %v1525, %v1529
        %v1531 = vlaneseq
        %v1532 = vshrl.u32 %v1531, 7
        %v1533 = vsub.s32 1, %v1532
        %v1534 = vrot.slane %v1525, %v1533
        %v1537 = vadd.f32 %v1513, %v1530
        %v1538 = vadd.f32 %v1514, %v1534
        %v1539 = vadd.f32 %v1515, %v1530
        %v1540 = vadd.f32 %v1516, %v1534
        %v1541 = vadd.f32 %v1517, %v1530
        %v1542 = vadd.f32 %v1518, %v1534
        %v1543 = vadd.f32 %v1519, %v1530
        %v1544 = vadd.f32 %v1520, %v1534
        %v1545 = vadd.f32 %v1521, %v1530
        %v1546 = vadd.f32 %v1522, %v1534
        %v1547 = vadd.f32 %v1523, %v1530
        %v1548 = vadd.f32 %v1524, %v1534
        %vm1549 = vcmask 1047557
        %v1550 = vsel %vm1549, %v1537, 0.0
        %v1551 = vsel %vm1549, %v1538, 0.0
        %v1552 = vadd.f32 %v1550, %v1551
        %1553 = vadd.xlane.f32.xlu0 %v1552
        %v1554 = vpop.xlane.xlu0 %1553
        %v1555 = vadd.f32 %v1539, %v1540
        %1556 = vadd.xlane.f32.xlu0 %v1555
        %v1557 = vpop.xlane.xlu0 %1556
        %v1558 = vsel %vm1257, %v1541, 0.0
        %v1559 = vsel %vm1257, %v1542, 0.0
        %v1560 = vadd.f32 %v1558, %v1559
        %1561 = vadd.xlane.f32.xlu0 %v1560
        %v1562 = vpop.xlane.xlu0 %1561
        %v1563 = vsel %vm1549, %v1543, 0.0
        %v1564 = vsel %vm1549, %v1544, 0.0
        %v1565 = vadd.f32 %v1563, %v1564
        %1566 = vadd.xlane.f32.xlu0 %v1565
        %v1567 = vpop.xlane.xlu0 %1566
        %v1568 = vadd.f32 %v1545, %v1546
        %1569 = vadd.xlane.f32.xlu0 %v1568
        %v1570 = vpop.xlane.xlu0 %1569
        %v1571 = vsel %vm1257, %v1547, 0.0
        %v1572 = vsel %vm1257, %v1548, 0.0
        %v1573 = vadd.f32 %v1571, %v1572
        %1574 = vadd.xlane.f32.xlu0 %v1573
        %v1575 = vpop.xlane.xlu0 %1574
        %v1576 = vrcp.pop 256.0
        %v1577 = vmul.f32 %v1554, %v1576
        %v1578 = vmul.f32 %v1557, %v1576
        %v1579 = vmul.f32 %v1562, %v1576
        %v1580 = vmul.f32 %v1567, %v1576
        %v1581 = vmul.f32 %v1570, %v1576
        %v1582 = vmul.f32 %v1575, %v1576
        %v1583 = vsub.f32 %v1537, %v1577
        %v1584 = vsub.f32 %v1538, %v1577
        %v1585 = vsub.f32 %v1539, %v1578
        %v1586 = vsub.f32 %v1540, %v1578
        %v1587 = vsub.f32 %v1541, %v1579
        %v1588 = vsub.f32 %v1542, %v1579
        %v1589 = vsub.f32 %v1543, %v1580
        %v1590 = vsub.f32 %v1544, %v1580
        %v1591 = vsub.f32 %v1545, %v1581
        %v1592 = vsub.f32 %v1546, %v1581
        %v1593 = vsub.f32 %v1547, %v1582
        %v1594 = vsub.f32 %v1548, %v1582
        %v1595 = vmul.f32 %v1583, %v1583
        %v1596 = vmul.f32 %v1584, %v1584
        %v1597 = vmul.f32 %v1585, %v1585
        %v1598 = vmul.f32 %v1586, %v1586
        %v1599 = vmul.f32 %v1587, %v1587
        %v1600 = vmul.f32 %v1588, %v1588
        %v1601 = vmul.f32 %v1589, %v1589
        %v1602 = vmul.f32 %v1590, %v1590
        %v1603 = vmul.f32 %v1591, %v1591
        %v1604 = vmul.f32 %v1592, %v1592
        %v1605 = vmul.f32 %v1593, %v1593
        %v1606 = vmul.f32 %v1594, %v1594
        %v1607 = vsel %vm1549, %v1595, 0.0
        %v1608 = vsel %vm1549, %v1596, 0.0
        %v1609 = vadd.f32 %v1607, %v1608
        %1610 = vadd.xlane.f32.xlu0 %v1609
        %v1611 = vpop.xlane.xlu0 %1610
        %v1612 = vadd.f32 %v1597, %v1598
        %1613 = vadd.xlane.f32.xlu0 %v1612
        %v1614 = vpop.xlane.xlu0 %1613
        %v1615 = vsel %vm1257, %v1599, 0.0
        %v1616 = vsel %vm1257, %v1600, 0.0
        %v1617 = vadd.f32 %v1615, %v1616
        %1618 = vadd.xlane.f32.xlu0 %v1617
        %v1619 = vpop.xlane.xlu0 %1618
        %v1620 = vsel %vm1549, %v1601, 0.0
        %v1621 = vsel %vm1549, %v1602, 0.0
        %v1622 = vadd.f32 %v1620, %v1621
        %1623 = vadd.xlane.f32.xlu0 %v1622
        %v1624 = vpop.xlane.xlu0 %1623
        %v1625 = vadd.f32 %v1603, %v1604
        %1626 = vadd.xlane.f32.xlu0 %v1625
        %v1627 = vpop.xlane.xlu0 %1626
        %v1628 = vsel %vm1257, %v1605, 0.0
        %v1629 = vsel %vm1257, %v1606, 0.0
        %v1630 = vadd.f32 %v1628, %v1629
        %1631 = vadd.xlane.f32.xlu0 %v1630
        %v1632 = vpop.xlane.xlu0 %1631
        %v1633 = vmul.f32 %v1611, %v1576
        %v1634 = vmul.f32 %v1614, %v1576
        %v1635 = vmul.f32 %v1619, %v1576
        %v1636 = vmul.f32 %v1624, %v1576
        %v1637 = vmul.f32 %v1627, %v1576
        %v1638 = vmul.f32 %v1632, %v1576
        %v1639 = vadd.f32 %v1633, 1e-06
        %v1640 = vadd.f32 %v1634, 1e-06
        %v1641 = vadd.f32 %v1635, 1e-06
        %v1642 = vadd.f32 %v1636, 1e-06
        %v1643 = vadd.f32 %v1637, 1e-06
        %v1644 = vadd.f32 %v1638, 1e-06
        %v1645 = vrsqrt.pop %v1639
        %v1646 = vrsqrt.pop %v1640
        %v1647 = vrsqrt.pop %v1641
        %v1648 = vrsqrt.pop %v1642
        %v1649 = vrsqrt.pop %v1643
        %v1650 = vrsqrt.pop %v1644
        %v1651 = vmul.f32 %v1583, %v1645
        %v1652 = vmul.f32 %v1584, %v1645
        %v1653 = vmul.f32 %v1585, %v1646
        %v1654 = vmul.f32 %v1586, %v1646
        %v1655 = vmul.f32 %v1587, %v1647
        %v1656 = vmul.f32 %v1588, %v1647
        %v1657 = vmul.f32 %v1589, %v1648
        %v1658 = vmul.f32 %v1590, %v1648
        %v1659 = vmul.f32 %v1591, %v1649
        %v1660 = vmul.f32 %v1592, %v1649
        %v1661 = vmul.f32 %v1593, %v1650
        %v1662 = vmul.f32 %v1594, %v1650
        %v1663 = vld [vmem:[%s672] sm:$0x3]
        %v1665 = vlaneseq
        %v1666 = vshrl.u32 %v1665, 7
        %v1667 = vsub.s32 0, %v1666
        %v1668 = vrot.slane %v1663, %v1667
        %v1669 = vlaneseq
        %v1670 = vshrl.u32 %v1669, 7
        %v1671 = vsub.s32 1, %v1670
        %v1672 = vrot.slane %v1663, %v1671
        %v1675 = vmul.f32 %v1651, %v1668
        %v1676 = vmul.f32 %v1652, %v1672
        %v1677 = vmul.f32 %v1653, %v1668
        %v1678 = vmul.f32 %v1654, %v1672
        %v1679 = vmul.f32 %v1655, %v1668
        %v1680 = vmul.f32 %v1656, %v1672
        %v1681 = vmul.f32 %v1657, %v1668
        %v1682 = vmul.f32 %v1658, %v1672
        %v1683 = vmul.f32 %v1659, %v1668
        %v1684 = vmul.f32 %v1660, %v1672
        %v1685 = vmul.f32 %v1661, %v1668
        %v1686 = vmul.f32 %v1662, %v1672
        %v1687 = vld [vmem:[%s681] sm:$0x3]
        %v1689 = vlaneseq
        %v1690 = vshrl.u32 %v1689, 7
        %v1691 = vsub.s32 0, %v1690
        %v1692 = vrot.slane %v1687, %v1691
        %v1693 = vlaneseq
        %v1694 = vshrl.u32 %v1693, 7
        %v1695 = vsub.s32 1, %v1694
        %v1696 = vrot.slane %v1687, %v1695
        %v1699 = vadd.f32 %v1675, %v1692
        %v1700 = vadd.f32 %v1676, %v1696
        %v1701 = vadd.f32 %v1677, %v1692
        %v1702 = vadd.f32 %v1678, %v1696
        %v1703 = vadd.f32 %v1679, %v1692
        %v1704 = vadd.f32 %v1680, %v1696
        %v1705 = vadd.f32 %v1681, %v1692
        %v1706 = vadd.f32 %v1682, %v1696
        %v1707 = vadd.f32 %v1683, %v1692
        %v1708 = vadd.f32 %v1684, %v1696
        %v1709 = vadd.f32 %v1685, %v1692
        %v1710 = vadd.f32 %v1686, %v1696
        %v1723 = vrot.slane %v1699, 5
        %v1724 = vrot.slane %v1701, 5
        %v1725 = vsel %vm1403, %v1723, %v1724
        %v1726 = vrot.slane %v1700, 5
        %v1727 = vrot.slane %v1702, 5
        %v1728 = vsel %vm1403, %v1726, %v1727
        %v1729 = vrot.slane %v1703, 5
        %v1730 = vsel %vm1403, %v1724, %v1729
        %v1731 = vrot.slane %v1704, 5
        %v1732 = vsel %vm1403, %v1727, %v1731
        %v1733 = vrot.slane %v1705, 5
        %v1734 = vrot.slane %v1707, 5
        %v1735 = vsel %vm1403, %v1733, %v1734
        %v1736 = vrot.slane %v1706, 5
        %v1737 = vrot.slane %v1708, 5
        %v1738 = vsel %vm1403, %v1736, %v1737
        %v1739 = vrot.slane %v1709, 5
        %v1740 = vsel %vm1403, %v1734, %v1739
        %v1741 = vrot.slane %v1710, 5
        %v1742 = vsel %vm1403, %v1737, %v1741
        %v1751 = vpack.c.bf16 %v1730, %v1725
        %v1752 = vpack.c.bf16 %v1732, %v1728
        %v1753 = vpack.c.bf16 %v1740, %v1735
        %v1754 = vpack.c.bf16 %v1742, %v1738
        %v1755 = vld [vmem:[%s690] sm:$0xff]
        %v1756 = vld [vmem:[%s690 + $0x8] sm:$0xff]
        %v1757 = vld [vmem:[%s690 + $0x10] sm:$0xff]
        %v1758 = vld [vmem:[%s690 + $0x18] sm:$0xff]
        %v1759 = vld [vmem:[%s690 + $0x20] sm:$0xff]
        %v1760 = vld [vmem:[%s690 + $0x28] sm:$0xff]
        %v1761 = vld [vmem:[%s690 + $0x30] sm:$0xff]
        %v1762 = vld [vmem:[%s690 + $0x38] sm:$0xff]
        %v1763 = vld [vmem:[%s690 + $0x40] sm:$0xff]
        %v1764 = vld [vmem:[%s690 + $0x48] sm:$0xff]
        %v1765 = vld [vmem:[%s690 + $0x50] sm:$0xff]
        %v1766 = vld [vmem:[%s690 + $0x58] sm:$0xff]
        %v1767 = vld [vmem:[%s690 + $0x60] sm:$0xff]
        %v1768 = vld [vmem:[%s690 + $0x68] sm:$0xff]
        %v1769 = vld [vmem:[%s690 + $0x70] sm:$0xff]
        %v1770 = vld [vmem:[%s690 + $0x78] sm:$0xff]
        %v1771 = vld [vmem:[%s690 + $0x80] sm:$0xff]
        %v1772 = vld [vmem:[%s690 + $0x88] sm:$0xff]
        %v1773 = vld [vmem:[%s690 + $0x90] sm:$0xff]
        %v1774 = vld [vmem:[%s690 + $0x98] sm:$0xff]
        %v1775 = vld [vmem:[%s690 + $0xa0] sm:$0xff]
        %v1776 = vld [vmem:[%s690 + $0xa8] sm:$0xff]
        %v1777 = vld [vmem:[%s690 + $0xb0] sm:$0xff]
        %v1778 = vld [vmem:[%s690 + $0xb8] sm:$0xff]
        %v1779 = vld [vmem:[%s690 + $0xc0] sm:$0xff]
        %v1780 = vld [vmem:[%s690 + $0xc8] sm:$0xff]
        %v1781 = vld [vmem:[%s690 + $0xd0] sm:$0xff]
        %v1782 = vld [vmem:[%s690 + $0xd8] sm:$0xff]
        %v1783 = vld [vmem:[%s690 + $0xe0] sm:$0xff]
        %v1784 = vld [vmem:[%s690 + $0xe8] sm:$0xff]
        %v1785 = vld [vmem:[%s690 + $0xf0] sm:$0xff]
        %v1786 = vld [vmem:[%s690 + $0xf8] sm:$0xff]
        %v1787 = vld [vmem:[%s690 + $0x100] sm:$0xff]
        %v1788 = vld [vmem:[%s690 + $0x108] sm:$0xff]
        %v1789 = vld [vmem:[%s690 + $0x110] sm:$0xff]
        %v1790 = vld [vmem:[%s690 + $0x118] sm:$0xff]
        %v1791 = vld [vmem:[%s690 + $0x120] sm:$0xff]
        %v1792 = vld [vmem:[%s690 + $0x128] sm:$0xff]
        %v1793 = vld [vmem:[%s690 + $0x130] sm:$0xff]
        %v1794 = vld [vmem:[%s690 + $0x138] sm:$0xff]
        %v1795 = vld [vmem:[%s690 + $0x140] sm:$0xff]
        %v1796 = vld [vmem:[%s690 + $0x148] sm:$0xff]
        %v1797 = vld [vmem:[%s690 + $0x150] sm:$0xff]
        %v1798 = vld [vmem:[%s690 + $0x158] sm:$0xff]
        %v1799 = vld [vmem:[%s690 + $0x160] sm:$0xff]
        %v1800 = vld [vmem:[%s690 + $0x168] sm:$0xff]
        %v1801 = vld [vmem:[%s690 + $0x170] sm:$0xff]
        %v1802 = vld [vmem:[%s690 + $0x178] sm:$0xff]
        %v1803 = vld [vmem:[%s690 + $0x180] sm:$0xff]
        %v1804 = vld [vmem:[%s690 + $0x188] sm:$0xff]
        %v1805 = vld [vmem:[%s690 + $0x190] sm:$0xff]
        %v1806 = vld [vmem:[%s690 + $0x198] sm:$0xff]
        %v1807 = vld [vmem:[%s690 + $0x1a0] sm:$0xff]
        %v1808 = vld [vmem:[%s690 + $0x1a8] sm:$0xff]
        %v1809 = vld [vmem:[%s690 + $0x1b0] sm:$0xff]
        %v1810 = vld [vmem:[%s690 + $0x1b8] sm:$0xff]
        %v1811 = vld [vmem:[%s690 + $0x1c0] sm:$0xff]
        %v1812 = vld [vmem:[%s690 + $0x1c8] sm:$0xff]
        %v1813 = vld [vmem:[%s690 + $0x1d0] sm:$0xff]
        %v1814 = vld [vmem:[%s690 + $0x1d8] sm:$0xff]
        %v1815 = vld [vmem:[%s690 + $0x1e0] sm:$0xff]
        %v1816 = vld [vmem:[%s690 + $0x1e8] sm:$0xff]
        %v1817 = vld [vmem:[%s690 + $0x1f0] sm:$0xff]
        %v1818 = vld [vmem:[%s690 + $0x1f8] sm:$0xff]
        %v1819 = vld [vmem:[%s690 + $0x200] sm:$0xff]
        %v1820 = vld [vmem:[%s690 + $0x208] sm:$0xff]
        %v1821 = vld [vmem:[%s690 + $0x210] sm:$0xff]
        %v1822 = vld [vmem:[%s690 + $0x218] sm:$0xff]
        %v1823 = vld [vmem:[%s690 + $0x220] sm:$0xff]
        %v1824 = vld [vmem:[%s690 + $0x228] sm:$0xff]
        %v1825 = vld [vmem:[%s690 + $0x230] sm:$0xff]
        %v1826 = vld [vmem:[%s690 + $0x238] sm:$0xff]
        %v1827 = vld [vmem:[%s690 + $0x240] sm:$0xff]
        %v1828 = vld [vmem:[%s690 + $0x248] sm:$0xff]
        %v1829 = vld [vmem:[%s690 + $0x250] sm:$0xff]
        %v1830 = vld [vmem:[%s690 + $0x258] sm:$0xff]
        %v1831 = vld [vmem:[%s690 + $0x260] sm:$0xff]
        %v1832 = vld [vmem:[%s690 + $0x268] sm:$0xff]
        %v1833 = vld [vmem:[%s690 + $0x270] sm:$0xff]
        %v1834 = vld [vmem:[%s690 + $0x278] sm:$0xff]
        %v1835 = vld [vmem:[%s690 + $0x280] sm:$0xff]
        %v1836 = vld [vmem:[%s690 + $0x288] sm:$0xff]
        %v1837 = vld [vmem:[%s690 + $0x290] sm:$0xff]
        %v1838 = vld [vmem:[%s690 + $0x298] sm:$0xff]
        %v1839 = vld [vmem:[%s690 + $0x2a0] sm:$0xff]
        %v1840 = vld [vmem:[%s690 + $0x2a8] sm:$0xff]
        %v1841 = vld [vmem:[%s690 + $0x2b0] sm:$0xff]
        %v1842 = vld [vmem:[%s690 + $0x2b8] sm:$0xff]
        %v1843 = vld [vmem:[%s690 + $0x2c0] sm:$0xff]
        %v1844 = vld [vmem:[%s690 + $0x2c8] sm:$0xff]
        %v1845 = vld [vmem:[%s690 + $0x2d0] sm:$0xff]
        %v1846 = vld [vmem:[%s690 + $0x2d8] sm:$0xff]
        %v1847 = vld [vmem:[%s690 + $0x2e0] sm:$0xff]
        %v1848 = vld [vmem:[%s690 + $0x2e8] sm:$0xff]
        %v1849 = vld [vmem:[%s690 + $0x2f0] sm:$0xff]
        %v1850 = vld [vmem:[%s690 + $0x2f8] sm:$0xff]
        %v1851 = vld [vmem:[%s699] sm:$0x3f]
        %v1853 = vlaneseq
        %v1854 = vshrl.u32 %v1853, 7
        %v1855 = vsub.s32 0, %v1854
        %v1856 = vrot.slane %v1851, %v1855
        %v1857 = vlaneseq
        %v1858 = vshrl.u32 %v1857, 7
        %v1859 = vsub.s32 1, %v1858
        %v1860 = vrot.slane %v1851, %v1859
        %v1861 = vlaneseq
        %v1862 = vshrl.u32 %v1861, 7
        %v1863 = vsub.s32 2, %v1862
        %v1864 = vrot.slane %v1851, %v1863
        %v1865 = vlaneseq
        %v1866 = vshrl.u32 %v1865, 7
        %v1867 = vsub.s32 3, %v1866
        %v1868 = vrot.slane %v1851, %v1867
        %v1869 = vlaneseq
        %v1870 = vshrl.u32 %v1869, 7
        %v1871 = vsub.s32 4, %v1870
        %v1872 = vrot.slane %v1851, %v1871
        %v1873 = vlaneseq
        %v1874 = vshrl.u32 %v1873, 7
        %v1875 = vsub.s32 5, %v1874
        %v1876 = vrot.slane %v1851, %v1875
        %v1979 = vunpack.c.l.b16 %v1755
        %v1980 = vunpack.c.h.b16 %v1755
        %v1981 = vunpack.c.l.b16 %v1756
        %v1982 = vunpack.c.h.b16 %v1756
        %v1983 = vunpack.c.l.b16 %v1757
        %v1984 = vunpack.c.h.b16 %v1757
        %v1985 = vunpack.c.l.b16 %v1758
        %v1986 = vunpack.c.h.b16 %v1758
        %v1987 = vunpack.c.l.b16 %v1759
        %v1988 = vunpack.c.h.b16 %v1759
        %v1989 = vunpack.c.l.b16 %v1760
        %v1990 = vunpack.c.h.b16 %v1760
        %v1991 = vunpack.c.l.b16 %v1761
        %v1992 = vunpack.c.h.b16 %v1761
        %v1993 = vunpack.c.l.b16 %v1762
        %v1994 = vunpack.c.h.b16 %v1762
        %v1995 = vunpack.c.l.b16 %v1763
        %v1996 = vunpack.c.h.b16 %v1763
        %v1997 = vunpack.c.l.b16 %v1764
        %v1998 = vunpack.c.h.b16 %v1764
        %v1999 = vunpack.c.l.b16 %v1765
        %v2000 = vunpack.c.h.b16 %v1765
        %v2001 = vunpack.c.l.b16 %v1766
        %v2002 = vunpack.c.h.b16 %v1766
        %v2003 = vunpack.c.l.b16 %v1767
        %v2004 = vunpack.c.h.b16 %v1767
        %v2005 = vunpack.c.l.b16 %v1768
        %v2006 = vunpack.c.h.b16 %v1768
        %v2007 = vunpack.c.l.b16 %v1769
        %v2008 = vunpack.c.h.b16 %v1769
        %v2009 = vunpack.c.l.b16 %v1770
        %v2010 = vunpack.c.h.b16 %v1770
        %v2011 = vunpack.c.l.b16 %v1771
        %v2012 = vunpack.c.h.b16 %v1771
        %v2013 = vunpack.c.l.b16 %v1772
        %v2014 = vunpack.c.h.b16 %v1772
        %v2015 = vunpack.c.l.b16 %v1773
        %v2016 = vunpack.c.h.b16 %v1773
        %v2017 = vunpack.c.l.b16 %v1774
        %v2018 = vunpack.c.h.b16 %v1774
        %v2019 = vunpack.c.l.b16 %v1775
        %v2020 = vunpack.c.h.b16 %v1775
        %v2021 = vunpack.c.l.b16 %v1776
        %v2022 = vunpack.c.h.b16 %v1776
        %v2023 = vunpack.c.l.b16 %v1777
        %v2024 = vunpack.c.h.b16 %v1777
        %v2025 = vunpack.c.l.b16 %v1778
        %v2026 = vunpack.c.h.b16 %v1778
        %v2027 = vunpack.c.l.b16 %v1779
        %v2028 = vunpack.c.h.b16 %v1779
        %v2029 = vunpack.c.l.b16 %v1780
        %v2030 = vunpack.c.h.b16 %v1780
        %v2031 = vunpack.c.l.b16 %v1781
        %v2032 = vunpack.c.h.b16 %v1781
        %v2033 = vunpack.c.l.b16 %v1782
        %v2034 = vunpack.c.h.b16 %v1782
        %v2035 = vunpack.c.l.b16 %v1783
        %v2036 = vunpack.c.h.b16 %v1783
        %v2037 = vunpack.c.l.b16 %v1784
        %v2038 = vunpack.c.h.b16 %v1784
        %v2039 = vunpack.c.l.b16 %v1785
        %v2040 = vunpack.c.h.b16 %v1785
        %v2041 = vunpack.c.l.b16 %v1786
        %v2042 = vunpack.c.h.b16 %v1786
        %v2043 = vunpack.c.l.b16 %v1787
        %v2044 = vunpack.c.h.b16 %v1787
        %v2045 = vunpack.c.l.b16 %v1788
        %v2046 = vunpack.c.h.b16 %v1788
        %v2047 = vunpack.c.l.b16 %v1789
        %v2048 = vunpack.c.h.b16 %v1789
        %v2049 = vunpack.c.l.b16 %v1790
        %v2050 = vunpack.c.h.b16 %v1790
        %v2051 = vunpack.c.l.b16 %v1791
        %v2052 = vunpack.c.h.b16 %v1791
        %v2053 = vunpack.c.l.b16 %v1792
        %v2054 = vunpack.c.h.b16 %v1792
        %v2055 = vunpack.c.l.b16 %v1793
        %v2056 = vunpack.c.h.b16 %v1793
        %v2057 = vunpack.c.l.b16 %v1794
        %v2058 = vunpack.c.h.b16 %v1794
        %v2059 = vunpack.c.l.b16 %v1795
        %v2060 = vunpack.c.h.b16 %v1795
        %v2061 = vunpack.c.l.b16 %v1796
        %v2062 = vunpack.c.h.b16 %v1796
        %v2063 = vunpack.c.l.b16 %v1797
        %v2064 = vunpack.c.h.b16 %v1797
        %v2065 = vunpack.c.l.b16 %v1798
        %v2066 = vunpack.c.h.b16 %v1798
        %v2067 = vunpack.c.l.b16 %v1799
        %v2068 = vunpack.c.h.b16 %v1799
        %v2069 = vunpack.c.l.b16 %v1800
        %v2070 = vunpack.c.h.b16 %v1800
        %v2071 = vunpack.c.l.b16 %v1801
        %v2072 = vunpack.c.h.b16 %v1801
        %v2073 = vunpack.c.l.b16 %v1802
        %v2074 = vunpack.c.h.b16 %v1802
        %v2075 = vunpack.c.l.b16 %v1803
        %v2076 = vunpack.c.h.b16 %v1803
        %v2077 = vunpack.c.l.b16 %v1804
        %v2078 = vunpack.c.h.b16 %v1804
        %v2079 = vunpack.c.l.b16 %v1805
        %v2080 = vunpack.c.h.b16 %v1805
        %v2081 = vunpack.c.l.b16 %v1806
        %v2082 = vunpack.c.h.b16 %v1806
        %v2083 = vunpack.c.l.b16 %v1807
        %v2084 = vunpack.c.h.b16 %v1807
        %v2085 = vunpack.c.l.b16 %v1808
        %v2086 = vunpack.c.h.b16 %v1808
        %v2087 = vunpack.c.l.b16 %v1809
        %v2088 = vunpack.c.h.b16 %v1809
        %v2089 = vunpack.c.l.b16 %v1810
        %v2090 = vunpack.c.h.b16 %v1810
        %v2091 = vunpack.c.l.b16 %v1811
        %v2092 = vunpack.c.h.b16 %v1811
        %v2093 = vunpack.c.l.b16 %v1812
        %v2094 = vunpack.c.h.b16 %v1812
        %v2095 = vunpack.c.l.b16 %v1813
        %v2096 = vunpack.c.h.b16 %v1813
        %v2097 = vunpack.c.l.b16 %v1814
        %v2098 = vunpack.c.h.b16 %v1814
        %v2099 = vunpack.c.l.b16 %v1815
        %v2100 = vunpack.c.h.b16 %v1815
        %v2101 = vunpack.c.l.b16 %v1816
        %v2102 = vunpack.c.h.b16 %v1816
        %v2103 = vunpack.c.l.b16 %v1817
        %v2104 = vunpack.c.h.b16 %v1817
        %v2105 = vunpack.c.l.b16 %v1818
        %v2106 = vunpack.c.h.b16 %v1818
        %v2107 = vunpack.c.l.b16 %v1819
        %v2108 = vunpack.c.h.b16 %v1819
        %v2109 = vunpack.c.l.b16 %v1820
        %v2110 = vunpack.c.h.b16 %v1820
        %v2111 = vunpack.c.l.b16 %v1821
        %v2112 = vunpack.c.h.b16 %v1821
        %v2113 = vunpack.c.l.b16 %v1822
        %v2114 = vunpack.c.h.b16 %v1822
        %v2115 = vunpack.c.l.b16 %v1823
        %v2116 = vunpack.c.h.b16 %v1823
        %v2117 = vunpack.c.l.b16 %v1824
        %v2118 = vunpack.c.h.b16 %v1824
        %v2119 = vunpack.c.l.b16 %v1825
        %v2120 = vunpack.c.h.b16 %v1825
        %v2121 = vunpack.c.l.b16 %v1826
        %v2122 = vunpack.c.h.b16 %v1826
        %v2123 = vunpack.c.l.b16 %v1827
        %v2124 = vunpack.c.h.b16 %v1827
        %v2125 = vunpack.c.l.b16 %v1828
        %v2126 = vunpack.c.h.b16 %v1828
        %v2127 = vunpack.c.l.b16 %v1829
        %v2128 = vunpack.c.h.b16 %v1829
        %v2129 = vunpack.c.l.b16 %v1830
        %v2130 = vunpack.c.h.b16 %v1830
        %v2131 = vunpack.c.l.b16 %v1831
        %v2132 = vunpack.c.h.b16 %v1831
        %v2133 = vunpack.c.l.b16 %v1832
        %v2134 = vunpack.c.h.b16 %v1832
        %v2135 = vunpack.c.l.b16 %v1833
        %v2136 = vunpack.c.h.b16 %v1833
        %v2137 = vunpack.c.l.b16 %v1834
        %v2138 = vunpack.c.h.b16 %v1834
        %v2139 = vunpack.c.l.b16 %v1835
        %v2140 = vunpack.c.h.b16 %v1835
        %v2141 = vunpack.c.l.b16 %v1836
        %v2142 = vunpack.c.h.b16 %v1836
        %v2143 = vunpack.c.l.b16 %v1837
        %v2144 = vunpack.c.h.b16 %v1837
        %v2145 = vunpack.c.l.b16 %v1838
        %v2146 = vunpack.c.h.b16 %v1838
        %v2147 = vunpack.c.l.b16 %v1839
        %v2148 = vunpack.c.h.b16 %v1839
        %v2149 = vunpack.c.l.b16 %v1840
        %v2150 = vunpack.c.h.b16 %v1840
        %v2151 = vunpack.c.l.b16 %v1841
        %v2152 = vunpack.c.h.b16 %v1841
        %v2153 = vunpack.c.l.b16 %v1842
        %v2154 = vunpack.c.h.b16 %v1842
        %v2155 = vunpack.c.l.b16 %v1843
        %v2156 = vunpack.c.h.b16 %v1843
        %v2157 = vunpack.c.l.b16 %v1844
        %v2158 = vunpack.c.h.b16 %v1844
        %v2159 = vunpack.c.l.b16 %v1845
        %v2160 = vunpack.c.h.b16 %v1845
        %v2161 = vunpack.c.l.b16 %v1846
        %v2162 = vunpack.c.h.b16 %v1846
        %v2163 = vunpack.c.l.b16 %v1847
        %v2164 = vunpack.c.h.b16 %v1847
        %v2165 = vunpack.c.l.b16 %v1848
        %v2166 = vunpack.c.h.b16 %v1848
        %v2167 = vunpack.c.l.b16 %v1849
        %v2168 = vunpack.c.h.b16 %v1849
        %v2169 = vunpack.c.l.b16 %v1850
        %v2170 = vunpack.c.h.b16 %v1850
        %v2171 = vpack.c.b16 %v1985, %v1979
        %v2172 = vpack.c.b16 %v1986, %v1980
        %v2173 = vpack.c.b16 %v1987, %v1981
        %v2174 = vpack.c.b16 %v1988, %v1982
        %v2175 = vpack.c.b16 %v1989, %v1983
        %v2176 = vpack.c.b16 %v1990, %v1984
        %v2177 = vpack.c.b16 %v1997, %v1991
        %v2178 = vpack.c.b16 %v1998, %v1992
        %v2179 = vpack.c.b16 %v1999, %v1993
        %v2180 = vpack.c.b16 %v2000, %v1994
        %v2181 = vpack.c.b16 %v2001, %v1995
        %v2182 = vpack.c.b16 %v2002, %v1996
        %v2183 = vpack.c.b16 %v2009, %v2003
        %v2184 = vpack.c.b16 %v2010, %v2004
        %v2185 = vpack.c.b16 %v2011, %v2005
        %v2186 = vpack.c.b16 %v2012, %v2006
        %v2187 = vpack.c.b16 %v2013, %v2007
        %v2188 = vpack.c.b16 %v2014, %v2008
        %v2189 = vpack.c.b16 %v2021, %v2015
        %v2190 = vpack.c.b16 %v2022, %v2016
        %v2191 = vpack.c.b16 %v2023, %v2017
        %v2192 = vpack.c.b16 %v2024, %v2018
        %v2193 = vpack.c.b16 %v2025, %v2019
        %v2194 = vpack.c.b16 %v2026, %v2020
        %v2195 = vpack.c.b16 %v2033, %v2027
        %v2196 = vpack.c.b16 %v2034, %v2028
        %v2197 = vpack.c.b16 %v2035, %v2029
        %v2198 = vpack.c.b16 %v2036, %v2030
        %v2199 = vpack.c.b16 %v2037, %v2031
        %v2200 = vpack.c.b16 %v2038, %v2032
        %v2201 = vpack.c.b16 %v2045, %v2039
        %v2202 = vpack.c.b16 %v2046, %v2040
        %v2203 = vpack.c.b16 %v2047, %v2041
        %v2204 = vpack.c.b16 %v2048, %v2042
        %v2205 = vpack.c.b16 %v2049, %v2043
        %v2206 = vpack.c.b16 %v2050, %v2044
        %v2207 = vpack.c.b16 %v2057, %v2051
        %v2208 = vpack.c.b16 %v2058, %v2052
        %v2209 = vpack.c.b16 %v2059, %v2053
        %v2210 = vpack.c.b16 %v2060, %v2054
        %v2211 = vpack.c.b16 %v2061, %v2055
        %v2212 = vpack.c.b16 %v2062, %v2056
        %v2213 = vpack.c.b16 %v2069, %v2063
        %v2214 = vpack.c.b16 %v2070, %v2064
        %v2215 = vpack.c.b16 %v2071, %v2065
        %v2216 = vpack.c.b16 %v2072, %v2066
        %v2217 = vpack.c.b16 %v2073, %v2067
        %v2218 = vpack.c.b16 %v2074, %v2068
        %v2219 = vpack.c.b16 %v2081, %v2075
        %v2220 = vpack.c.b16 %v2082, %v2076
        %v2221 = vpack.c.b16 %v2083, %v2077
        %v2222 = vpack.c.b16 %v2084, %v2078
        %v2223 = vpack.c.b16 %v2085, %v2079
        %v2224 = vpack.c.b16 %v2086, %v2080
        %v2225 = vpack.c.b16 %v2093, %v2087
        %v2226 = vpack.c.b16 %v2094, %v2088
        %v2227 = vpack.c.b16 %v2095, %v2089
        %v2228 = vpack.c.b16 %v2096, %v2090
        %v2229 = vpack.c.b16 %v2097, %v2091
        %v2230 = vpack.c.b16 %v2098, %v2092
        %v2231 = vpack.c.b16 %v2105, %v2099
        %v2232 = vpack.c.b16 %v2106, %v2100
        %v2233 = vpack.c.b16 %v2107, %v2101
        %v2234 = vpack.c.b16 %v2108, %v2102
        %v2235 = vpack.c.b16 %v2109, %v2103
        %v2236 = vpack.c.b16 %v2110, %v2104
        %v2237 = vpack.c.b16 %v2117, %v2111
        %v2238 = vpack.c.b16 %v2118, %v2112
        %v2239 = vpack.c.b16 %v2119, %v2113
        %v2240 = vpack.c.b16 %v2120, %v2114
        %v2241 = vpack.c.b16 %v2121, %v2115
        %v2242 = vpack.c.b16 %v2122, %v2116
        %v2243 = vpack.c.b16 %v2129, %v2123
        %v2244 = vpack.c.b16 %v2130, %v2124
        %v2245 = vpack.c.b16 %v2131, %v2125
        %v2246 = vpack.c.b16 %v2132, %v2126
        %v2247 = vpack.c.b16 %v2133, %v2127
        %v2248 = vpack.c.b16 %v2134, %v2128
        %v2249 = vpack.c.b16 %v2141, %v2135
        %v2250 = vpack.c.b16 %v2142, %v2136
        %v2251 = vpack.c.b16 %v2143, %v2137
        %v2252 = vpack.c.b16 %v2144, %v2138
        %v2253 = vpack.c.b16 %v2145, %v2139
        %v2254 = vpack.c.b16 %v2146, %v2140
        %v2255 = vpack.c.b16 %v2153, %v2147
        %v2256 = vpack.c.b16 %v2154, %v2148
        %v2257 = vpack.c.b16 %v2155, %v2149
        %v2258 = vpack.c.b16 %v2156, %v2150
        %v2259 = vpack.c.b16 %v2157, %v2151
        %v2260 = vpack.c.b16 %v2158, %v2152
        %v2261 = vpack.c.b16 %v2165, %v2159
        %v2262 = vpack.c.b16 %v2166, %v2160
        %v2263 = vpack.c.b16 %v2167, %v2161
        %v2264 = vpack.c.b16 %v2168, %v2162
        %v2265 = vpack.c.b16 %v2169, %v2163
        %v2266 = vpack.c.b16 %v2170, %v2164
        %2363 = vmatprep.subr.bf16.mxu0 %v2172
        %2364 = vmatpush1.bf16.msra.mxu0 %v2171
        %2365 = vmatprep.subr.bf16.mxu0 %v2178
        %2366 = vmatpush1.bf16.msra.mxu0 %v2177
        %2367 = vmatprep.subr.bf16.mxu0 %v2184
        %2368 = vmatpush1.bf16.msra.mxu0 %v2183
        %2369 = vmatprep.subr.bf16.mxu0 %v2190
        %2370 = vmatpush1.bf16.msra.mxu0 %v2189
        %2371 = vmatprep.subr.bf16.mxu0 %v2196
        %2372 = vmatpush1.bf16.msra.mxu0 %v2195
        %2373 = vmatprep.subr.bf16.mxu0 %v2202
        %2374 = vmatpush1.bf16.msra.mxu0 %v2201
        %2375 = vmatprep.subr.bf16.mxu0 %v2208
        %2376 = vmatpush1.bf16.msra.mxu0 %v2207
        %2377 = vmatprep.subr.bf16.mxu0 %v2214
        %2378 = vmatpush1.bf16.msra.mxu0 %v2213
        %2379 = vmatprep.subr.bf16.mxu0 %v2220
        %2380 = vmatpush1.bf16.msra.mxu0 %v2219
        %2381 = vmatprep.subr.bf16.mxu0 %v2226
        %2382 = vmatpush1.bf16.msra.mxu0 %v2225
        %2383 = vmatprep.subr.bf16.mxu0 %v2232
        %2384 = vmatpush1.bf16.msra.mxu0 %v2231
        %2385 = vmatprep.subr.bf16.mxu0 %v2238
        %2386 = vmatpush1.bf16.msra.mxu0 %v2237
        %2387 = vmatprep.subr.bf16.mxu0 %v2244
        %2388 = vmatpush1.bf16.msra.mxu0 %v2243
        %2389 = vmatprep.subr.bf16.mxu0 %v2250
        %2390 = vmatpush1.bf16.msra.mxu0 %v2249
        %2391 = vmatprep.subr.bf16.mxu0 %v2256
        %2392 = vmatpush1.bf16.msra.mxu0 %v2255
        %2393 = vmatprep.subr.bf16.mxu0 %v2262
        %2394 = vmatpush1.bf16.msra.mxu0 %v2261
        %2395 = vmatprep.mubr.bf16.mxu0 %v1752
        %2396 = vmatmul.mubr.bf16.gmra.mrb[0].mxu0 %v1751
        %v2397 = vpop.f32.mrb[0].mxu0
        %v2398 = vadd.f32 %v1856, %v2397
        %v2399 = vpop.f32.mrb[0].mxu0
        %v2400 = vadd.f32 %v1860, %v2399
        %v2401 = vpop.f32.mrb[0].mxu0
        %v2402 = vadd.f32 %v1856, %v2401
        %v2403 = vpop.f32.mrb[0].mxu0
        %v2404 = vadd.f32 %v1860, %v2403
        %2405 = vmatprep.mubr.bf16.mxu0 %v1754
        %2406 = vmatmul.mubr.bf16.gmra.mrb[0].mxu0 %v1753
        %v2407 = vpop.f32.mrb[0].mxu0
        %v2408 = vadd.f32 %v1856, %v2407
        %v2409 = vpop.f32.mrb[0].mxu0
        %v2410 = vadd.f32 %v1860, %v2409
        %v2411 = vpop.f32.mrb[0].mxu0
        %v2412 = vadd.f32 %v1856, %v2411
        %v2413 = vpop.f32.mrb[0].mxu0
        %v2414 = vadd.f32 %v1860, %v2413
        %2415 = vdwg.mxu0
        %2416 = vmatprep.subr.bf16.mxu0 %v2174
        %2417 = vmatpush1.bf16.msra.mxu0 %v2173
        %2418 = vmatprep.subr.bf16.mxu0 %v2180
        %2419 = vmatpush1.bf16.msra.mxu0 %v2179
        %2420 = vmatprep.subr.bf16.mxu0 %v2186
        %2421 = vmatpush1.bf16.msra.mxu0 %v2185
        %2422 = vmatprep.subr.bf16.mxu0 %v2192
        %2423 = vmatpush1.bf16.msra.mxu0 %v2191
        %2424 = vmatprep.subr.bf16.mxu0 %v2198
        %2425 = vmatpush1.bf16.msra.mxu0 %v2197
        %2426 = vmatprep.subr.bf16.mxu0 %v2204
        %2427 = vmatpush1.bf16.msra.mxu0 %v2203
        %2428 = vmatprep.subr.bf16.mxu0 %v2210
        %2429 = vmatpush1.bf16.msra.mxu0 %v2209
        %2430 = vmatprep.subr.bf16.mxu0 %v2216
        %2431 = vmatpush1.bf16.msra.mxu0 %v2215
        %2432 = vmatprep.subr.bf16.mxu0 %v2222
        %2433 = vmatpush1.bf16.msra.mxu0 %v2221
        %2434 = vmatprep.subr.bf16.mxu0 %v2228
        %2435 = vmatpush1.bf16.msra.mxu0 %v2227
        %2436 = vmatprep.subr.bf16.mxu0 %v2234
        %2437 = vmatpush1.bf16.msra.mxu0 %v2233
        %2438 = vmatprep.subr.bf16.mxu0 %v2240
        %2439 = vmatpush1.bf16.msra.mxu0 %v2239
        %2440 = vmatprep.subr.bf16.mxu0 %v2246
        %2441 = vmatpush1.bf16.msra.mxu0 %v2245
        %2442 = vmatprep.subr.bf16.mxu0 %v2252
        %2443 = vmatpush1.bf16.msra.mxu0 %v2251
        %2444 = vmatprep.subr.bf16.mxu0 %v2258
        %2445 = vmatpush1.bf16.msra.mxu0 %v2257
        %2446 = vmatprep.subr.bf16.mxu0 %v2264
        %2447 = vmatpush1.bf16.msra.mxu0 %v2263
        %2448 = vmatprep.mubr.bf16.mxu0 %v1752
        %2449 = vmatmul.mubr.bf16.gmra.mrb[0].mxu0 %v1751
        %v2450 = vpop.f32.mrb[0].mxu0
        %v2451 = vadd.f32 %v1864, %v2450
        %v2452 = vpop.f32.mrb[0].mxu0
        %v2453 = vadd.f32 %v1868, %v2452
        %v2454 = vpop.f32.mrb[0].mxu0
        %v2455 = vadd.f32 %v1864, %v2454
        %v2456 = vpop.f32.mrb[0].mxu0
        %v2457 = vadd.f32 %v1868, %v2456
        %2458 = vmatprep.mubr.bf16.mxu0 %v1754
        %2459 = vmatmul.mubr.bf16.gmra.mrb[0].mxu0 %v1753
        %v2460 = vpop.f32.mrb[0].mxu0
        %v2461 = vadd.f32 %v1864, %v2460
        %v2462 = vpop.f32.mrb[0].mxu0
        %v2463 = vadd.f32 %v1868, %v2462
        %v2464 = vpop.f32.mrb[0].mxu0
        %v2465 = vadd.f32 %v1864, %v2464
        %v2466 = vpop.f32.mrb[0].mxu0
        %v2467 = vadd.f32 %v1868, %v2466
        %2468 = vdwg.mxu0
        %2469 = vmatprep.subr.bf16.mxu0 %v2176
        %2470 = vmatpush1.bf16.msra.mxu0 %v2175
        %2471 = vmatprep.subr.bf16.mxu0 %v2182
        %2472 = vmatpush1.bf16.msra.mxu0 %v2181
        %2473 = vmatprep.subr.bf16.mxu0 %v2188
        %2474 = vmatpush1.bf16.msra.mxu0 %v2187
        %2475 = vmatprep.subr.bf16.mxu0 %v2194
        %2476 = vmatpush1.bf16.msra.mxu0 %v2193
        %2477 = vmatprep.subr.bf16.mxu0 %v2200
        %2478 = vmatpush1.bf16.msra.mxu0 %v2199
        %2479 = vmatprep.subr.bf16.mxu0 %v2206
        %2480 = vmatpush1.bf16.msra.mxu0 %v2205
        %2481 = vmatprep.subr.bf16.mxu0 %v2212
        %2482 = vmatpush1.bf16.msra.mxu0 %v2211
        %2483 = vmatprep.subr.bf16.mxu0 %v2218
        %2484 = vmatpush1.bf16.msra.mxu0 %v2217
        %2485 = vmatprep.subr.bf16.mxu0 %v2224
        %2486 = vmatpush1.bf16.msra.mxu0 %v2223
        %2487 = vmatprep.subr.bf16.mxu0 %v2230
        %2488 = vmatpush1.bf16.msra.mxu0 %v2229
        %2489 = vmatprep.subr.bf16.mxu0 %v2236
        %2490 = vmatpush1.bf16.msra.mxu0 %v2235
        %2491 = vmatprep.subr.bf16.mxu0 %v2242
        %2492 = vmatpush1.bf16.msra.mxu0 %v2241
        %2493 = vmatprep.subr.bf16.mxu0 %v2248
        %2494 = vmatpush1.bf16.msra.mxu0 %v2247
        %2495 = vmatprep.subr.bf16.mxu0 %v2254
        %2496 = vmatpush1.bf16.msra.mxu0 %v2253
        %2497 = vmatprep.subr.bf16.mxu0 %v2260
        %2498 = vmatpush1.bf16.msra.mxu0 %v2259
        %2499 = vmatprep.subr.bf16.mxu0 %v2266
        %2500 = vmatpush1.bf16.msra.mxu0 %v2265
        %2501 = vmatprep.mubr.bf16.mxu0 %v1752
        %2502 = vmatmul.mubr.bf16.gmra.mrb[0].mxu0 %v1751
        %v2503 = vpop.f32.mrb[0].mxu0
        %v2504 = vadd.f32 %v1872, %v2503
        %v2505 = vpop.f32.mrb[0].mxu0
        %v2506 = vadd.f32 %v1876, %v2505
        %v2507 = vpop.f32.mrb[0].mxu0
        %v2508 = vadd.f32 %v1872, %v2507
        %v2509 = vpop.f32.mrb[0].mxu0
        %v2510 = vadd.f32 %v1876, %v2509
        %2511 = vmatprep.mubr.bf16.mxu0 %v1754
        %2512 = vmatmul.mubr.bf16.gmra.mrb[0].mxu0 %v1753
        %v2513 = vpop.f32.mrb[0].mxu0
        %v2514 = vadd.f32 %v1872, %v2513
        %v2515 = vpop.f32.mrb[0].mxu0
        %v2516 = vadd.f32 %v1876, %v2515
        %v2517 = vpop.f32.mrb[0].mxu0
        %v2518 = vadd.f32 %v1872, %v2517
        %v2519 = vpop.f32.mrb[0].mxu0
        %v2520 = vadd.f32 %v1876, %v2519
        %2521 = vdwg.mxu0
        %v2522 = vmul.f32 %v2398, 0.5
        %v2523 = vmul.f32 %v2400, 0.5
        %v2524 = vmul.f32 %v2451, 0.5
        %v2525 = vmul.f32 %v2453, 0.5
        %v2526 = vmul.f32 %v2504, 0.5
        %v2527 = vmul.f32 %v2506, 0.5
        %v2528 = vmul.f32 %v2402, 0.5
        %v2529 = vmul.f32 %v2404, 0.5
        %v2530 = vmul.f32 %v2455, 0.5
        %v2531 = vmul.f32 %v2457, 0.5
        %v2532 = vmul.f32 %v2508, 0.5
        %v2533 = vmul.f32 %v2510, 0.5
        %v2534 = vmul.f32 %v2408, 0.5
        %v2535 = vmul.f32 %v2410, 0.5
        %v2536 = vmul.f32 %v2461, 0.5
        %v2537 = vmul.f32 %v2463, 0.5
        %v2538 = vmul.f32 %v2514, 0.5
        %v2539 = vmul.f32 %v2516, 0.5
        %v2540 = vmul.f32 %v2412, 0.5
        %v2541 = vmul.f32 %v2414, 0.5
        %v2542 = vmul.f32 %v2465, 0.5
        %v2543 = vmul.f32 %v2467, 0.5
        %v2544 = vmul.f32 %v2518, 0.5
        %v2545 = vmul.f32 %v2520, 0.5
        %v2546 = vmul.f32 %v2398, 0.044715
        %v2547 = vmul.f32 %v2400, 0.044715
        %v2548 = vmul.f32 %v2451, 0.044715
        %v2549 = vmul.f32 %v2453, 0.044715
        %v2550 = vmul.f32 %v2504, 0.044715
        %v2551 = vmul.f32 %v2506, 0.044715
        %v2552 = vmul.f32 %v2402, 0.044715
        %v2553 = vmul.f32 %v2404, 0.044715
        %v2554 = vmul.f32 %v2455, 0.044715
        %v2555 = vmul.f32 %v2457, 0.044715
        %v2556 = vmul.f32 %v2508, 0.044715
        %v2557 = vmul.f32 %v2510, 0.044715
        %v2558 = vmul.f32 %v2408, 0.044715
        %v2559 = vmul.f32 %v2410, 0.044715
        %v2560 = vmul.f32 %v2461, 0.044715
        %v2561 = vmul.f32 %v2463, 0.044715
        %v2562 = vmul.f32 %v2514, 0.044715
        %v2563 = vmul.f32 %v2516, 0.044715
        %v2564 = vmul.f32 %v2412, 0.044715
        %v2565 = vmul.f32 %v2414, 0.044715
        %v2566 = vmul.f32 %v2465, 0.044715
        %v2567 = vmul.f32 %v2467, 0.044715
        %v2568 = vmul.f32 %v2518, 0.044715
        %v2569 = vmul.f32 %v2520, 0.044715
        %v2570 = vmul.f32 %v2546, %v2398
        %v2571 = vmul.f32 %v2547, %v2400
        %v2572 = vmul.f32 %v2548, %v2451
        %v2573 = vmul.f32 %v2549, %v2453
        %v2574 = vmul.f32 %v2550, %v2504
        %v2575 = vmul.f32 %v2551, %v2506
        %v2576 = vmul.f32 %v2552, %v2402
        %v2577 = vmul.f32 %v2553, %v2404
        %v2578 = vmul.f32 %v2554, %v2455
        %v2579 = vmul.f32 %v2555, %v2457
        %v2580 = vmul.f32 %v2556, %v2508
        %v2581 = vmul.f32 %v2557, %v2510
        %v2582 = vmul.f32 %v2558, %v2408
        %v2583 = vmul.f32 %v2559, %v2410
        %v2584 = vmul.f32 %v2560, %v2461
        %v2585 = vmul.f32 %v2561, %v2463
        %v2586 = vmul.f32 %v2562, %v2514
        %v2587 = vmul.f32 %v2563, %v2516
        %v2588 = vmul.f32 %v2564, %v2412
        %v2589 = vmul.f32 %v2565, %v2414
        %v2590 = vmul.f32 %v2566, %v2465
        %v2591 = vmul.f32 %v2567, %v2467
        %v2592 = vmul.f32 %v2568, %v2518
        %v2593 = vmul.f32 %v2569, %v2520
        %v2594 = vmul.f32 %v2570, %v2398
        %v2595 = vmul.f32 %v2571, %v2400
        %v2596 = vmul.f32 %v2572, %v2451
        %v2597 = vmul.f32 %v2573, %v2453
        %v2598 = vmul.f32 %v2574, %v2504
        %v2599 = vmul.f32 %v2575, %v2506
        %v2600 = vmul.f32 %v2576, %v2402
        %v2601 = vmul.f32 %v2577, %v2404
        %v2602 = vmul.f32 %v2578, %v2455
        %v2603 = vmul.f32 %v2579, %v2457
        %v2604 = vmul.f32 %v2580, %v2508
        %v2605 = vmul.f32 %v2581, %v2510
        %v2606 = vmul.f32 %v2582, %v2408
        %v2607 = vmul.f32 %v2583, %v2410
        %v2608 = vmul.f32 %v2584, %v2461
        %v2609 = vmul.f32 %v2585, %v2463
        %v2610 = vmul.f32 %v2586, %v2514
        %v2611 = vmul.f32 %v2587, %v2516
        %v2612 = vmul.f32 %v2588, %v2412
        %v2613 = vmul.f32 %v2589, %v2414
        %v2614 = vmul.f32 %v2590, %v2465
        %v2615 = vmul.f32 %v2591, %v2467
        %v2616 = vmul.f32 %v2592, %v2518
        %v2617 = vmul.f32 %v2593, %v2520
        %v2618 = vadd.f32 %v2398, %v2594
        %v2619 = vadd.f32 %v2400, %v2595
        %v2620 = vadd.f32 %v2451, %v2596
        %v2621 = vadd.f32 %v2453, %v2597
        %v2622 = vadd.f32 %v2504, %v2598
        %v2623 = vadd.f32 %v2506, %v2599
        %v2624 = vadd.f32 %v2402, %v2600
        %v2625 = vadd.f32 %v2404, %v2601
        %v2626 = vadd.f32 %v2455, %v2602
        %v2627 = vadd.f32 %v2457, %v2603
        %v2628 = vadd.f32 %v2508, %v2604
        %v2629 = vadd.f32 %v2510, %v2605
        %v2630 = vadd.f32 %v2408, %v2606
        %v2631 = vadd.f32 %v2410, %v2607
        %v2632 = vadd.f32 %v2461, %v2608
        %v2633 = vadd.f32 %v2463, %v2609
        %v2634 = vadd.f32 %v2514, %v2610
        %v2635 = vadd.f32 %v2516, %v2611
        %v2636 = vadd.f32 %v2412, %v2612
        %v2637 = vadd.f32 %v2414, %v2613
        %v2638 = vadd.f32 %v2465, %v2614
        %v2639 = vadd.f32 %v2467, %v2615
        %v2640 = vadd.f32 %v2518, %v2616
        %v2641 = vadd.f32 %v2520, %v2617
        %v2642 = vmul.f32 %v2618, 0.7978846
        %v2643 = vmul.f32 %v2619, 0.7978846
        %v2644 = vmul.f32 %v2620, 0.7978846
        %v2645 = vmul.f32 %v2621, 0.7978846
        %v2646 = vmul.f32 %v2622, 0.7978846
        %v2647 = vmul.f32 %v2623, 0.7978846
        %v2648 = vmul.f32 %v2624, 0.7978846
        %v2649 = vmul.f32 %v2625, 0.7978846
        %v2650 = vmul.f32 %v2626, 0.7978846
        %v2651 = vmul.f32 %v2627, 0.7978846
        %v2652 = vmul.f32 %v2628, 0.7978846
        %v2653 = vmul.f32 %v2629, 0.7978846
        %v2654 = vmul.f32 %v2630, 0.7978846
        %v2655 = vmul.f32 %v2631, 0.7978846
        %v2656 = vmul.f32 %v2632, 0.7978846
        %v2657 = vmul.f32 %v2633, 0.7978846
        %v2658 = vmul.f32 %v2634, 0.7978846
        %v2659 = vmul.f32 %v2635, 0.7978846
        %v2660 = vmul.f32 %v2636, 0.7978846
        %v2661 = vmul.f32 %v2637, 0.7978846
        %v2662 = vmul.f32 %v2638, 0.7978846
        %v2663 = vmul.f32 %v2639, 0.7978846
        %v2664 = vmul.f32 %v2640, 0.7978846
        %v2665 = vmul.f32 %v2641, 0.7978846
        %v2666 = vtanh.pop %v2642
        %v2667 = vtanh.pop %v2643
        %v2668 = vtanh.pop %v2644
        %v2669 = vtanh.pop %v2645
        %v2670 = vtanh.pop %v2646
        %v2671 = vtanh.pop %v2647
        %v2672 = vtanh.pop %v2648
        %v2673 = vtanh.pop %v2649
        %v2674 = vtanh.pop %v2650
        %v2675 = vtanh.pop %v2651
        %v2676 = vtanh.pop %v2652
        %v2677 = vtanh.pop %v2653
        %v2678 = vtanh.pop %v2654
        %v2679 = vtanh.pop %v2655
        %v2680 = vtanh.pop %v2656
        %v2681 = vtanh.pop %v2657
        %v2682 = vtanh.pop %v2658
        %v2683 = vtanh.pop %v2659
        %v2684 = vtanh.pop %v2660
        %v2685 = vtanh.pop %v2661
        %v2686 = vtanh.pop %v2662
        %v2687 = vtanh.pop %v2663
        %v2688 = vtanh.pop %v2664
        %v2689 = vtanh.pop %v2665
        %v2690 = vadd.f32 %v2666, 1.0
        %v2691 = vadd.f32 %v2667, 1.0
        %v2692 = vadd.f32 %v2668, 1.0
        %v2693 = vadd.f32 %v2669, 1.0
        %v2694 = vadd.f32 %v2670, 1.0
        %v2695 = vadd.f32 %v2671, 1.0
        %v2696 = vadd.f32 %v2672, 1.0
        %v2697 = vadd.f32 %v2673, 1.0
        %v2698 = vadd.f32 %v2674, 1.0
        %v2699 = vadd.f32 %v2675, 1.0
        %v2700 = vadd.f32 %v2676, 1.0
        %v2701 = vadd.f32 %v2677, 1.0
        %v2702 = vadd.f32 %v2678, 1.0
        %v2703 = vadd.f32 %v2679, 1.0
        %v2704 = vadd.f32 %v2680, 1.0
        %v2705 = vadd.f32 %v2681, 1.0
        %v2706 = vadd.f32 %v2682, 1.0
        %v2707 = vadd.f32 %v2683, 1.0
        %v2708 = vadd.f32 %v2684, 1.0
        %v2709 = vadd.f32 %v2685, 1.0
        %v2710 = vadd.f32 %v2686, 1.0
        %v2711 = vadd.f32 %v2687, 1.0
        %v2712 = vadd.f32 %v2688, 1.0
        %v2713 = vadd.f32 %v2689, 1.0
        %v2714 = vmul.f32 %v2522, %v2690
        %v2715 = vmul.f32 %v2523, %v2691
        %v2716 = vmul.f32 %v2524, %v2692
        %v2717 = vmul.f32 %v2525, %v2693
        %v2718 = vmul.f32 %v2526, %v2694
        %v2719 = vmul.f32 %v2527, %v2695
        %v2720 = vmul.f32 %v2528, %v2696
        %v2721 = vmul.f32 %v2529, %v2697
        %v2722 = vmul.f32 %v2530, %v2698
        %v2723 = vmul.f32 %v2531, %v2699
        %v2724 = vmul.f32 %v2532, %v2700
        %v2725 = vmul.f32 %v2533, %v2701
        %v2726 = vmul.f32 %v2534, %v2702
        %v2727 = vmul.f32 %v2535, %v2703
        %v2728 = vmul.f32 %v2536, %v2704
        %v2729 = vmul.f32 %v2537, %v2705
        %v2730 = vmul.f32 %v2538, %v2706
        %v2731 = vmul.f32 %v2539, %v2707
        %v2732 = vmul.f32 %v2540, %v2708
        %v2733 = vmul.f32 %v2541, %v2709
        %v2734 = vmul.f32 %v2542, %v2710
        %v2735 = vmul.f32 %v2543, %v2711
        %v2736 = vmul.f32 %v2544, %v2712
        %v2737 = vmul.f32 %v2545, %v2713
        %v2738 = vpack.c.bf16 %v2720, %v2714
        %v2739 = vpack.c.bf16 %v2721, %v2715
        %v2740 = vpack.c.bf16 %v2722, %v2716
        %v2741 = vpack.c.bf16 %v2723, %v2717
        %v2742 = vpack.c.bf16 %v2724, %v2718
        %v2743 = vpack.c.bf16 %v2725, %v2719
        %v2744 = vpack.c.bf16 %v2732, %v2726
        %v2745 = vpack.c.bf16 %v2733, %v2727
        %v2746 = vpack.c.bf16 %v2734, %v2728
        %v2747 = vpack.c.bf16 %v2735, %v2729
        %v2748 = vpack.c.bf16 %v2736, %v2730
        %v2749 = vpack.c.bf16 %v2737, %v2731
        %v2750 = vld [vmem:[%s708] sm:$0xff]
        %v2751 = vld [vmem:[%s708 + $0x8] sm:$0xff]
        %v2752 = vld [vmem:[%s708 + $0x10] sm:$0xff]
        %v2753 = vld [vmem:[%s708 + $0x18] sm:$0xff]
        %v2754 = vld [vmem:[%s708 + $0x20] sm:$0xff]
        %v2755 = vld [vmem:[%s708 + $0x28] sm:$0xff]
        %v2756 = vld [vmem:[%s708 + $0x30] sm:$0xff]
        %v2757 = vld [vmem:[%s708 + $0x38] sm:$0xff]
        %v2758 = vld [vmem:[%s708 + $0x40] sm:$0xff]
        %v2759 = vld [vmem:[%s708 + $0x48] sm:$0xff]
        %v2760 = vld [vmem:[%s708 + $0x50] sm:$0xff]
        %v2761 = vld [vmem:[%s708 + $0x58] sm:$0xff]
        %v2762 = vld [vmem:[%s708 + $0x60] sm:$0xff]
        %v2763 = vld [vmem:[%s708 + $0x68] sm:$0xff]
        %v2764 = vld [vmem:[%s708 + $0x70] sm:$0xff]
        %v2765 = vld [vmem:[%s708 + $0x78] sm:$0xff]
        %v2766 = vld [vmem:[%s708 + $0x80] sm:$0xff]
        %v2767 = vld [vmem:[%s708 + $0x88] sm:$0xff]
        %v2768 = vld [vmem:[%s708 + $0x90] sm:$0xff]
        %v2769 = vld [vmem:[%s708 + $0x98] sm:$0xff]
        %v2770 = vld [vmem:[%s708 + $0xa0] sm:$0xff]
        %v2771 = vld [vmem:[%s708 + $0xa8] sm:$0xff]
        %v2772 = vld [vmem:[%s708 + $0xb0] sm:$0xff]
        %v2773 = vld [vmem:[%s708 + $0xb8] sm:$0xff]
        %v2774 = vld [vmem:[%s708 + $0xc0] sm:$0xff]
        %v2775 = vld [vmem:[%s708 + $0xc8] sm:$0xff]
        %v2776 = vld [vmem:[%s708 + $0xd0] sm:$0xff]
        %v2777 = vld [vmem:[%s708 + $0xd8] sm:$0xff]
        %v2778 = vld [vmem:[%s708 + $0xe0] sm:$0xff]
        %v2779 = vld [vmem:[%s708 + $0xe8] sm:$0xff]
        %v2780 = vld [vmem:[%s708 + $0xf0] sm:$0xff]
        %v2781 = vld [vmem:[%s708 + $0xf8] sm:$0xff]
        %v2782 = vld [vmem:[%s708 + $0x100] sm:$0xff]
        %v2783 = vld [vmem:[%s708 + $0x108] sm:$0xff]
        %v2784 = vld [vmem:[%s708 + $0x110] sm:$0xff]
        %v2785 = vld [vmem:[%s708 + $0x118] sm:$0xff]
        %v2786 = vld [vmem:[%s708 + $0x120] sm:$0xff]
        %v2787 = vld [vmem:[%s708 + $0x128] sm:$0xff]
        %v2788 = vld [vmem:[%s708 + $0x130] sm:$0xff]
        %v2789 = vld [vmem:[%s708 + $0x138] sm:$0xff]
        %v2790 = vld [vmem:[%s708 + $0x140] sm:$0xff]
        %v2791 = vld [vmem:[%s708 + $0x148] sm:$0xff]
        %v2792 = vld [vmem:[%s708 + $0x150] sm:$0xff]
        %v2793 = vld [vmem:[%s708 + $0x158] sm:$0xff]
        %v2794 = vld [vmem:[%s708 + $0x160] sm:$0xff]
        %v2795 = vld [vmem:[%s708 + $0x168] sm:$0xff]
        %v2796 = vld [vmem:[%s708 + $0x170] sm:$0xff]
        %v2797 = vld [vmem:[%s708 + $0x178] sm:$0xff]
        %v2798 = vld [vmem:[%s708 + $0x180] sm:$0xff]
        %v2799 = vld [vmem:[%s708 + $0x188] sm:$0xff]
        %v2800 = vld [vmem:[%s708 + $0x190] sm:$0xff]
        %v2801 = vld [vmem:[%s708 + $0x198] sm:$0xff]
        %v2802 = vld [vmem:[%s708 + $0x1a0] sm:$0xff]
        %v2803 = vld [vmem:[%s708 + $0x1a8] sm:$0xff]
        %v2804 = vld [vmem:[%s708 + $0x1b0] sm:$0xff]
        %v2805 = vld [vmem:[%s708 + $0x1b8] sm:$0xff]
        %v2806 = vld [vmem:[%s708 + $0x1c0] sm:$0xff]
        %v2807 = vld [vmem:[%s708 + $0x1c8] sm:$0xff]
        %v2808 = vld [vmem:[%s708 + $0x1d0] sm:$0xff]
        %v2809 = vld [vmem:[%s708 + $0x1d8] sm:$0xff]
        %v2810 = vld [vmem:[%s708 + $0x1e0] sm:$0xff]
        %v2811 = vld [vmem:[%s708 + $0x1e8] sm:$0xff]
        %v2812 = vld [vmem:[%s708 + $0x1f0] sm:$0xff]
        %v2813 = vld [vmem:[%s708 + $0x1f8] sm:$0xff]
        %v2814 = vld [vmem:[%s708 + $0x200] sm:$0xff]
        %v2815 = vld [vmem:[%s708 + $0x208] sm:$0xff]
        %v2816 = vld [vmem:[%s708 + $0x210] sm:$0xff]
        %v2817 = vld [vmem:[%s708 + $0x218] sm:$0xff]
        %v2818 = vld [vmem:[%s708 + $0x220] sm:$0xff]
        %v2819 = vld [vmem:[%s708 + $0x228] sm:$0xff]
        %v2820 = vld [vmem:[%s708 + $0x230] sm:$0xff]
        %v2821 = vld [vmem:[%s708 + $0x238] sm:$0xff]
        %v2822 = vld [vmem:[%s708 + $0x240] sm:$0xff]
        %v2823 = vld [vmem:[%s708 + $0x248] sm:$0xff]
        %v2824 = vld [vmem:[%s708 + $0x250] sm:$0xff]
        %v2825 = vld [vmem:[%s708 + $0x258] sm:$0xff]
        %v2826 = vld [vmem:[%s708 + $0x260] sm:$0xff]
        %v2827 = vld [vmem:[%s708 + $0x268] sm:$0xff]
        %v2828 = vld [vmem:[%s708 + $0x270] sm:$0xff]
        %v2829 = vld [vmem:[%s708 + $0x278] sm:$0xff]
        %v2830 = vld [vmem:[%s708 + $0x280] sm:$0xff]
        %v2831 = vld [vmem:[%s708 + $0x288] sm:$0xff]
        %v2832 = vld [vmem:[%s708 + $0x290] sm:$0xff]
        %v2833 = vld [vmem:[%s708 + $0x298] sm:$0xff]
        %v2834 = vld [vmem:[%s708 + $0x2a0] sm:$0xff]
        %v2835 = vld [vmem:[%s708 + $0x2a8] sm:$0xff]
        %v2836 = vld [vmem:[%s708 + $0x2b0] sm:$0xff]
        %v2837 = vld [vmem:[%s708 + $0x2b8] sm:$0xff]
        %v2838 = vld [vmem:[%s708 + $0x2c0] sm:$0xff]
        %v2839 = vld [vmem:[%s708 + $0x2c8] sm:$0xff]
        %v2840 = vld [vmem:[%s708 + $0x2d0] sm:$0xff]
        %v2841 = vld [vmem:[%s708 + $0x2d8] sm:$0xff]
        %v2842 = vld [vmem:[%s708 + $0x2e0] sm:$0xff]
        %v2843 = vld [vmem:[%s708 + $0x2e8] sm:$0xff]
        %v2844 = vld [vmem:[%s708 + $0x2f0] sm:$0xff]
        %v2845 = vld [vmem:[%s708 + $0x2f8] sm:$0xff]
        %v2846 = vld [vmem:[%s717] sm:$0x3]
        %v2848 = vlaneseq
        %v2849 = vshrl.u32 %v2848, 7
        %v2850 = vsub.s32 0, %v2849
        %v2851 = vrot.slane %v2846, %v2850
        %v2852 = vlaneseq
        %v2853 = vshrl.u32 %v2852, 7
        %v2854 = vsub.s32 1, %v2853
        %v2855 = vrot.slane %v2846, %v2854
        %v2954 = vunpack.c.l.b16 %v2750
        %v2955 = vunpack.c.h.b16 %v2750
        %v2956 = vunpack.c.l.b16 %v2751
        %v2957 = vunpack.c.h.b16 %v2751
        %v2958 = vunpack.c.l.b16 %v2752
        %v2959 = vunpack.c.h.b16 %v2752
        %v2960 = vunpack.c.l.b16 %v2753
        %v2961 = vunpack.c.h.b16 %v2753
        %v2962 = vunpack.c.l.b16 %v2754
        %v2963 = vunpack.c.h.b16 %v2754
        %v2964 = vunpack.c.l.b16 %v2755
        %v2965 = vunpack.c.h.b16 %v2755
        %v2966 = vunpack.c.l.b16 %v2756
        %v2967 = vunpack.c.h.b16 %v2756
        %v2968 = vunpack.c.l.b16 %v2757
        %v2969 = vunpack.c.h.b16 %v2757
        %v2970 = vunpack.c.l.b16 %v2758
        %v2971 = vunpack.c.h.b16 %v2758
        %v2972 = vunpack.c.l.b16 %v2759
        %v2973 = vunpack.c.h.b16 %v2759
        %v2974 = vunpack.c.l.b16 %v2760
        %v2975 = vunpack.c.h.b16 %v2760
        %v2976 = vunpack.c.l.b16 %v2761
        %v2977 = vunpack.c.h.b16 %v2761
        %v2978 = vunpack.c.l.b16 %v2762
        %v2979 = vunpack.c.h.b16 %v2762
        %v2980 = vunpack.c.l.b16 %v2763
        %v2981 = vunpack.c.h.b16 %v2763
        %v2982 = vunpack.c.l.b16 %v2764
        %v2983 = vunpack.c.h.b16 %v2764
        %v2984 = vunpack.c.l.b16 %v2765
        %v2985 = vunpack.c.h.b16 %v2765
        %v2986 = vunpack.c.l.b16 %v2766
        %v2987 = vunpack.c.h.b16 %v2766
        %v2988 = vunpack.c.l.b16 %v2767
        %v2989 = vunpack.c.h.b16 %v2767
        %v2990 = vunpack.c.l.b16 %v2768
        %v2991 = vunpack.c.h.b16 %v2768
        %v2992 = vunpack.c.l.b16 %v2769
        %v2993 = vunpack.c.h.b16 %v2769
        %v2994 = vunpack.c.l.b16 %v2770
        %v2995 = vunpack.c.h.b16 %v2770
        %v2996 = vunpack.c.l.b16 %v2771
        %v2997 = vunpack.c.h.b16 %v2771
        %v2998 = vunpack.c.l.b16 %v2772
        %v2999 = vunpack.c.h.b16 %v2772
        %v3000 = vunpack.c.l.b16 %v2773
        %v3001 = vunpack.c.h.b16 %v2773
        %v3002 = vunpack.c.l.b16 %v2774
        %v3003 = vunpack.c.h.b16 %v2774
        %v3004 = vunpack.c.l.b16 %v2775
        %v3005 = vunpack.c.h.b16 %v2775
        %v3006 = vunpack.c.l.b16 %v2776
        %v3007 = vunpack.c.h.b16 %v2776
        %v3008 = vunpack.c.l.b16 %v2777
        %v3009 = vunpack.c.h.b16 %v2777
        %v3010 = vunpack.c.l.b16 %v2778
        %v3011 = vunpack.c.h.b16 %v2778
        %v3012 = vunpack.c.l.b16 %v2779
        %v3013 = vunpack.c.h.b16 %v2779
        %v3014 = vunpack.c.l.b16 %v2780
        %v3015 = vunpack.c.h.b16 %v2780
        %v3016 = vunpack.c.l.b16 %v2781
        %v3017 = vunpack.c.h.b16 %v2781
        %v3018 = vunpack.c.l.b16 %v2782
        %v3019 = vunpack.c.h.b16 %v2782
        %v3020 = vunpack.c.l.b16 %v2783
        %v3021 = vunpack.c.h.b16 %v2783
        %v3022 = vunpack.c.l.b16 %v2784
        %v3023 = vunpack.c.h.b16 %v2784
        %v3024 = vunpack.c.l.b16 %v2785
        %v3025 = vunpack.c.h.b16 %v2785
        %v3026 = vunpack.c.l.b16 %v2786
        %v3027 = vunpack.c.h.b16 %v2786
        %v3028 = vunpack.c.l.b16 %v2787
        %v3029 = vunpack.c.h.b16 %v2787
        %v3030 = vunpack.c.l.b16 %v2788
        %v3031 = vunpack.c.h.b16 %v2788
        %v3032 = vunpack.c.l.b16 %v2789
        %v3033 = vunpack.c.h.b16 %v2789
        %v3034 = vunpack.c.l.b16 %v2790
        %v3035 = vunpack.c.h.b16 %v2790
        %v3036 = vunpack.c.l.b16 %v2791
        %v3037 = vunpack.c.h.b16 %v2791
        %v3038 = vunpack.c.l.b16 %v2792
        %v3039 = vunpack.c.h.b16 %v2792
        %v3040 = vunpack.c.l.b16 %v2793
        %v3041 = vunpack.c.h.b16 %v2793
        %v3042 = vunpack.c.l.b16 %v2794
        %v3043 = vunpack.c.h.b16 %v2794
        %v3044 = vunpack.c.l.b16 %v2795
        %v3045 = vunpack.c.h.b16 %v2795
        %v3046 = vunpack.c.l.b16 %v2796
        %v3047 = vunpack.c.h.b16 %v2796
        %v3048 = vunpack.c.l.b16 %v2797
        %v3049 = vunpack.c.h.b16 %v2797
        %v3050 = vunpack.c.l.b16 %v2798
        %v3051 = vunpack.c.h.b16 %v2798
        %v3052 = vunpack.c.l.b16 %v2799
        %v3053 = vunpack.c.h.b16 %v2799
        %v3054 = vunpack.c.l.b16 %v2800
        %v3055 = vunpack.c.h.b16 %v2800
        %v3056 = vunpack.c.l.b16 %v2801
        %v3057 = vunpack.c.h.b16 %v2801
        %v3058 = vunpack.c.l.b16 %v2802
        %v3059 = vunpack.c.h.b16 %v2802
        %v3060 = vunpack.c.l.b16 %v2803
        %v3061 = vunpack.c.h.b16 %v2803
        %v3062 = vunpack.c.l.b16 %v2804
        %v3063 = vunpack.c.h.b16 %v2804
        %v3064 = vunpack.c.l.b16 %v2805
        %v3065 = vunpack.c.h.b16 %v2805
        %v3066 = vunpack.c.l.b16 %v2806
        %v3067 = vunpack.c.h.b16 %v2806
        %v3068 = vunpack.c.l.b16 %v2807
        %v3069 = vunpack.c.h.b16 %v2807
        %v3070 = vunpack.c.l.b16 %v2808
        %v3071 = vunpack.c.h.b16 %v2808
        %v3072 = vunpack.c.l.b16 %v2809
        %v3073 = vunpack.c.h.b16 %v2809
        %v3074 = vunpack.c.l.b16 %v2810
        %v3075 = vunpack.c.h.b16 %v2810
        %v3076 = vunpack.c.l.b16 %v2811
        %v3077 = vunpack.c.h.b16 %v2811
        %v3078 = vunpack.c.l.b16 %v2812
        %v3079 = vunpack.c.h.b16 %v2812
        %v3080 = vunpack.c.l.b16 %v2813
        %v3081 = vunpack.c.h.b16 %v2813
        %v3082 = vunpack.c.l.b16 %v2814
        %v3083 = vunpack.c.h.b16 %v2814
        %v3084 = vunpack.c.l.b16 %v2815
        %v3085 = vunpack.c.h.b16 %v2815
        %v3086 = vunpack.c.l.b16 %v2816
        %v3087 = vunpack.c.h.b16 %v2816
        %v3088 = vunpack.c.l.b16 %v2817
        %v3089 = vunpack.c.h.b16 %v2817
        %v3090 = vunpack.c.l.b16 %v2818
        %v3091 = vunpack.c.h.b16 %v2818
        %v3092 = vunpack.c.l.b16 %v2819
        %v3093 = vunpack.c.h.b16 %v2819
        %v3094 = vunpack.c.l.b16 %v2820
        %v3095 = vunpack.c.h.b16 %v2820
        %v3096 = vunpack.c.l.b16 %v2821
        %v3097 = vunpack.c.h.b16 %v2821
        %v3098 = vunpack.c.l.b16 %v2822
        %v3099 = vunpack.c.h.b16 %v2822
        %v3100 = vunpack.c.l.b16 %v2823
        %v3101 = vunpack.c.h.b16 %v2823
        %v3102 = vunpack.c.l.b16 %v2824
        %v3103 = vunpack.c.h.b16 %v2824
        %v3104 = vunpack.c.l.b16 %v2825
        %v3105 = vunpack.c.h.b16 %v2825
        %v3106 = vunpack.c.l.b16 %v2826
        %v3107 = vunpack.c.h.b16 %v2826
        %v3108 = vunpack.c.l.b16 %v2827
        %v3109 = vunpack.c.h.b16 %v2827
        %v3110 = vunpack.c.l.b16 %v2828
        %v3111 = vunpack.c.h.b16 %v2828
        %v3112 = vunpack.c.l.b16 %v2829
        %v3113 = vunpack.c.h.b16 %v2829
        %v3114 = vunpack.c.l.b16 %v2830
        %v3115 = vunpack.c.h.b16 %v2830
        %v3116 = vunpack.c.l.b16 %v2831
        %v3117 = vunpack.c.h.b16 %v2831
        %v3118 = vunpack.c.l.b16 %v2832
        %v3119 = vunpack.c.h.b16 %v2832
        %v3120 = vunpack.c.l.b16 %v2833
        %v3121 = vunpack.c.h.b16 %v2833
        %v3122 = vunpack.c.l.b16 %v2834
        %v3123 = vunpack.c.h.b16 %v2834
        %v3124 = vunpack.c.l.b16 %v2835
        %v3125 = vunpack.c.h.b16 %v2835
        %v3126 = vunpack.c.l.b16 %v2836
        %v3127 = vunpack.c.h.b16 %v2836
        %v3128 = vunpack.c.l.b16 %v2837
        %v3129 = vunpack.c.h.b16 %v2837
        %v3130 = vunpack.c.l.b16 %v2838
        %v3131 = vunpack.c.h.b16 %v2838
        %v3132 = vunpack.c.l.b16 %v2839
        %v3133 = vunpack.c.h.b16 %v2839
        %v3134 = vunpack.c.l.b16 %v2840
        %v3135 = vunpack.c.h.b16 %v2840
        %v3136 = vunpack.c.l.b16 %v2841
        %v3137 = vunpack.c.h.b16 %v2841
        %v3138 = vunpack.c.l.b16 %v2842
        %v3139 = vunpack.c.h.b16 %v2842
        %v3140 = vunpack.c.l.b16 %v2843
        %v3141 = vunpack.c.h.b16 %v2843
        %v3142 = vunpack.c.l.b16 %v2844
        %v3143 = vunpack.c.h.b16 %v2844
        %v3144 = vunpack.c.l.b16 %v2845
        %v3145 = vunpack.c.h.b16 %v2845
        %v3146 = vpack.c.b16 %v2956, %v2954
        %v3147 = vpack.c.b16 %v2957, %v2955
        %v3148 = vpack.c.b16 %v2960, %v2958
        %v3149 = vpack.c.b16 %v2961, %v2959
        %v3150 = vpack.c.b16 %v2964, %v2962
        %v3151 = vpack.c.b16 %v2965, %v2963
        %v3152 = vpack.c.b16 %v2968, %v2966
        %v3153 = vpack.c.b16 %v2969, %v2967
        %v3154 = vpack.c.b16 %v2972, %v2970
        %v3155 = vpack.c.b16 %v2973, %v2971
        %v3156 = vpack.c.b16 %v2976, %v2974
        %v3157 = vpack.c.b16 %v2977, %v2975
        %v3158 = vpack.c.b16 %v2980, %v2978
        %v3159 = vpack.c.b16 %v2981, %v2979
        %v3160 = vpack.c.b16 %v2984, %v2982
        %v3161 = vpack.c.b16 %v2985, %v2983
        %v3162 = vpack.c.b16 %v2988, %v2986
        %v3163 = vpack.c.b16 %v2989, %v2987
        %v3164 = vpack.c.b16 %v2992, %v2990
        %v3165 = vpack.c.b16 %v2993, %v2991
        %v3166 = vpack.c.b16 %v2996, %v2994
        %v3167 = vpack.c.b16 %v2997, %v2995
        %v3168 = vpack.c.b16 %v3000, %v2998
        %v3169 = vpack.c.b16 %v3001, %v2999
        %v3170 = vpack.c.b16 %v3004, %v3002
        %v3171 = vpack.c.b16 %v3005, %v3003
        %v3172 = vpack.c.b16 %v3008, %v3006
        %v3173 = vpack.c.b16 %v3009, %v3007
        %v3174 = vpack.c.b16 %v3012, %v3010
        %v3175 = vpack.c.b16 %v3013, %v3011
        %v3176 = vpack.c.b16 %v3016, %v3014
        %v3177 = vpack.c.b16 %v3017, %v3015
        %v3178 = vpack.c.b16 %v3020, %v3018
        %v3179 = vpack.c.b16 %v3021, %v3019
        %v3180 = vpack.c.b16 %v3024, %v3022
        %v3181 = vpack.c.b16 %v3025, %v3023
        %v3182 = vpack.c.b16 %v3028, %v3026
        %v3183 = vpack.c.b16 %v3029, %v3027
        %v3184 = vpack.c.b16 %v3032, %v3030
        %v3185 = vpack.c.b16 %v3033, %v3031
        %v3186 = vpack.c.b16 %v3036, %v3034
        %v3187 = vpack.c.b16 %v3037, %v3035
        %v3188 = vpack.c.b16 %v3040, %v3038
        %v3189 = vpack.c.b16 %v3041, %v3039
        %v3190 = vpack.c.b16 %v3044, %v3042
        %v3191 = vpack.c.b16 %v3045, %v3043
        %v3192 = vpack.c.b16 %v3048, %v3046
        %v3193 = vpack.c.b16 %v3049, %v3047
        %v3194 = vpack.c.b16 %v3052, %v3050
        %v3195 = vpack.c.b16 %v3053, %v3051
        %v3196 = vpack.c.b16 %v3056, %v3054
        %v3197 = vpack.c.b16 %v3057, %v3055
        %v3198 = vpack.c.b16 %v3060, %v3058
        %v3199 = vpack.c.b16 %v3061, %v3059
        %v3200 = vpack.c.b16 %v3064, %v3062
        %v3201 = vpack.c.b16 %v3065, %v3063
        %v3202 = vpack.c.b16 %v3068, %v3066
        %v3203 = vpack.c.b16 %v3069, %v3067
        %v3204 = vpack.c.b16 %v3072, %v3070
        %v3205 = vpack.c.b16 %v3073, %v3071
        %v3206 = vpack.c.b16 %v3076, %v3074
        %v3207 = vpack.c.b16 %v3077, %v3075
        %v3208 = vpack.c.b16 %v3080, %v3078
        %v3209 = vpack.c.b16 %v3081, %v3079
        %v3210 = vpack.c.b16 %v3084, %v3082
        %v3211 = vpack.c.b16 %v3085, %v3083
        %v3212 = vpack.c.b16 %v3088, %v3086
        %v3213 = vpack.c.b16 %v3089, %v3087
        %v3214 = vpack.c.b16 %v3092, %v3090
        %v3215 = vpack.c.b16 %v3093, %v3091
        %v3216 = vpack.c.b16 %v3096, %v3094
        %v3217 = vpack.c.b16 %v3097, %v3095
        %v3218 = vpack.c.b16 %v3100, %v3098
        %v3219 = vpack.c.b16 %v3101, %v3099
        %v3220 = vpack.c.b16 %v3104, %v3102
        %v3221 = vpack.c.b16 %v3105, %v3103
        %v3222 = vpack.c.b16 %v3108, %v3106
        %v3223 = vpack.c.b16 %v3109, %v3107
        %v3224 = vpack.c.b16 %v3112, %v3110
        %v3225 = vpack.c.b16 %v3113, %v3111
        %v3226 = vpack.c.b16 %v3116, %v3114
        %v3227 = vpack.c.b16 %v3117, %v3115
        %v3228 = vpack.c.b16 %v3120, %v3118
        %v3229 = vpack.c.b16 %v3121, %v3119
        %v3230 = vpack.c.b16 %v3124, %v3122
        %v3231 = vpack.c.b16 %v3125, %v3123
        %v3232 = vpack.c.b16 %v3128, %v3126
        %v3233 = vpack.c.b16 %v3129, %v3127
        %v3234 = vpack.c.b16 %v3132, %v3130
        %v3235 = vpack.c.b16 %v3133, %v3131
        %v3236 = vpack.c.b16 %v3136, %v3134
        %v3237 = vpack.c.b16 %v3137, %v3135
        %v3238 = vpack.c.b16 %v3140, %v3138
        %v3239 = vpack.c.b16 %v3141, %v3139
        %v3240 = vpack.c.b16 %v3144, %v3142
        %v3241 = vpack.c.b16 %v3145, %v3143
        %3338 = vmatprep.subr.bf16.mxu0 %v3147
        %3339 = vmatpush1.bf16.msra.mxu0 %v3146
        %3340 = vmatprep.subr.bf16.mxu0 %v3149
        %3341 = vmatpush1.bf16.msra.mxu0 %v3148
        %3342 = vmatprep.subr.bf16.mxu0 %v3151
        %3343 = vmatpush1.bf16.msra.mxu0 %v3150
        %3344 = vmatprep.subr.bf16.mxu0 %v3153
        %3345 = vmatpush1.bf16.msra.mxu0 %v3152
        %3346 = vmatprep.subr.bf16.mxu0 %v3155
        %3347 = vmatpush1.bf16.msra.mxu0 %v3154
        %3348 = vmatprep.subr.bf16.mxu0 %v3157
        %3349 = vmatpush1.bf16.msra.mxu0 %v3156
        %3350 = vmatprep.subr.bf16.mxu0 %v3159
        %3351 = vmatpush1.bf16.msra.mxu0 %v3158
        %3352 = vmatprep.subr.bf16.mxu0 %v3161
        %3353 = vmatpush1.bf16.msra.mxu0 %v3160
        %3354 = vmatprep.subr.bf16.mxu0 %v3163
        %3355 = vmatpush1.bf16.msra.mxu0 %v3162
        %3356 = vmatprep.subr.bf16.mxu0 %v3165
        %3357 = vmatpush1.bf16.msra.mxu0 %v3164
        %3358 = vmatprep.subr.bf16.mxu0 %v3167
        %3359 = vmatpush1.bf16.msra.mxu0 %v3166
        %3360 = vmatprep.subr.bf16.mxu0 %v3169
        %3361 = vmatpush1.bf16.msra.mxu0 %v3168
        %3362 = vmatprep.subr.bf16.mxu0 %v3171
        %3363 = vmatpush1.bf16.msra.mxu0 %v3170
        %3364 = vmatprep.subr.bf16.mxu0 %v3173
        %3365 = vmatpush1.bf16.msra.mxu0 %v3172
        %3366 = vmatprep.subr.bf16.mxu0 %v3175
        %3367 = vmatpush1.bf16.msra.mxu0 %v3174
        %3368 = vmatprep.subr.bf16.mxu0 %v3177
        %3369 = vmatpush1.bf16.msra.mxu0 %v3176
        %3370 = vmatprep.mubr.bf16.mxu0 %v2739
        %3371 = vmatmul.mubr.bf16.gmra.mrb[0].mxu0 %v2738
        %v3372 = vpop.f32.mrb[0].mxu0
        %v3373 = vadd.f32 %v2851, %v3372
        %v3374 = vpop.f32.mrb[0].mxu0
        %v3375 = vadd.f32 %v2855, %v3374
        %v3376 = vpop.f32.mrb[0].mxu0
        %v3377 = vadd.f32 %v2851, %v3376
        %v3378 = vpop.f32.mrb[0].mxu0
        %v3379 = vadd.f32 %v2855, %v3378
        %3380 = vmatprep.mubr.bf16.mxu0 %v2745
        %3381 = vmatmul.mubr.bf16.gmra.mrb[0].mxu0 %v2744
        %v3382 = vpop.f32.mrb[0].mxu0
        %v3383 = vadd.f32 %v2851, %v3382
        %v3384 = vpop.f32.mrb[0].mxu0
        %v3385 = vadd.f32 %v2855, %v3384
        %v3386 = vpop.f32.mrb[0].mxu0
        %v3387 = vadd.f32 %v2851, %v3386
        %v3388 = vpop.f32.mrb[0].mxu0
        %v3389 = vadd.f32 %v2855, %v3388
        %3390 = vdwg.mxu0
        %3391 = vmatprep.subr.bf16.mxu0 %v3179
        %3392 = vmatpush1.bf16.msra.mxu0 %v3178
        %3393 = vmatprep.subr.bf16.mxu0 %v3181
        %3394 = vmatpush1.bf16.msra.mxu0 %v3180
        %3395 = vmatprep.subr.bf16.mxu0 %v3183
        %3396 = vmatpush1.bf16.msra.mxu0 %v3182
        %3397 = vmatprep.subr.bf16.mxu0 %v3185
        %3398 = vmatpush1.bf16.msra.mxu0 %v3184
        %3399 = vmatprep.subr.bf16.mxu0 %v3187
        %3400 = vmatpush1.bf16.msra.mxu0 %v3186
        %3401 = vmatprep.subr.bf16.mxu0 %v3189
        %3402 = vmatpush1.bf16.msra.mxu0 %v3188
        %3403 = vmatprep.subr.bf16.mxu0 %v3191
        %3404 = vmatpush1.bf16.msra.mxu0 %v3190
        %3405 = vmatprep.subr.bf16.mxu0 %v3193
        %3406 = vmatpush1.bf16.msra.mxu0 %v3192
        %3407 = vmatprep.subr.bf16.mxu0 %v3195
        %3408 = vmatpush1.bf16.msra.mxu0 %v3194
        %3409 = vmatprep.subr.bf16.mxu0 %v3197
        %3410 = vmatpush1.bf16.msra.mxu0 %v3196
        %3411 = vmatprep.subr.bf16.mxu0 %v3199
        %3412 = vmatpush1.bf16.msra.mxu0 %v3198
        %3413 = vmatprep.subr.bf16.mxu0 %v3201
        %3414 = vmatpush1.bf16.msra.mxu0 %v3200
        %3415 = vmatprep.subr.bf16.mxu0 %v3203
        %3416 = vmatpush1.bf16.msra.mxu0 %v3202
        %3417 = vmatprep.subr.bf16.mxu0 %v3205
        %3418 = vmatpush1.bf16.msra.mxu0 %v3204
        %3419 = vmatprep.subr.bf16.mxu0 %v3207
        %3420 = vmatpush1.bf16.msra.mxu0 %v3206
        %3421 = vmatprep.subr.bf16.mxu0 %v3209
        %3422 = vmatpush1.bf16.msra.mxu0 %v3208
        %3423 = vmatprep.mubr.bf16.mxu0 %v2741
        %3424 = vmatmul.mubr.bf16.gmra.mrb[0].mxu0 %v2740
        %v3425 = vpop.f32.mrb[0].mxu0
        %v3426 = vadd.f32 %v3373, %v3425
        %v3427 = vpop.f32.mrb[0].mxu0
        %v3428 = vadd.f32 %v3375, %v3427
        %v3429 = vpop.f32.mrb[0].mxu0
        %v3430 = vadd.f32 %v3377, %v3429
        %v3431 = vpop.f32.mrb[0].mxu0
        %v3432 = vadd.f32 %v3379, %v3431
        %3433 = vmatprep.mubr.bf16.mxu0 %v2747
        %3434 = vmatmul.mubr.bf16.gmra.mrb[0].mxu0 %v2746
        %v3435 = vpop.f32.mrb[0].mxu0
        %v3436 = vadd.f32 %v3383, %v3435
        %v3437 = vpop.f32.mrb[0].mxu0
        %v3438 = vadd.f32 %v3385, %v3437
        %v3439 = vpop.f32.mrb[0].mxu0
        %v3440 = vadd.f32 %v3387, %v3439
        %v3441 = vpop.f32.mrb[0].mxu0
        %v3442 = vadd.f32 %v3389, %v3441
        %3443 = vdwg.mxu0
        %3444 = vmatprep.subr.bf16.mxu0 %v3211
        %3445 = vmatpush1.bf16.msra.mxu0 %v3210
        %3446 = vmatprep.subr.bf16.mxu0 %v3213
        %3447 = vmatpush1.bf16.msra.mxu0 %v3212
        %3448 = vmatprep.subr.bf16.mxu0 %v3215
        %3449 = vmatpush1.bf16.msra.mxu0 %v3214
        %3450 = vmatprep.subr.bf16.mxu0 %v3217
        %3451 = vmatpush1.bf16.msra.mxu0 %v3216
        %3452 = vmatprep.subr.bf16.mxu0 %v3219
        %3453 = vmatpush1.bf16.msra.mxu0 %v3218
        %3454 = vmatprep.subr.bf16.mxu0 %v3221
        %3455 = vmatpush1.bf16.msra.mxu0 %v3220
        %3456 = vmatprep.subr.bf16.mxu0 %v3223
        %3457 = vmatpush1.bf16.msra.mxu0 %v3222
        %3458 = vmatprep.subr.bf16.mxu0 %v3225
        %3459 = vmatpush1.bf16.msra.mxu0 %v3224
        %3460 = vmatprep.subr.bf16.mxu0 %v3227
        %3461 = vmatpush1.bf16.msra.mxu0 %v3226
        %3462 = vmatprep.subr.bf16.mxu0 %v3229
        %3463 = vmatpush1.bf16.msra.mxu0 %v3228
        %3464 = vmatprep.subr.bf16.mxu0 %v3231
        %3465 = vmatpush1.bf16.msra.mxu0 %v3230
        %3466 = vmatprep.subr.bf16.mxu0 %v3233
        %3467 = vmatpush1.bf16.msra.mxu0 %v3232
        %3468 = vmatprep.subr.bf16.mxu0 %v3235
        %3469 = vmatpush1.bf16.msra.mxu0 %v3234
        %3470 = vmatprep.subr.bf16.mxu0 %v3237
        %3471 = vmatpush1.bf16.msra.mxu0 %v3236
        %3472 = vmatprep.subr.bf16.mxu0 %v3239
        %3473 = vmatpush1.bf16.msra.mxu0 %v3238
        %3474 = vmatprep.subr.bf16.mxu0 %v3241
        %3475 = vmatpush1.bf16.msra.mxu0 %v3240
        %3476 = vmatprep.mubr.bf16.mxu0 %v2743
        %3477 = vmatmul.mubr.bf16.gmra.mrb[0].mxu0 %v2742
        %v3478 = vpop.f32.mrb[0].mxu0
        %v3479 = vadd.f32 %v3426, %v3478
        %v3480 = vpop.f32.mrb[0].mxu0
        %v3481 = vadd.f32 %v3428, %v3480
        %v3482 = vpop.f32.mrb[0].mxu0
        %v3483 = vadd.f32 %v3430, %v3482
        %v3484 = vpop.f32.mrb[0].mxu0
        %v3485 = vadd.f32 %v3432, %v3484
        %3486 = vmatprep.mubr.bf16.mxu0 %v2749
        %3487 = vmatmul.mubr.bf16.gmra.mrb[0].mxu0 %v2748
        %v3488 = vpop.f32.mrb[0].mxu0
        %v3489 = vadd.f32 %v3436, %v3488
        %v3490 = vpop.f32.mrb[0].mxu0
        %v3491 = vadd.f32 %v3438, %v3490
        %v3492 = vpop.f32.mrb[0].mxu0
        %v3493 = vadd.f32 %v3440, %v3492
        %v3494 = vpop.f32.mrb[0].mxu0
        %v3495 = vadd.f32 %v3442, %v3494
        %3496 = vdwg.mxu0
        %v3497 = vld [vmem:[%s726] sm:$0x3]
        %v3499 = vlaneseq
        %v3500 = vshrl.u32 %v3499, 7
        %v3501 = vsub.s32 0, %v3500
        %v3502 = vrot.slane %v3497, %v3501
        %v3503 = vlaneseq
        %v3504 = vshrl.u32 %v3503, 7
        %v3505 = vsub.s32 1, %v3504
        %v3506 = vrot.slane %v3497, %v3505
        %v3509 = vmul.f32 %v3479, %v3502
        %v3510 = vmul.f32 %v3481, %v3506
        %v3511 = vmul.f32 %v3483, %v3502
        %v3512 = vmul.f32 %v3485, %v3506
        %v3513 = vmul.f32 %v3489, %v3502
        %v3514 = vmul.f32 %v3491, %v3506
        %v3515 = vmul.f32 %v3493, %v3502
        %v3516 = vmul.f32 %v3495, %v3506
        %v3517 = vadd.f32 %v1025, %v3509
        %v3518 = vadd.f32 %v1026, %v3510
        %v3519 = vadd.f32 %v1027, %v3511
        %v3520 = vadd.f32 %v1028, %v3512
        %v3521 = vadd.f32 %v1029, %v3513
        %v3522 = vadd.f32 %v1030, %v3514
        %v3523 = vadd.f32 %v1031, %v3515
        %v3524 = vadd.f32 %v1032, %v3516
        %3525 = vst [vmem:[#allocation2] sm:$0xff] %v3517
        %3526 = vst [vmem:[#allocation2 + $0x8] sm:$0xff] %v3518
        %3527 = vst [vmem:[#allocation2 + $0x10] sm:$0xff] %v3519
        %3528 = vst [vmem:[#allocation2 + $0x18] sm:$0xff] %v3520
        %3529 = vst [vmem:[#allocation2 + $0x20] sm:$0xff] %v3521
        %3530 = vst [vmem:[#allocation2 + $0x28] sm:$0xff] %v3522
        %3531 = vst [vmem:[#allocation2 + $0x30] sm:$0xff] %v3523
        %3532 = vst [vmem:[#allocation2 + $0x38] sm:$0xff] %v3524
        %p3533 = scmp.eq.s32.totalorder %s41, 3
        // Predicated region
        $region133: #{tpu_custom_call.1} parent=75 // pred_check
          %p3534 = pneg %p3533
        $region134: #{tpu_custom_call.1} parent=75 // pred_check_branch
          %3536 = sbr.rel (%p3534) target = $region136
        $region135: #{tpu_custom_call.1} parent=75 // pred_region
          %v3537 = vadd.f32 %v3517, %v3519
          %v3538 = vrot.slane %v3537, 4
          %v3539 = vadd.f32 %v3537, %v3538
          %v3540 = vrot.slane %v3539, 2
          %v3541 = vadd.f32 %v3539, %v3540
          %v3542 = vrot.slane %v3541, 1
          %v3543 = vadd.f32 %v3541, %v3542
          %v3544 = vadd.f32 %v3518, %v3520
          %v3545 = vrot.slane %v3544, 4
          %v3546 = vadd.f32 %v3544, %v3545
          %v3547 = vrot.slane %v3546, 2
          %v3548 = vadd.f32 %v3546, %v3547
          %v3549 = vrot.slane %v3548, 1
          %v3550 = vadd.f32 %v3548, %v3549
          %v3551 = vadd.f32 %v3521, %v3523
          %v3552 = vrot.slane %v3551, 4
          %v3553 = vadd.f32 %v3551, %v3552
          %v3554 = vrot.slane %v3553, 2
          %v3555 = vadd.f32 %v3553, %v3554
          %v3556 = vrot.slane %v3555, 1
          %v3557 = vadd.f32 %v3555, %v3556
          %v3558 = vadd.f32 %v3522, %v3524
          %v3559 = vrot.slane %v3558, 4
          %v3560 = vadd.f32 %v3558, %v3559
          %v3561 = vrot.slane %v3560, 2
          %v3562 = vadd.f32 %v3560, %v3561
          %v3563 = vrot.slane %v3562, 1
          %v3564 = vadd.f32 %v3562, %v3563
          %v3565 = vrcp.pop 16.0
          %v3566 = vmul.f32 %v3543, %v3565
          %v3567 = vmul.f32 %v3550, %v3565
          %v3568 = vmul.f32 %v3557, %v3565
          %v3569 = vmul.f32 %v3564, %v3565
          %v3570 = vpack.c.bf16 %v3566, %v3566
          %v3571 = vpack.c.bf16 %v3567, %v3567
          %v3572 = vpack.c.bf16 %v3568, %v3568
          %v3573 = vpack.c.bf16 %v3569, %v3569
          %v3574 = vld [vmem:[#allocation22] sm:$0xf]
          %v3575 = vld [vmem:[#allocation22 + $0x4] sm:$0xf]
          %v3576 = vld [vmem:[#allocation22 + $0x8] sm:$0xf]
          %v3577 = vld [vmem:[#allocation22 + $0xc] sm:$0xf]
          %v3578 = vld [vmem:[#allocation22 + $0x10] sm:$0xf]
          %v3579 = vld [vmem:[#allocation22 + $0x14] sm:$0xf]
          %v3580 = vld [vmem:[#allocation22 + $0x18] sm:$0xf]
          %v3581 = vld [vmem:[#allocation22 + $0x1c] sm:$0xf]
          %v3582 = vld [vmem:[#allocation22 + $0x20] sm:$0xf]
          %v3583 = vld [vmem:[#allocation22 + $0x24] sm:$0xf]
          %v3584 = vld [vmem:[#allocation22 + $0x28] sm:$0xf]
          %v3585 = vld [vmem:[#allocation22 + $0x2c] sm:$0xf]
          %v3586 = vld [vmem:[#allocation22 + $0x30] sm:$0xf]
          %v3587 = vld [vmem:[#allocation22 + $0x34] sm:$0xf]
          %v3588 = vld [vmem:[#allocation22 + $0x38] sm:$0xf]
          %v3589 = vld [vmem:[#allocation22 + $0x3c] sm:$0xf]
          %v3590 = vld [vmem:[#allocation22 + $0x40] sm:$0xf]
          %v3591 = vld [vmem:[#allocation22 + $0x44] sm:$0xf]
          %v3592 = vld [vmem:[#allocation22 + $0x48] sm:$0xf]
          %v3593 = vld [vmem:[#allocation22 + $0x4c] sm:$0xf]
          %v3594 = vld [vmem:[#allocation22 + $0x50] sm:$0xf]
          %v3595 = vld [vmem:[#allocation22 + $0x54] sm:$0xf]
          %v3596 = vld [vmem:[#allocation22 + $0x58] sm:$0xf]
          %v3597 = vld [vmem:[#allocation22 + $0x5c] sm:$0xf]
          %v3598 = vld [vmem:[#allocation22 + $0x60] sm:$0xf]
          %v3599 = vld [vmem:[#allocation22 + $0x64] sm:$0xf]
          %v3600 = vld [vmem:[#allocation22 + $0x68] sm:$0xf]
          %v3601 = vld [vmem:[#allocation22 + $0x6c] sm:$0xf]
          %v3602 = vld [vmem:[#allocation22 + $0x70] sm:$0xf]
          %v3603 = vld [vmem:[#allocation22 + $0x74] sm:$0xf]
          %v3604 = vld [vmem:[#allocation22 + $0x78] sm:$0xf]
          %v3605 = vld [vmem:[#allocation22 + $0x7c] sm:$0xf]
          %v3606 = vld [vmem:[#allocation24] sm:$0x1]
          %v3608 = vlaneseq
          %v3609 = vshrl.u32 %v3608, 7
          %v3610 = vsub.s32 0, %v3609
          %v3611 = vrot.slane %v3606, %v3610
          %v3617 = vunpack.c.l.b16 %v3570
          %v3618 = vunpack.c.l.b16 %v3571
          %v3619 = vunpack.c.l.b16 %v3572
          %v3620 = vunpack.c.l.b16 %v3573
          %vm3621 = vcmask 1041409
          %v3622 = vsel %vm3621, %v3619, %v3617
          %v3623 = vsel %vm3621, %v3620, %v3618
          %v3624 = vpack.c.b16 %v3622, %v3622
          %v3625 = vpack.c.b16 %v3623, %v3623
          %v3660 = vunpack.c.l.b16 %v3574
          %v3661 = vunpack.c.l.b16 %v3575
          %v3662 = vunpack.c.l.b16 %v3576
          %v3663 = vunpack.c.l.b16 %v3577
          %v3664 = vunpack.c.l.b16 %v3578
          %v3665 = vunpack.c.l.b16 %v3579
          %v3666 = vunpack.c.l.b16 %v3580
          %v3667 = vunpack.c.l.b16 %v3581
          %v3668 = vunpack.c.l.b16 %v3582
          %v3669 = vunpack.c.l.b16 %v3583
          %v3670 = vunpack.c.l.b16 %v3584
          %v3671 = vunpack.c.l.b16 %v3585
          %v3672 = vunpack.c.l.b16 %v3586
          %v3673 = vunpack.c.l.b16 %v3587
          %v3674 = vunpack.c.l.b16 %v3588
          %v3675 = vunpack.c.l.b16 %v3589
          %v3676 = vunpack.c.l.b16 %v3590
          %v3677 = vunpack.c.l.b16 %v3591
          %v3678 = vunpack.c.l.b16 %v3592
          %v3679 = vunpack.c.l.b16 %v3593
          %v3680 = vunpack.c.l.b16 %v3594
          %v3681 = vunpack.c.l.b16 %v3595
          %v3682 = vunpack.c.l.b16 %v3596
          %v3683 = vunpack.c.l.b16 %v3597
          %v3684 = vunpack.c.l.b16 %v3598
          %v3685 = vunpack.c.l.b16 %v3599
          %v3686 = vunpack.c.l.b16 %v3600
          %v3687 = vunpack.c.l.b16 %v3601
          %v3688 = vunpack.c.l.b16 %v3602
          %v3689 = vunpack.c.l.b16 %v3603
          %v3690 = vunpack.c.l.b16 %v3604
          %v3691 = vunpack.c.l.b16 %v3605
          %v3692 = vpack.c.b16 %v3661, %v3660
          %v3693 = vpack.c.b16 %v3663, %v3662
          %v3694 = vpack.c.b16 %v3665, %v3664
          %v3695 = vpack.c.b16 %v3667, %v3666
          %v3696 = vpack.c.b16 %v3669, %v3668
          %v3697 = vpack.c.b16 %v3671, %v3670
          %v3698 = vpack.c.b16 %v3673, %v3672
          %v3699 = vpack.c.b16 %v3675, %v3674
          %v3700 = vpack.c.b16 %v3677, %v3676
          %v3701 = vpack.c.b16 %v3679, %v3678
          %v3702 = vpack.c.b16 %v3681, %v3680
          %v3703 = vpack.c.b16 %v3683, %v3682
          %v3704 = vpack.c.b16 %v3685, %v3684
          %v3705 = vpack.c.b16 %v3687, %v3686
          %v3706 = vpack.c.b16 %v3689, %v3688
          %v3707 = vpack.c.b16 %v3691, %v3690
          %3724 = vmatprep.subr.bf16.mxu0 0
          %3725 = vmatpush1.bf16.msra.mxu0 %v3692
          %3726 = vmatprep.subr.bf16.mxu0 0
          %3727 = vmatpush1.bf16.msra.mxu0 %v3693
          %3728 = vmatprep.subr.bf16.mxu0 0
          %3729 = vmatpush1.bf16.msra.mxu0 %v3694
          %3730 = vmatprep.subr.bf16.mxu0 0
          %3731 = vmatpush1.bf16.msra.mxu0 %v3695
          %3732 = vmatprep.subr.bf16.mxu0 0
          %3733 = vmatpush1.bf16.msra.mxu0 %v3696
          %3734 = vmatprep.subr.bf16.mxu0 0
          %3735 = vmatpush1.bf16.msra.mxu0 %v3697
          %3736 = vmatprep.subr.bf16.mxu0 0
          %3737 = vmatpush1.bf16.msra.mxu0 %v3698
          %3738 = vmatprep.subr.bf16.mxu0 0
          %3739 = vmatpush1.bf16.msra.mxu0 %v3699
          %3740 = vmatprep.subr.bf16.mxu0 0
          %3741 = vmatpush1.bf16.msra.mxu0 %v3700
          %3742 = vmatprep.subr.bf16.mxu0 0
          %3743 = vmatpush1.bf16.msra.mxu0 %v3701
          %3744 = vmatprep.subr.bf16.mxu0 0
          %3745 = vmatpush1.bf16.msra.mxu0 %v3702
          %3746 = vmatprep.subr.bf16.mxu0 0
          %3747 = vmatpush1.bf16.msra.mxu0 %v3703
          %3748 = vmatprep.subr.bf16.mxu0 0
          %3749 = vmatpush1.bf16.msra.mxu0 %v3704
          %3750 = vmatprep.subr.bf16.mxu0 0
          %3751 = vmatpush1.bf16.msra.mxu0 %v3705
          %3752 = vmatprep.subr.bf16.mxu0 0
          %3753 = vmatpush1.bf16.msra.mxu0 %v3706
          %3754 = vmatprep.subr.bf16.mxu0 0
          %3755 = vmatpush1.bf16.msra.mxu0 %v3707
          %3756 = vmatprep.mubr.bf16.mxu0 %v3625
          %3757 = vmatmul.mubr.bf16.gmra.mrb[0].mxu0 %v3624
          %v3758 = vpop.f32.mrb[0].mxu0
          %v3759 = vadd.f32 %v3611, %v3758
          %v3760 = vpop.f32.mrb[0].mxu0
          %v3761 = vpop.f32.mrb[0].mxu0
          %v3762 = vpop.f32.mrb[0].mxu0
          %3763 = vdwg.mxu0
          %3764 = vst [vmem:[#allocation25] sm:$0x3] %v3759
        $region136: #{tpu_custom_call.1} parent=75 // pred_fallthru
          _
        // Predicated region
        $region137: #{tpu_custom_call.1} parent=75 // pred_check
          %p3765 = pneg %p393
        $region138: #{tpu_custom_call.1} parent=75 // pred_check_branch
          %3767 = sbr.rel (%p3765) target = $region140
        $region139: #{tpu_custom_call.1} parent=75 // pred_region
          %s3769 = ssub.s32 32, 32
          %3770 = vsyncadd [#allocation6], %s3769
          %s3772 = sshll.u32 [#allocation25], 4
          %s3773 = int_to_ptr.vmem [resolvable:$true] %s3772
          %3775 = dma.vmem_to_hbm [thread:$0]  %s3773, 32, %s14, [#allocation6]
        $region140: #{tpu_custom_call.1} parent=75 // pred_fallthru
          _
        // Predicated region
        $region141: #{tpu_custom_call.1} parent=75 // pred_check
          %p3776 = pneg %p393
        $region142: #{tpu_custom_call.1} parent=75 // pred_check_branch
          %3778 = sbr.rel (%p3776) target = $region144
        $region143: #{tpu_custom_call.1} parent=75 // pred_region
          %3779 = dma.done [#allocation6], 32
        $region144: #{tpu_custom_call.1} parent=75 // pred_fallthru
          _
      $region76: #{tpu_custom_call.1} parent=5 // pred_fallthru
        _
      %p3780 = scmp.le.s32.totalorder 2, %s36
      // Predicated region
      $region145: #{tpu_custom_call.1} parent=5 // pred_check
        %p3781 = pneg %p3780
      $region146: #{tpu_custom_call.1} parent=5 // pred_check_branch
        %3783 = sbr.rel (%p3781) target = $region148
      $region147: #{tpu_custom_call.1} parent=5 // pred_region
        %s3784 = ssub.s32 %s36, 2
      $region148: #{tpu_custom_call.1} parent=5 // pred_fallthru
        _
    $region6: #{tpu_custom_call.1} parent=1 // loop_footer
      %s40 = sadd.s32 1, %s36
    $region7: #{tpu_custom_call.1} parent=1 // loop_footer_branch
      %35 = sbr.rel target = $region3
    $region8: #{tpu_custom_call.1} parent=1 // loop_exit
      _
    %3785 = vsyncpa [#allocation5], 1
    %s3786 = scalar_lea.sflag [#allocation5], 1
    %3787 = vsyncpa %s3786, 1
    %3788 = vsyncpa [#allocation8], 1
    %3789 = vsyncpa [#allocation11], 1
    %s3790 = scalar_lea.sflag [#allocation11], 1
    %3791 = vsyncpa %s3790, 1
    %3792 = vsyncpa [#allocation14], 1
    %s3793 = scalar_lea.sflag [#allocation14], 1
    %3794 = vsyncpa %s3793, 1
    %3795 = vsyncpa [#allocation17], 1
    %s3796 = scalar_lea.sflag [#allocation17], 1
    %3797 = vsyncpa %s3796, 1
    %3798 = vsyncpa [#allocation20], 1
    %s3799 = scalar_lea.sflag [#allocation20], 1
    %3800 = vsyncpa %s3799, 1
    %3801 = vsyncpa [#allocation23], 1
    %3802 = vsyncpa [#allocation6], 1
    %s3803 = scalar_lea.sflag [#allocation6], 1
    %3804 = vsyncpa %s3803, 1

</llo_original>
